<compile_context>
chip_gen: v7x
topology: tpu7x:2x2x1
jax: 0.10.0
libtpu: 0.0.40
codegen_flags: <defaults>
</compile_context>

<pallas_src>
import functools
import math
import random

import jax
import jax.numpy as jnp
from jax import lax
from jax.experimental import pallas as pl
from jax.experimental.pallas import tpu as pltpu

# ----------------------- small, module-consistent config -----------------------
VOCAB = 128          # vocab_size (small synthetic)
MAX_SEQ = 16         # max_seq_len
HIDDEN = 128         # hidden_size
HEADS = 4            # num_heads
HEAD_DIM = HIDDEN // HEADS
DEPTH = 2            # depth
MLP_HIDDEN = int(HIDDEN * 4.0)   # mlp_ratio = 4.0
EPS = 1e-5           # layernorm_epsilon
NEG = -10000.0
TOPK = 5

# packed per-layer small-parameter slab: one lane-dense [8, VEC_W] block per layer
VEC_W = max(3 * HIDDEN, MLP_HIDDEN)          # 512
ROW_LN1_G, ROW_LN1_B = 0, 1
ROW_B_QKV, ROW_B_PROJ = 2, 3
ROW_LN2_G, ROW_LN2_B = 4, 5
ROW_B_FC1, ROW_B_FC2 = 6, 7

# q @ k^T expressed via dimension numbers (no explicit transpose op)
NT_DIMS = (((1,), (1,)), ((), ()))


# ----------------------------- in-kernel helpers -------------------------------
def _layernorm(x, g, b):
    mu = jnp.mean(x, axis=-1, keepdims=True)
    var = jnp.mean(jnp.square(x - mu), axis=-1, keepdims=True)
    return (x - mu) * lax.rsqrt(var + EPS) * g + b


def _gelu(x):
    # OpenAI gelu (exactly as gelu_impl in the reference)
    return 0.5 * x * (1.0 + jnp.tanh(0.7978845608028654 * x * (1.0 + 0.044715 * x * x)))


def _attention(h_ln, wqkv, b_qkv, mask):
    """Multi-head self-attention for one batch element, transpose-free.

    fused-QKV column layout: [ q(H) | k(H) | v(H) ], each 128-lane-aligned block with
    heads laid out sequentially (head n = columns n*HEAD_DIM : (n+1)*HEAD_DIM inside the
    block).  Torch checkpoints with per-head interleaved fused QKV must be permuted.
    """
    qkv = jnp.dot(h_ln.astype(jnp.bfloat16), wqkv,
                  preferred_element_type=jnp.float32) + b_qkv          # (S, 3H) f32
    q = qkv[:, 0 * HIDDEN:1 * HIDDEN].astype(jnp.bfloat16)             # (S, H)
    k = qkv[:, 1 * HIDDEN:2 * HIDDEN].astype(jnp.bfloat16)
    v = qkv[:, 2 * HIDDEN:3 * HIDDEN].astype(jnp.bfloat16)

    scale = 1.0 / math.sqrt(HEAD_DIM)
    ctx_heads = []
    for n in range(HEADS):                                             # static unroll
        sl = slice(n * HEAD_DIM, (n + 1) * HEAD_DIM)
        s = lax.dot_general(q[:, sl], k[:, sl], NT_DIMS,
                            preferred_element_type=jnp.float32)        # (S, S) f32
        s = s * scale + mask                                           # causal + pad mask
        s = s - jnp.max(s, axis=-1, keepdims=True)
        p = jnp.exp(s)
        p = p * pl.reciprocal(jnp.sum(p, axis=-1, keepdims=True), approx=False)
        ctx_heads.append(jnp.dot(p.astype(jnp.bfloat16), v[:, sl],
                                 preferred_element_type=jnp.float32))  # (S, hd)
    return jnp.concatenate(ctx_heads, axis=-1)                         # (S, H) f32


# ------------------------------ fused Pallas kernel -----------------------------
def fused_pipeline_kernel(x_ref, mask_ref, vecs_ref, wqkv_ref, wproj_ref,
                          w1_ref, w2_ref, lnf_ref, whead_ref, out_ref, *, depth):
    x = x_ref[...]                         # (S, H) f32 — this grid step's batch element
    mask = mask_ref[...]                   # (S, S) f32 combined causal+padding mask

    for d in range(depth):                 # static unroll over transformer layers
        vec = vecs_ref[d]                  # (8, VEC_W) packed per-layer small params
        ln1_g, ln1_b = vec[ROW_LN1_G:ROW_LN1_G + 1, :HIDDEN], vec[ROW_LN1_B:ROW_LN1_B + 1, :HIDDEN]
        b_qkv = vec[ROW_B_QKV:ROW_B_QKV + 1, :3 * HIDDEN]
        b_proj = vec[ROW_B_PROJ:ROW_B_PROJ + 1, :HIDDEN]
        ln2_g, ln2_b = vec[ROW_LN2_G:ROW_LN2_G + 1, :HIDDEN], vec[ROW_LN2_B:ROW_LN2_B + 1, :HIDDEN]
        b_fc1 = vec[ROW_B_FC1:ROW_B_FC1 + 1, :MLP_HIDDEN]
        b_fc2 = vec[ROW_B_FC2:ROW_B_FC2 + 1, :HIDDEN]

        # ---- attention block (pre-layernorm, apply_post_layernorm=False) ----
        h = _layernorm(x, ln1_g, ln1_b)
        ctx = _attention(h, wqkv_ref[d], b_qkv, mask)
        attn = jnp.dot(ctx.astype(jnp.bfloat16), wproj_ref[d],
                       preferred_element_type=jnp.float32) + b_proj
        x = x + attn

        # ---- MLP block ----
        h2 = _layernorm(x, ln2_g, ln2_b)
        m = jnp.dot(h2.astype(jnp.bfloat16), w1_ref[d],
                    preferred_element_type=jnp.float32) + b_fc1
        m = _gelu(m)
        m = jnp.dot(m.astype(jnp.bfloat16), w2_ref[d],
                    preferred_element_type=jnp.float32) + b_fc2
        x = x + m

    # ---- final LayerNorm1D + LMHead1D ----
    lnf = lnf_ref[...]                     # (2, H): row 0 = gamma, row 1 = beta
    hf = _layernorm(x, lnf[0:1, :], lnf[1:2, :])
    out_ref[...] = jnp.dot(hf.astype(jnp.bfloat16), whead_ref[...],
                           preferred_element_type=jnp.float32)


# ------------------------------ JAX wrappers ------------------------------------
def run_fused(hidden, mask, params, batch, seq):
    depth = params['w_qkv'].shape[0]

    def resident(arr):                      # full array, same block every grid step
        zeros = (0,) * arr.ndim
        return pl.BlockSpec(arr.shape, lambda b, _z=zeros: _z)

    # Advisory cost estimate (helps XLA schedule surrounding embedding glue).
    flops = (depth * batch * (2 * seq * HIDDEN * (4 * HIDDEN + 2 * MLP_HIDDEN)
                              + 4 * HEADS * seq * seq * HEAD_DIM)
             + 2 * batch * seq * HIDDEN * VOCAB)
    transcendentals = depth * batch * (HEADS * seq * seq + seq * MLP_HIDDEN)
    bytes_accessed = sum(int(a.size) * a.dtype.itemsize for a in
                         (hidden, mask, params['vecs'], params['w_qkv'], params['w_proj'],
                          params['w_fc1'], params['w_fc2'], params['ln_f'], params['w_head']))
    bytes_accessed += batch * seq * VOCAB * 4

    grid_spec = pltpu.PrefetchScalarGridSpec(
        num_scalar_prefetch=0,
        grid=(batch,),                                                  # parallel batch axis
        in_specs=[
            pl.BlockSpec((None, seq, HIDDEN), lambda b: (b, 0, 0)),     # embedded hidden
            pl.BlockSpec((None, seq, seq), lambda b: (b, 0, 0)),        # combined mask
            resident(params['vecs']),                                   # packed small params
            resident(params['w_qkv']),                                  # [D, H, 3H] bf16
            resident(params['w_proj']),                                 # [D, H, H]  bf16
            resident(params['w_fc1']),                                  # [D, H, 4H] bf16
            resident(params['w_fc2']),                                  # [D, 4H, H] bf16
            resident(params['ln_f']),                                   # [2, H] f32
            resident(params['w_head']),                                 # [H, V] bf16
        ],
        out_specs=pl.BlockSpec((None, seq, VOCAB), lambda b: (b, 0, 0)),
    )

    kernel = functools.partial(fused_pipeline_kernel, depth=depth)
    return pl.pallas_call(
        kernel,
        out_shape=jax.ShapeDtypeStruct((batch, seq, VOCAB), jnp.float32),
        grid_spec=grid_spec,
        compiler_params=pltpu.CompilerParams(
            dimension_semantics=("parallel",),         # batch -> 2nd TensorCore on v7x
            vmem_limit_bytes=32 * 1024 * 1024),        # pinned; working set < 2 MiB
        cost_estimate=pl.CostEstimate(flops=flops,
                                      transcendentals=transcendentals,
                                      bytes_accessed=bytes_accessed),
    )(hidden, mask, params['vecs'], params['w_qkv'], params['w_proj'],
      params['w_fc1'], params['w_fc2'], params['ln_f'], params['w_head'])


def pipeline_forward(params, input_ids, attention_mask):
    B, S = input_ids.shape

    # first=True: Embedding1D (word + position embedding) — JAX gather glue
    hidden = params['wte'][input_ids] + params['wpe'][jnp.arange(S)][None, :, :]
    hidden = hidden.astype(jnp.float32)                                 # [B, S, H]

    # attention-mask preprocessing exactly as PipelineModel.forward, folded with the
    # causal (is_decoder=True) mask into ONE additive [B, S, S] mask.
    pad = (1.0 - attention_mask.astype(jnp.float32)).reshape(B, 1, S) * NEG
    row = jnp.arange(S)[:, None]
    col = jnp.arange(S)[None, :]
    causal = jnp.where(col <= row, 0.0, NEG).astype(jnp.float32)[None, :, :]
    mask = causal + pad                                                 # [B, S, S]

    return run_fused(hidden, mask, params, B, S)                        # [B, S, VOCAB]


def select_top_k(predictions, k=TOPK):
    # torch: random.choice(predictions[0, -1, :].sort(descending=True)[1][:10])
    top10 = jnp.argsort(-predictions[0, -1, :])[:10]
    return int(random.choice(list(jax.device_get(top10))))


# ------------------------------ parameter init ----------------------------------
def init_params(key):
    scale = 0.02
    keys = iter(jax.random.split(key, 3 + DEPTH * 4))

    def rnd(shape, dtype):
        return (scale * jax.random.normal(next(keys), shape, jnp.float32)).astype(dtype)

    params = {
        'wte': rnd((VOCAB, HIDDEN), jnp.float32),
        'wpe': rnd((MAX_SEQ, HIDDEN), jnp.float32),
        'w_head': rnd((HIDDEN, VOCAB), jnp.bfloat16),
        # final LayerNorm1D packed: row 0 = gamma (ones), row 1 = beta (zeros)
        'ln_f': jnp.concatenate([jnp.ones((1, HIDDEN), jnp.float32),
                                 jnp.zeros((1, HIDDEN), jnp.float32)], axis=0),
    }

    w_qkv, w_proj, w_fc1, w_fc2, vecs = [], [], [], [], []
    for _ in range(DEPTH):
        # fused-QKV layout: [q(H) | k(H) | v(H)] 128-aligned blocks, heads sequential.
        w_qkv.append(rnd((HIDDEN, 3 * HIDDEN), jnp.bfloat16))
        w_proj.append(rnd((HIDDEN, HIDDEN), jnp.bfloat16))
        w_fc1.append(rnd((HIDDEN, MLP_HIDDEN), jnp.bfloat16))
        w_fc2.append(rnd((MLP_HIDDEN, HIDDEN), jnp.bfloat16))
        # packed small per-layer params (LN gammas -> 1, betas & biases -> 0)
        vec = jnp.zeros((8, VEC_W), jnp.float32)
        vec = vec.at[ROW_LN1_G, :HIDDEN].set(1.0)
        vec = vec.at[ROW_LN2_G, :HIDDEN].set(1.0)
        vecs.append(vec)

    params['w_qkv'] = jnp.stack(w_qkv, axis=0)
    params['w_proj'] = jnp.stack(w_proj, axis=0)
    params['w_fc1'] = jnp.stack(w_fc1, axis=0)
    params['w_fc2'] = jnp.stack(w_fc2, axis=0)
    params['vecs'] = jnp.stack(vecs, axis=0)
    return params


# ------------------------------------ main ---------------------------------------
if __name__ == "__main__":
    random.seed(0)
    key = jax.random.PRNGKey(0)
    k_ids, k_params = jax.random.split(key)

    B, S = 2, 8
    input_ids = jax.random.randint(k_ids, (B, S), 0, VOCAB, dtype=jnp.int32)
    attention_mask = jnp.ones((B, S), jnp.float32)

    params = init_params(k_params)

    logits = jax.jit(pipeline_forward)(params, input_ids, attention_mask)  # [B, S, VOCAB]
    jax.block_until_ready(logits)

    predicted_index = select_top_k(logits, k=TOPK)
    assert 0 <= predicted_index < VOCAB
    print("KERNEL_OK")
</pallas_src>

<mosaic_0001>
module attributes {stable_mosaic.version = 11 : i64} {
  func.func @fused_pipeline_kernel(%arg0: i32, %arg1: memref<1x8x128xf32, #tpu.memory_space<vmem>>, %arg2: memref<1x8x8xf32, #tpu.memory_space<vmem>>, %arg3: memref<2x8x512xf32, #tpu.memory_space<vmem>>, %arg4: memref<2x128x384xbf16, #tpu.memory_space<vmem>>, %arg5: memref<2x128x128xbf16, #tpu.memory_space<vmem>>, %arg6: memref<2x128x512xbf16, #tpu.memory_space<vmem>>, %arg7: memref<2x512x128xbf16, #tpu.memory_space<vmem>>, %arg8: memref<2x128xf32, #tpu.memory_space<vmem>>, %arg9: memref<128x128xbf16, #tpu.memory_space<vmem>>, %arg10: memref<1x8x128xf32, #tpu.memory_space<vmem>>) attributes {dimension_semantics = [#tpu.dimension_semantics<parallel>], iteration_bounds = array<i64: 2>, scalar_prefetch = 0 : i64, scratch_operands = 0 : i64, tpu.core_type = #tpu.core_type<tc>, window_params = [{transform_indices = @transform_0, window_bounds = array<i64: 1, 8, 128>}, {transform_indices = @transform_1, window_bounds = array<i64: 1, 8, 8>}, {pipeline_mode = #tpu.pipeline_mode<synchronous>, transform_indices = @transform_2, window_bounds = array<i64: 2, 8, 512>}, {pipeline_mode = #tpu.pipeline_mode<synchronous>, transform_indices = @transform_3, window_bounds = array<i64: 2, 128, 384>}, {pipeline_mode = #tpu.pipeline_mode<synchronous>, transform_indices = @transform_4, window_bounds = array<i64: 2, 128, 128>}, {pipeline_mode = #tpu.pipeline_mode<synchronous>, transform_indices = @transform_5, window_bounds = array<i64: 2, 128, 512>}, {pipeline_mode = #tpu.pipeline_mode<synchronous>, transform_indices = @transform_6, window_bounds = array<i64: 2, 512, 128>}, {pipeline_mode = #tpu.pipeline_mode<synchronous>, transform_indices = @transform_7, window_bounds = array<i64: 2, 128>}, {pipeline_mode = #tpu.pipeline_mode<synchronous>, transform_indices = @transform_8, window_bounds = array<i64: 128, 128>}, {transform_indices = @transform_9, window_bounds = array<i64: 1, 8, 128>}]} {
    %c0 = arith.constant 0 : index
    %c0_0 = arith.constant 0 : index
    %c0_1 = arith.constant 0 : index
    %0 = vector.load %arg1[%c0, %c0_0, %c0_1] : memref<1x8x128xf32, #tpu.memory_space<vmem>>, vector<1x8x128xf32>
    %1 = vector.shape_cast %0 : vector<1x8x128xf32> to vector<8x128xf32>
    %c0_2 = arith.constant 0 : index
    %c0_3 = arith.constant 0 : index
    %c0_4 = arith.constant 0 : index
    %2 = vector.load %arg2[%c0_2, %c0_3, %c0_4] : memref<1x8x8xf32, #tpu.memory_space<vmem>>, vector<1x8x8xf32>
    %3 = vector.shape_cast %2 : vector<1x8x8xf32> to vector<8x8xf32>
    %c0_5 = arith.constant 0 : index
    %c0_6 = arith.constant 0 : index
    %c0_7 = arith.constant 0 : index
    %4 = vector.load %arg3[%c0_5, %c0_6, %c0_7] : memref<2x8x512xf32, #tpu.memory_space<vmem>>, vector<1x8x512xf32>
    %5 = vector.shape_cast %4 : vector<1x8x512xf32> to vector<8x512xf32>
    %6 = vector.extract_strided_slice %5 {offsets = [0, 0], sizes = [1, 128], strides = [1, 1]} : vector<8x512xf32> to vector<1x128xf32>
    %7 = vector.extract_strided_slice %5 {offsets = [1, 0], sizes = [1, 128], strides = [1, 1]} : vector<8x512xf32> to vector<1x128xf32>
    %8 = vector.extract_strided_slice %5 {offsets = [2, 0], sizes = [1, 384], strides = [1, 1]} : vector<8x512xf32> to vector<1x384xf32>
    %9 = vector.extract_strided_slice %5 {offsets = [3, 0], sizes = [1, 128], strides = [1, 1]} : vector<8x512xf32> to vector<1x128xf32>
    %10 = vector.extract_strided_slice %5 {offsets = [4, 0], sizes = [1, 128], strides = [1, 1]} : vector<8x512xf32> to vector<1x128xf32>
    %11 = vector.extract_strided_slice %5 {offsets = [5, 0], sizes = [1, 128], strides = [1, 1]} : vector<8x512xf32> to vector<1x128xf32>
    %12 = vector.extract_strided_slice %5 {offsets = [6, 0], sizes = [1, 512], strides = [1, 1]} : vector<8x512xf32> to vector<1x512xf32>
    %13 = vector.extract_strided_slice %5 {offsets = [7, 0], sizes = [1, 128], strides = [1, 1]} : vector<8x512xf32> to vector<1x128xf32>
    %cst = arith.constant dense<0.000000e+00> : vector<8xf32>
    %14 = vector.multi_reduction <add>, %1, %cst [1] : vector<8x128xf32> to vector<8xf32>
    %15 = vector.shape_cast %14 : vector<8xf32> to vector<8x1xf32>
    %cst_8 = arith.constant 1.280000e+02 : f32
    %16 = vector.broadcast %cst_8 : f32 to vector<8x1xf32>
    %17 = arith.divf %15, %16 : vector<8x1xf32>
    %18 = vector.broadcast %17 : vector<8x1xf32> to vector<8x128xf32>
    %19 = arith.subf %1, %18 : vector<8x128xf32>
    %20 = arith.mulf %19, %19 : vector<8x128xf32>
    %cst_9 = arith.constant dense<0.000000e+00> : vector<8xf32>
    %21 = vector.multi_reduction <add>, %20, %cst_9 [1] : vector<8x128xf32> to vector<8xf32>
    %22 = vector.shape_cast %21 : vector<8xf32> to vector<8x1xf32>
    %cst_10 = arith.constant 1.280000e+02 : f32
    %23 = vector.broadcast %cst_10 : f32 to vector<8x1xf32>
    %24 = arith.divf %22, %23 : vector<8x1xf32>
    %25 = vector.broadcast %17 : vector<8x1xf32> to vector<8x128xf32>
    %26 = arith.subf %1, %25 : vector<8x128xf32>
    %cst_11 = arith.constant 9.99999974E-6 : f32
    %27 = vector.broadcast %cst_11 : f32 to vector<8x1xf32>
    %28 = arith.addf %24, %27 : vector<8x1xf32>
    %29 = math.rsqrt %28 : vector<8x1xf32>
    %30 = vector.broadcast %29 : vector<8x1xf32> to vector<8x128xf32>
    %31 = arith.mulf %26, %30 : vector<8x128xf32>
    %32 = vector.broadcast %6 : vector<1x128xf32> to vector<8x128xf32>
    %33 = arith.mulf %31, %32 : vector<8x128xf32>
    %34 = vector.broadcast %7 : vector<1x128xf32> to vector<8x128xf32>
    %35 = arith.addf %33, %34 : vector<8x128xf32>
    %c0_12 = arith.constant 0 : index
    %c0_13 = arith.constant 0 : index
    %c0_14 = arith.constant 0 : index
    %36 = vector.load %arg4[%c0_12, %c0_13, %c0_14] : memref<2x128x384xbf16, #tpu.memory_space<vmem>>, vector<1x128x384xbf16>
    %37 = vector.shape_cast %36 : vector<1x128x384xbf16> to vector<128x384xbf16>
    %38 = arith.truncf %35 : vector<8x128xf32> to vector<8x128xbf16>
    %cst_15 = arith.constant dense<0.000000e+00> : vector<8x384xf32>
    %39 = tpu.matmul %38, %37, %cst_15 {dimension_numbers = #tpu.dot_dimension_numbers<[1], [0], [0], [1], [0, 0, 1, 1], [], []>} : vector<8x128xbf16>, vector<128x384xbf16>, vector<8x384xf32> -> vector<8x384xf32>
    %40 = vector.broadcast %8 : vector<1x384xf32> to vector<8x384xf32>
    %41 = arith.addf %39, %40 : vector<8x384xf32>
    %42 = vector.extract_strided_slice %41 {offsets = [0, 0], sizes = [8, 128], strides = [1, 1]} : vector<8x384xf32> to vector<8x128xf32>
    %43 = arith.truncf %42 : vector<8x128xf32> to vector<8x128xbf16>
    %44 = vector.extract_strided_slice %41 {offsets = [0, 128], sizes = [8, 128], strides = [1, 1]} : vector<8x384xf32> to vector<8x128xf32>
    %45 = arith.truncf %44 : vector<8x128xf32> to vector<8x128xbf16>
    %46 = vector.extract_strided_slice %41 {offsets = [0, 256], sizes = [8, 128], strides = [1, 1]} : vector<8x384xf32> to vector<8x128xf32>
    %47 = arith.truncf %46 : vector<8x128xf32> to vector<8x128xbf16>
    %48 = vector.extract_strided_slice %43 {offsets = [0, 0], sizes = [8, 32], strides = [1, 1]} : vector<8x128xbf16> to vector<8x32xbf16>
    %49 = vector.extract_strided_slice %45 {offsets = [0, 0], sizes = [8, 32], strides = [1, 1]} : vector<8x128xbf16> to vector<8x32xbf16>
    %cst_16 = arith.constant dense<0.000000e+00> : vector<8x8xf32>
    %50 = tpu.matmul %48, %49, %cst_16 {dimension_numbers = #tpu.dot_dimension_numbers<[1], [1], [0], [0], [0, 0, 1, 0], [], []>} : vector<8x32xbf16>, vector<8x32xbf16>, vector<8x8xf32> -> vector<8x8xf32>
    %cst_17 = arith.constant 0.176776692 : f32
    %51 = vector.broadcast %cst_17 : f32 to vector<8x8xf32>
    %52 = arith.mulf %50, %51 : vector<8x8xf32>
    %53 = arith.addf %52, %3 : vector<8x8xf32>
    %cst_18 = arith.constant dense<0xFF800000> : vector<8xf32>
    %54 = vector.multi_reduction <maximumf>, %53, %cst_18 [1] : vector<8x8xf32> to vector<8xf32>
    %55 = vector.shape_cast %54 : vector<8xf32> to vector<8x1xf32>
    %56 = vector.broadcast %55 : vector<8x1xf32> to vector<8x8xf32>
    %57 = arith.subf %53, %56 : vector<8x8xf32>
    %58 = math.exp %57 : vector<8x8xf32>
    %cst_19 = arith.constant dense<0.000000e+00> : vector<8xf32>
    %59 = vector.multi_reduction <add>, %58, %cst_19 [1] : vector<8x8xf32> to vector<8xf32>
    %60 = vector.shape_cast %59 : vector<8xf32> to vector<8x1xf32>
    %61 = tpu.reciprocal %60 : vector<8x1xf32> -> vector<8x1xf32>
    %62 = vector.broadcast %61 : vector<8x1xf32> to vector<8x8xf32>
    %63 = arith.mulf %58, %62 : vector<8x8xf32>
    %64 = arith.truncf %63 : vector<8x8xf32> to vector<8x8xbf16>
    %65 = vector.extract_strided_slice %47 {offsets = [0, 0], sizes = [8, 32], strides = [1, 1]} : vector<8x128xbf16> to vector<8x32xbf16>
    %cst_20 = arith.constant dense<0.000000e+00> : vector<8x32xf32>
    %66 = tpu.matmul %64, %65, %cst_20 {dimension_numbers = #tpu.dot_dimension_numbers<[1], [0], [0], [1], [0, 0, 1, 1], [], []>} : vector<8x8xbf16>, vector<8x32xbf16>, vector<8x32xf32> -> vector<8x32xf32>
    %67 = vector.extract_strided_slice %43 {offsets = [0, 32], sizes = [8, 32], strides = [1, 1]} : vector<8x128xbf16> to vector<8x32xbf16>
    %68 = vector.extract_strided_slice %45 {offsets = [0, 32], sizes = [8, 32], strides = [1, 1]} : vector<8x128xbf16> to vector<8x32xbf16>
    %cst_21 = arith.constant dense<0.000000e+00> : vector<8x8xf32>
    %69 = tpu.matmul %67, %68, %cst_21 {dimension_numbers = #tpu.dot_dimension_numbers<[1], [1], [0], [0], [0, 0, 1, 0], [], []>} : vector<8x32xbf16>, vector<8x32xbf16>, vector<8x8xf32> -> vector<8x8xf32>
    %cst_22 = arith.constant 0.176776692 : f32
    %70 = vector.broadcast %cst_22 : f32 to vector<8x8xf32>
    %71 = arith.mulf %69, %70 : vector<8x8xf32>
    %72 = arith.addf %71, %3 : vector<8x8xf32>
    %cst_23 = arith.constant dense<0xFF800000> : vector<8xf32>
    %73 = vector.multi_reduction <maximumf>, %72, %cst_23 [1] : vector<8x8xf32> to vector<8xf32>
    %74 = vector.shape_cast %73 : vector<8xf32> to vector<8x1xf32>
    %75 = vector.broadcast %74 : vector<8x1xf32> to vector<8x8xf32>
    %76 = arith.subf %72, %75 : vector<8x8xf32>
    %77 = math.exp %76 : vector<8x8xf32>
    %cst_24 = arith.constant dense<0.000000e+00> : vector<8xf32>
    %78 = vector.multi_reduction <add>, %77, %cst_24 [1] : vector<8x8xf32> to vector<8xf32>
    %79 = vector.shape_cast %78 : vector<8xf32> to vector<8x1xf32>
    %80 = tpu.reciprocal %79 : vector<8x1xf32> -> vector<8x1xf32>
    %81 = vector.broadcast %80 : vector<8x1xf32> to vector<8x8xf32>
    %82 = arith.mulf %77, %81 : vector<8x8xf32>
    %83 = arith.truncf %82 : vector<8x8xf32> to vector<8x8xbf16>
    %84 = vector.extract_strided_slice %47 {offsets = [0, 32], sizes = [8, 32], strides = [1, 1]} : vector<8x128xbf16> to vector<8x32xbf16>
    %cst_25 = arith.constant dense<0.000000e+00> : vector<8x32xf32>
    %85 = tpu.matmul %83, %84, %cst_25 {dimension_numbers = #tpu.dot_dimension_numbers<[1], [0], [0], [1], [0, 0, 1, 1], [], []>} : vector<8x8xbf16>, vector<8x32xbf16>, vector<8x32xf32> -> vector<8x32xf32>
    %86 = vector.extract_strided_slice %43 {offsets = [0, 64], sizes = [8, 32], strides = [1, 1]} : vector<8x128xbf16> to vector<8x32xbf16>
    %87 = vector.extract_strided_slice %45 {offsets = [0, 64], sizes = [8, 32], strides = [1, 1]} : vector<8x128xbf16> to vector<8x32xbf16>
    %cst_26 = arith.constant dense<0.000000e+00> : vector<8x8xf32>
    %88 = tpu.matmul %86, %87, %cst_26 {dimension_numbers = #tpu.dot_dimension_numbers<[1], [1], [0], [0], [0, 0, 1, 0], [], []>} : vector<8x32xbf16>, vector<8x32xbf16>, vector<8x8xf32> -> vector<8x8xf32>
    %cst_27 = arith.constant 0.176776692 : f32
    %89 = vector.broadcast %cst_27 : f32 to vector<8x8xf32>
    %90 = arith.mulf %88, %89 : vector<8x8xf32>
    %91 = arith.addf %90, %3 : vector<8x8xf32>
    %cst_28 = arith.constant dense<0xFF800000> : vector<8xf32>
    %92 = vector.multi_reduction <maximumf>, %91, %cst_28 [1] : vector<8x8xf32> to vector<8xf32>
    %93 = vector.shape_cast %92 : vector<8xf32> to vector<8x1xf32>
    %94 = vector.broadcast %93 : vector<8x1xf32> to vector<8x8xf32>
    %95 = arith.subf %91, %94 : vector<8x8xf32>
    %96 = math.exp %95 : vector<8x8xf32>
    %cst_29 = arith.constant dense<0.000000e+00> : vector<8xf32>
    %97 = vector.multi_reduction <add>, %96, %cst_29 [1] : vector<8x8xf32> to vector<8xf32>
    %98 = vector.shape_cast %97 : vector<8xf32> to vector<8x1xf32>
    %99 = tpu.reciprocal %98 : vector<8x1xf32> -> vector<8x1xf32>
    %100 = vector.broadcast %99 : vector<8x1xf32> to vector<8x8xf32>
    %101 = arith.mulf %96, %100 : vector<8x8xf32>
    %102 = arith.truncf %101 : vector<8x8xf32> to vector<8x8xbf16>
    %103 = vector.extract_strided_slice %47 {offsets = [0, 64], sizes = [8, 32], strides = [1, 1]} : vector<8x128xbf16> to vector<8x32xbf16>
    %cst_30 = arith.constant dense<0.000000e+00> : vector<8x32xf32>
    %104 = tpu.matmul %102, %103, %cst_30 {dimension_numbers = #tpu.dot_dimension_numbers<[1], [0], [0], [1], [0, 0, 1, 1], [], []>} : vector<8x8xbf16>, vector<8x32xbf16>, vector<8x32xf32> -> vector<8x32xf32>
    %105 = vector.extract_strided_slice %43 {offsets = [0, 96], sizes = [8, 32], strides = [1, 1]} : vector<8x128xbf16> to vector<8x32xbf16>
    %106 = vector.extract_strided_slice %45 {offsets = [0, 96], sizes = [8, 32], strides = [1, 1]} : vector<8x128xbf16> to vector<8x32xbf16>
    %cst_31 = arith.constant dense<0.000000e+00> : vector<8x8xf32>
    %107 = tpu.matmul %105, %106, %cst_31 {dimension_numbers = #tpu.dot_dimension_numbers<[1], [1], [0], [0], [0, 0, 1, 0], [], []>} : vector<8x32xbf16>, vector<8x32xbf16>, vector<8x8xf32> -> vector<8x8xf32>
    %cst_32 = arith.constant 0.176776692 : f32
    %108 = vector.broadcast %cst_32 : f32 to vector<8x8xf32>
    %109 = arith.mulf %107, %108 : vector<8x8xf32>
    %110 = arith.addf %109, %3 : vector<8x8xf32>
    %cst_33 = arith.constant dense<0xFF800000> : vector<8xf32>
    %111 = vector.multi_reduction <maximumf>, %110, %cst_33 [1] : vector<8x8xf32> to vector<8xf32>
    %112 = vector.shape_cast %111 : vector<8xf32> to vector<8x1xf32>
    %113 = vector.broadcast %112 : vector<8x1xf32> to vector<8x8xf32>
    %114 = arith.subf %110, %113 : vector<8x8xf32>
    %115 = math.exp %114 : vector<8x8xf32>
    %cst_34 = arith.constant dense<0.000000e+00> : vector<8xf32>
    %116 = vector.multi_reduction <add>, %115, %cst_34 [1] : vector<8x8xf32> to vector<8xf32>
    %117 = vector.shape_cast %116 : vector<8xf32> to vector<8x1xf32>
    %118 = tpu.reciprocal %117 : vector<8x1xf32> -> vector<8x1xf32>
    %119 = vector.broadcast %118 : vector<8x1xf32> to vector<8x8xf32>
    %120 = arith.mulf %115, %119 : vector<8x8xf32>
    %121 = arith.truncf %120 : vector<8x8xf32> to vector<8x8xbf16>
    %122 = vector.extract_strided_slice %47 {offsets = [0, 96], sizes = [8, 32], strides = [1, 1]} : vector<8x128xbf16> to vector<8x32xbf16>
    %cst_35 = arith.constant dense<0.000000e+00> : vector<8x32xf32>
    %123 = tpu.matmul %121, %122, %cst_35 {dimension_numbers = #tpu.dot_dimension_numbers<[1], [0], [0], [1], [0, 0, 1, 1], [], []>} : vector<8x8xbf16>, vector<8x32xbf16>, vector<8x32xf32> -> vector<8x32xf32>
    %124 = tpu.concatenate %66, %85, %104, %123 in 1 : vector<8x32xf32>, vector<8x32xf32>, vector<8x32xf32>, vector<8x32xf32> -> vector<8x128xf32>
    %125 = arith.truncf %124 : vector<8x128xf32> to vector<8x128xbf16>
    %c0_36 = arith.constant 0 : index
    %c0_37 = arith.constant 0 : index
    %c0_38 = arith.constant 0 : index
    %126 = vector.load %arg5[%c0_36, %c0_37, %c0_38] : memref<2x128x128xbf16, #tpu.memory_space<vmem>>, vector<1x128x128xbf16>
    %127 = vector.shape_cast %126 : vector<1x128x128xbf16> to vector<128x128xbf16>
    %cst_39 = arith.constant dense<0.000000e+00> : vector<8x128xf32>
    %128 = tpu.matmul %125, %127, %cst_39 {dimension_numbers = #tpu.dot_dimension_numbers<[1], [0], [0], [1], [0, 0, 1, 1], [], []>} : vector<8x128xbf16>, vector<128x128xbf16>, vector<8x128xf32> -> vector<8x128xf32>
    %129 = vector.broadcast %9 : vector<1x128xf32> to vector<8x128xf32>
    %130 = arith.addf %128, %129 : vector<8x128xf32>
    %131 = arith.addf %1, %130 : vector<8x128xf32>
    %cst_40 = arith.constant dense<0.000000e+00> : vector<8xf32>
    %132 = vector.multi_reduction <add>, %131, %cst_40 [1] : vector<8x128xf32> to vector<8xf32>
    %133 = vector.shape_cast %132 : vector<8xf32> to vector<8x1xf32>
    %cst_41 = arith.constant 1.280000e+02 : f32
    %134 = vector.broadcast %cst_41 : f32 to vector<8x1xf32>
    %135 = arith.divf %133, %134 : vector<8x1xf32>
    %136 = vector.broadcast %135 : vector<8x1xf32> to vector<8x128xf32>
    %137 = arith.subf %131, %136 : vector<8x128xf32>
    %138 = arith.mulf %137, %137 : vector<8x128xf32>
    %cst_42 = arith.constant dense<0.000000e+00> : vector<8xf32>
    %139 = vector.multi_reduction <add>, %138, %cst_42 [1] : vector<8x128xf32> to vector<8xf32>
    %140 = vector.shape_cast %139 : vector<8xf32> to vector<8x1xf32>
    %cst_43 = arith.constant 1.280000e+02 : f32
    %141 = vector.broadcast %cst_43 : f32 to vector<8x1xf32>
    %142 = arith.divf %140, %141 : vector<8x1xf32>
    %143 = vector.broadcast %135 : vector<8x1xf32> to vector<8x128xf32>
    %144 = arith.subf %131, %143 : vector<8x128xf32>
    %cst_44 = arith.constant 9.99999974E-6 : f32
    %145 = vector.broadcast %cst_44 : f32 to vector<8x1xf32>
    %146 = arith.addf %142, %145 : vector<8x1xf32>
    %147 = math.rsqrt %146 : vector<8x1xf32>
    %148 = vector.broadcast %147 : vector<8x1xf32> to vector<8x128xf32>
    %149 = arith.mulf %144, %148 : vector<8x128xf32>
    %150 = vector.broadcast %10 : vector<1x128xf32> to vector<8x128xf32>
    %151 = arith.mulf %149, %150 : vector<8x128xf32>
    %152 = vector.broadcast %11 : vector<1x128xf32> to vector<8x128xf32>
    %153 = arith.addf %151, %152 : vector<8x128xf32>
    %154 = arith.truncf %153 : vector<8x128xf32> to vector<8x128xbf16>
    %c0_45 = arith.constant 0 : index
    %c0_46 = arith.constant 0 : index
    %c0_47 = arith.constant 0 : index
    %155 = vector.load %arg6[%c0_45, %c0_46, %c0_47] : memref<2x128x512xbf16, #tpu.memory_space<vmem>>, vector<1x128x512xbf16>
    %156 = vector.shape_cast %155 : vector<1x128x512xbf16> to vector<128x512xbf16>
    %cst_48 = arith.constant dense<0.000000e+00> : vector<8x512xf32>
    %157 = tpu.matmul %154, %156, %cst_48 {dimension_numbers = #tpu.dot_dimension_numbers<[1], [0], [0], [1], [0, 0, 1, 1], [], []>} : vector<8x128xbf16>, vector<128x512xbf16>, vector<8x512xf32> -> vector<8x512xf32>
    %158 = vector.broadcast %12 : vector<1x512xf32> to vector<8x512xf32>
    %159 = arith.addf %157, %158 : vector<8x512xf32>
    %cst_49 = arith.constant 5.000000e-01 : f32
    %160 = vector.broadcast %cst_49 : f32 to vector<8x512xf32>
    %161 = arith.mulf %160, %159 : vector<8x512xf32>
    %cst_50 = arith.constant 0.797884583 : f32
    %162 = vector.broadcast %cst_50 : f32 to vector<8x512xf32>
    %163 = arith.mulf %162, %159 : vector<8x512xf32>
    %cst_51 = arith.constant 4.471500e-02 : f32
    %164 = vector.broadcast %cst_51 : f32 to vector<8x512xf32>
    %165 = arith.mulf %164, %159 : vector<8x512xf32>
    %166 = arith.mulf %165, %159 : vector<8x512xf32>
    %cst_52 = arith.constant 1.000000e+00 : f32
    %167 = vector.broadcast %cst_52 : f32 to vector<8x512xf32>
    %168 = arith.addf %167, %166 : vector<8x512xf32>
    %169 = arith.mulf %163, %168 : vector<8x512xf32>
    %170 = math.tanh %169 : vector<8x512xf32>
    %cst_53 = arith.constant 1.000000e+00 : f32
    %171 = vector.broadcast %cst_53 : f32 to vector<8x512xf32>
    %172 = arith.addf %171, %170 : vector<8x512xf32>
    %173 = arith.mulf %161, %172 : vector<8x512xf32>
    %174 = arith.truncf %173 : vector<8x512xf32> to vector<8x512xbf16>
    %c0_54 = arith.constant 0 : index
    %c0_55 = arith.constant 0 : index
    %c0_56 = arith.constant 0 : index
    %175 = vector.load %arg7[%c0_54, %c0_55, %c0_56] : memref<2x512x128xbf16, #tpu.memory_space<vmem>>, vector<1x512x128xbf16>
    %176 = vector.shape_cast %175 : vector<1x512x128xbf16> to vector<512x128xbf16>
    %cst_57 = arith.constant dense<0.000000e+00> : vector<8x128xf32>
    %177 = tpu.matmul %174, %176, %cst_57 {dimension_numbers = #tpu.dot_dimension_numbers<[1], [0], [0], [1], [0, 0, 1, 1], [], []>} : vector<8x512xbf16>, vector<512x128xbf16>, vector<8x128xf32> -> vector<8x128xf32>
    %178 = vector.broadcast %13 : vector<1x128xf32> to vector<8x128xf32>
    %179 = arith.addf %177, %178 : vector<8x128xf32>
    %180 = arith.addf %131, %179 : vector<8x128xf32>
    %c1 = arith.constant 1 : index
    %c0_58 = arith.constant 0 : index
    %c0_59 = arith.constant 0 : index
    %181 = vector.load %arg3[%c1, %c0_58, %c0_59] : memref<2x8x512xf32, #tpu.memory_space<vmem>>, vector<1x8x512xf32>
    %182 = vector.shape_cast %181 : vector<1x8x512xf32> to vector<8x512xf32>
    %183 = vector.extract_strided_slice %182 {offsets = [0, 0], sizes = [1, 128], strides = [1, 1]} : vector<8x512xf32> to vector<1x128xf32>
    %184 = vector.extract_strided_slice %182 {offsets = [1, 0], sizes = [1, 128], strides = [1, 1]} : vector<8x512xf32> to vector<1x128xf32>
    %185 = vector.extract_strided_slice %182 {offsets = [2, 0], sizes = [1, 384], strides = [1, 1]} : vector<8x512xf32> to vector<1x384xf32>
    %186 = vector.extract_strided_slice %182 {offsets = [3, 0], sizes = [1, 128], strides = [1, 1]} : vector<8x512xf32> to vector<1x128xf32>
    %187 = vector.extract_strided_slice %182 {offsets = [4, 0], sizes = [1, 128], strides = [1, 1]} : vector<8x512xf32> to vector<1x128xf32>
    %188 = vector.extract_strided_slice %182 {offsets = [5, 0], sizes = [1, 128], strides = [1, 1]} : vector<8x512xf32> to vector<1x128xf32>
    %189 = vector.extract_strided_slice %182 {offsets = [6, 0], sizes = [1, 512], strides = [1, 1]} : vector<8x512xf32> to vector<1x512xf32>
    %190 = vector.extract_strided_slice %182 {offsets = [7, 0], sizes = [1, 128], strides = [1, 1]} : vector<8x512xf32> to vector<1x128xf32>
    %cst_60 = arith.constant dense<0.000000e+00> : vector<8xf32>
    %191 = vector.multi_reduction <add>, %180, %cst_60 [1] : vector<8x128xf32> to vector<8xf32>
    %192 = vector.shape_cast %191 : vector<8xf32> to vector<8x1xf32>
    %cst_61 = arith.constant 1.280000e+02 : f32
    %193 = vector.broadcast %cst_61 : f32 to vector<8x1xf32>
    %194 = arith.divf %192, %193 : vector<8x1xf32>
    %195 = vector.broadcast %194 : vector<8x1xf32> to vector<8x128xf32>
    %196 = arith.subf %180, %195 : vector<8x128xf32>
    %197 = arith.mulf %196, %196 : vector<8x128xf32>
    %cst_62 = arith.constant dense<0.000000e+00> : vector<8xf32>
    %198 = vector.multi_reduction <add>, %197, %cst_62 [1] : vector<8x128xf32> to vector<8xf32>
    %199 = vector.shape_cast %198 : vector<8xf32> to vector<8x1xf32>
    %cst_63 = arith.constant 1.280000e+02 : f32
    %200 = vector.broadcast %cst_63 : f32 to vector<8x1xf32>
    %201 = arith.divf %199, %200 : vector<8x1xf32>
    %202 = vector.broadcast %194 : vector<8x1xf32> to vector<8x128xf32>
    %203 = arith.subf %180, %202 : vector<8x128xf32>
    %cst_64 = arith.constant 9.99999974E-6 : f32
    %204 = vector.broadcast %cst_64 : f32 to vector<8x1xf32>
    %205 = arith.addf %201, %204 : vector<8x1xf32>
    %206 = math.rsqrt %205 : vector<8x1xf32>
    %207 = vector.broadcast %206 : vector<8x1xf32> to vector<8x128xf32>
    %208 = arith.mulf %203, %207 : vector<8x128xf32>
    %209 = vector.broadcast %183 : vector<1x128xf32> to vector<8x128xf32>
    %210 = arith.mulf %208, %209 : vector<8x128xf32>
    %211 = vector.broadcast %184 : vector<1x128xf32> to vector<8x128xf32>
    %212 = arith.addf %210, %211 : vector<8x128xf32>
    %c1_65 = arith.constant 1 : index
    %c0_66 = arith.constant 0 : index
    %c0_67 = arith.constant 0 : index
    %213 = vector.load %arg4[%c1_65, %c0_66, %c0_67] : memref<2x128x384xbf16, #tpu.memory_space<vmem>>, vector<1x128x384xbf16>
    %214 = vector.shape_cast %213 : vector<1x128x384xbf16> to vector<128x384xbf16>
    %215 = arith.truncf %212 : vector<8x128xf32> to vector<8x128xbf16>
    %cst_68 = arith.constant dense<0.000000e+00> : vector<8x384xf32>
    %216 = tpu.matmul %215, %214, %cst_68 {dimension_numbers = #tpu.dot_dimension_numbers<[1], [0], [0], [1], [0, 0, 1, 1], [], []>} : vector<8x128xbf16>, vector<128x384xbf16>, vector<8x384xf32> -> vector<8x384xf32>
    %217 = vector.broadcast %185 : vector<1x384xf32> to vector<8x384xf32>
    %218 = arith.addf %216, %217 : vector<8x384xf32>
    %219 = vector.extract_strided_slice %218 {offsets = [0, 0], sizes = [8, 128], strides = [1, 1]} : vector<8x384xf32> to vector<8x128xf32>
    %220 = arith.truncf %219 : vector<8x128xf32> to vector<8x128xbf16>
    %221 = vector.extract_strided_slice %218 {offsets = [0, 128], sizes = [8, 128], strides = [1, 1]} : vector<8x384xf32> to vector<8x128xf32>
    %222 = arith.truncf %221 : vector<8x128xf32> to vector<8x128xbf16>
    %223 = vector.extract_strided_slice %218 {offsets = [0, 256], sizes = [8, 128], strides = [1, 1]} : vector<8x384xf32> to vector<8x128xf32>
    %224 = arith.truncf %223 : vector<8x128xf32> to vector<8x128xbf16>
    %225 = vector.extract_strided_slice %220 {offsets = [0, 0], sizes = [8, 32], strides = [1, 1]} : vector<8x128xbf16> to vector<8x32xbf16>
    %226 = vector.extract_strided_slice %222 {offsets = [0, 0], sizes = [8, 32], strides = [1, 1]} : vector<8x128xbf16> to vector<8x32xbf16>
    %cst_69 = arith.constant dense<0.000000e+00> : vector<8x8xf32>
    %227 = tpu.matmul %225, %226, %cst_69 {dimension_numbers = #tpu.dot_dimension_numbers<[1], [1], [0], [0], [0, 0, 1, 0], [], []>} : vector<8x32xbf16>, vector<8x32xbf16>, vector<8x8xf32> -> vector<8x8xf32>
    %cst_70 = arith.constant 0.176776692 : f32
    %228 = vector.broadcast %cst_70 : f32 to vector<8x8xf32>
    %229 = arith.mulf %227, %228 : vector<8x8xf32>
    %230 = arith.addf %229, %3 : vector<8x8xf32>
    %cst_71 = arith.constant dense<0xFF800000> : vector<8xf32>
    %231 = vector.multi_reduction <maximumf>, %230, %cst_71 [1] : vector<8x8xf32> to vector<8xf32>
    %232 = vector.shape_cast %231 : vector<8xf32> to vector<8x1xf32>
    %233 = vector.broadcast %232 : vector<8x1xf32> to vector<8x8xf32>
    %234 = arith.subf %230, %233 : vector<8x8xf32>
    %235 = math.exp %234 : vector<8x8xf32>
    %cst_72 = arith.constant dense<0.000000e+00> : vector<8xf32>
    %236 = vector.multi_reduction <add>, %235, %cst_72 [1] : vector<8x8xf32> to vector<8xf32>
    %237 = vector.shape_cast %236 : vector<8xf32> to vector<8x1xf32>
    %238 = tpu.reciprocal %237 : vector<8x1xf32> -> vector<8x1xf32>
    %239 = vector.broadcast %238 : vector<8x1xf32> to vector<8x8xf32>
    %240 = arith.mulf %235, %239 : vector<8x8xf32>
    %241 = arith.truncf %240 : vector<8x8xf32> to vector<8x8xbf16>
    %242 = vector.extract_strided_slice %224 {offsets = [0, 0], sizes = [8, 32], strides = [1, 1]} : vector<8x128xbf16> to vector<8x32xbf16>
    %cst_73 = arith.constant dense<0.000000e+00> : vector<8x32xf32>
    %243 = tpu.matmul %241, %242, %cst_73 {dimension_numbers = #tpu.dot_dimension_numbers<[1], [0], [0], [1], [0, 0, 1, 1], [], []>} : vector<8x8xbf16>, vector<8x32xbf16>, vector<8x32xf32> -> vector<8x32xf32>
    %244 = vector.extract_strided_slice %220 {offsets = [0, 32], sizes = [8, 32], strides = [1, 1]} : vector<8x128xbf16> to vector<8x32xbf16>
    %245 = vector.extract_strided_slice %222 {offsets = [0, 32], sizes = [8, 32], strides = [1, 1]} : vector<8x128xbf16> to vector<8x32xbf16>
    %cst_74 = arith.constant dense<0.000000e+00> : vector<8x8xf32>
    %246 = tpu.matmul %244, %245, %cst_74 {dimension_numbers = #tpu.dot_dimension_numbers<[1], [1], [0], [0], [0, 0, 1, 0], [], []>} : vector<8x32xbf16>, vector<8x32xbf16>, vector<8x8xf32> -> vector<8x8xf32>
    %cst_75 = arith.constant 0.176776692 : f32
    %247 = vector.broadcast %cst_75 : f32 to vector<8x8xf32>
    %248 = arith.mulf %246, %247 : vector<8x8xf32>
    %249 = arith.addf %248, %3 : vector<8x8xf32>
    %cst_76 = arith.constant dense<0xFF800000> : vector<8xf32>
    %250 = vector.multi_reduction <maximumf>, %249, %cst_76 [1] : vector<8x8xf32> to vector<8xf32>
    %251 = vector.shape_cast %250 : vector<8xf32> to vector<8x1xf32>
    %252 = vector.broadcast %251 : vector<8x1xf32> to vector<8x8xf32>
    %253 = arith.subf %249, %252 : vector<8x8xf32>
    %254 = math.exp %253 : vector<8x8xf32>
    %cst_77 = arith.constant dense<0.000000e+00> : vector<8xf32>
    %255 = vector.multi_reduction <add>, %254, %cst_77 [1] : vector<8x8xf32> to vector<8xf32>
    %256 = vector.shape_cast %255 : vector<8xf32> to vector<8x1xf32>
    %257 = tpu.reciprocal %256 : vector<8x1xf32> -> vector<8x1xf32>
    %258 = vector.broadcast %257 : vector<8x1xf32> to vector<8x8xf32>
    %259 = arith.mulf %254, %258 : vector<8x8xf32>
    %260 = arith.truncf %259 : vector<8x8xf32> to vector<8x8xbf16>
    %261 = vector.extract_strided_slice %224 {offsets = [0, 32], sizes = [8, 32], strides = [1, 1]} : vector<8x128xbf16> to vector<8x32xbf16>
    %cst_78 = arith.constant dense<0.000000e+00> : vector<8x32xf32>
    %262 = tpu.matmul %260, %261, %cst_78 {dimension_numbers = #tpu.dot_dimension_numbers<[1], [0], [0], [1], [0, 0, 1, 1], [], []>} : vector<8x8xbf16>, vector<8x32xbf16>, vector<8x32xf32> -> vector<8x32xf32>
    %263 = vector.extract_strided_slice %220 {offsets = [0, 64], sizes = [8, 32], strides = [1, 1]} : vector<8x128xbf16> to vector<8x32xbf16>
    %264 = vector.extract_strided_slice %222 {offsets = [0, 64], sizes = [8, 32], strides = [1, 1]} : vector<8x128xbf16> to vector<8x32xbf16>
    %cst_79 = arith.constant dense<0.000000e+00> : vector<8x8xf32>
    %265 = tpu.matmul %263, %264, %cst_79 {dimension_numbers = #tpu.dot_dimension_numbers<[1], [1], [0], [0], [0, 0, 1, 0], [], []>} : vector<8x32xbf16>, vector<8x32xbf16>, vector<8x8xf32> -> vector<8x8xf32>
    %cst_80 = arith.constant 0.176776692 : f32
    %266 = vector.broadcast %cst_80 : f32 to vector<8x8xf32>
    %267 = arith.mulf %265, %266 : vector<8x8xf32>
    %268 = arith.addf %267, %3 : vector<8x8xf32>
    %cst_81 = arith.constant dense<0xFF800000> : vector<8xf32>
    %269 = vector.multi_reduction <maximumf>, %268, %cst_81 [1] : vector<8x8xf32> to vector<8xf32>
    %270 = vector.shape_cast %269 : vector<8xf32> to vector<8x1xf32>
    %271 = vector.broadcast %270 : vector<8x1xf32> to vector<8x8xf32>
    %272 = arith.subf %268, %271 : vector<8x8xf32>
    %273 = math.exp %272 : vector<8x8xf32>
    %cst_82 = arith.constant dense<0.000000e+00> : vector<8xf32>
    %274 = vector.multi_reduction <add>, %273, %cst_82 [1] : vector<8x8xf32> to vector<8xf32>
    %275 = vector.shape_cast %274 : vector<8xf32> to vector<8x1xf32>
    %276 = tpu.reciprocal %275 : vector<8x1xf32> -> vector<8x1xf32>
    %277 = vector.broadcast %276 : vector<8x1xf32> to vector<8x8xf32>
    %278 = arith.mulf %273, %277 : vector<8x8xf32>
    %279 = arith.truncf %278 : vector<8x8xf32> to vector<8x8xbf16>
    %280 = vector.extract_strided_slice %224 {offsets = [0, 64], sizes = [8, 32], strides = [1, 1]} : vector<8x128xbf16> to vector<8x32xbf16>
    %cst_83 = arith.constant dense<0.000000e+00> : vector<8x32xf32>
    %281 = tpu.matmul %279, %280, %cst_83 {dimension_numbers = #tpu.dot_dimension_numbers<[1], [0], [0], [1], [0, 0, 1, 1], [], []>} : vector<8x8xbf16>, vector<8x32xbf16>, vector<8x32xf32> -> vector<8x32xf32>
    %282 = vector.extract_strided_slice %220 {offsets = [0, 96], sizes = [8, 32], strides = [1, 1]} : vector<8x128xbf16> to vector<8x32xbf16>
    %283 = vector.extract_strided_slice %222 {offsets = [0, 96], sizes = [8, 32], strides = [1, 1]} : vector<8x128xbf16> to vector<8x32xbf16>
    %cst_84 = arith.constant dense<0.000000e+00> : vector<8x8xf32>
    %284 = tpu.matmul %282, %283, %cst_84 {dimension_numbers = #tpu.dot_dimension_numbers<[1], [1], [0], [0], [0, 0, 1, 0], [], []>} : vector<8x32xbf16>, vector<8x32xbf16>, vector<8x8xf32> -> vector<8x8xf32>
    %cst_85 = arith.constant 0.176776692 : f32
    %285 = vector.broadcast %cst_85 : f32 to vector<8x8xf32>
    %286 = arith.mulf %284, %285 : vector<8x8xf32>
    %287 = arith.addf %286, %3 : vector<8x8xf32>
    %cst_86 = arith.constant dense<0xFF800000> : vector<8xf32>
    %288 = vector.multi_reduction <maximumf>, %287, %cst_86 [1] : vector<8x8xf32> to vector<8xf32>
    %289 = vector.shape_cast %288 : vector<8xf32> to vector<8x1xf32>
    %290 = vector.broadcast %289 : vector<8x1xf32> to vector<8x8xf32>
    %291 = arith.subf %287, %290 : vector<8x8xf32>
    %292 = math.exp %291 : vector<8x8xf32>
    %cst_87 = arith.constant dense<0.000000e+00> : vector<8xf32>
    %293 = vector.multi_reduction <add>, %292, %cst_87 [1] : vector<8x8xf32> to vector<8xf32>
    %294 = vector.shape_cast %293 : vector<8xf32> to vector<8x1xf32>
    %295 = tpu.reciprocal %294 : vector<8x1xf32> -> vector<8x1xf32>
    %296 = vector.broadcast %295 : vector<8x1xf32> to vector<8x8xf32>
    %297 = arith.mulf %292, %296 : vector<8x8xf32>
    %298 = arith.truncf %297 : vector<8x8xf32> to vector<8x8xbf16>
    %299 = vector.extract_strided_slice %224 {offsets = [0, 96], sizes = [8, 32], strides = [1, 1]} : vector<8x128xbf16> to vector<8x32xbf16>
    %cst_88 = arith.constant dense<0.000000e+00> : vector<8x32xf32>
    %300 = tpu.matmul %298, %299, %cst_88 {dimension_numbers = #tpu.dot_dimension_numbers<[1], [0], [0], [1], [0, 0, 1, 1], [], []>} : vector<8x8xbf16>, vector<8x32xbf16>, vector<8x32xf32> -> vector<8x32xf32>
    %301 = tpu.concatenate %243, %262, %281, %300 in 1 : vector<8x32xf32>, vector<8x32xf32>, vector<8x32xf32>, vector<8x32xf32> -> vector<8x128xf32>
    %302 = arith.truncf %301 : vector<8x128xf32> to vector<8x128xbf16>
    %c1_89 = arith.constant 1 : index
    %c0_90 = arith.constant 0 : index
    %c0_91 = arith.constant 0 : index
    %303 = vector.load %arg5[%c1_89, %c0_90, %c0_91] : memref<2x128x128xbf16, #tpu.memory_space<vmem>>, vector<1x128x128xbf16>
    %304 = vector.shape_cast %303 : vector<1x128x128xbf16> to vector<128x128xbf16>
    %cst_92 = arith.constant dense<0.000000e+00> : vector<8x128xf32>
    %305 = tpu.matmul %302, %304, %cst_92 {dimension_numbers = #tpu.dot_dimension_numbers<[1], [0], [0], [1], [0, 0, 1, 1], [], []>} : vector<8x128xbf16>, vector<128x128xbf16>, vector<8x128xf32> -> vector<8x128xf32>
    %306 = vector.broadcast %186 : vector<1x128xf32> to vector<8x128xf32>
    %307 = arith.addf %305, %306 : vector<8x128xf32>
    %308 = arith.addf %180, %307 : vector<8x128xf32>
    %cst_93 = arith.constant dense<0.000000e+00> : vector<8xf32>
    %309 = vector.multi_reduction <add>, %308, %cst_93 [1] : vector<8x128xf32> to vector<8xf32>
    %310 = vector.shape_cast %309 : vector<8xf32> to vector<8x1xf32>
    %cst_94 = arith.constant 1.280000e+02 : f32
    %311 = vector.broadcast %cst_94 : f32 to vector<8x1xf32>
    %312 = arith.divf %310, %311 : vector<8x1xf32>
    %313 = vector.broadcast %312 : vector<8x1xf32> to vector<8x128xf32>
    %314 = arith.subf %308, %313 : vector<8x128xf32>
    %315 = arith.mulf %314, %314 : vector<8x128xf32>
    %cst_95 = arith.constant dense<0.000000e+00> : vector<8xf32>
    %316 = vector.multi_reduction <add>, %315, %cst_95 [1] : vector<8x128xf32> to vector<8xf32>
    %317 = vector.shape_cast %316 : vector<8xf32> to vector<8x1xf32>
    %cst_96 = arith.constant 1.280000e+02 : f32
    %318 = vector.broadcast %cst_96 : f32 to vector<8x1xf32>
    %319 = arith.divf %317, %318 : vector<8x1xf32>
    %320 = vector.broadcast %312 : vector<8x1xf32> to vector<8x128xf32>
    %321 = arith.subf %308, %320 : vector<8x128xf32>
    %cst_97 = arith.constant 9.99999974E-6 : f32
    %322 = vector.broadcast %cst_97 : f32 to vector<8x1xf32>
    %323 = arith.addf %319, %322 : vector<8x1xf32>
    %324 = math.rsqrt %323 : vector<8x1xf32>
    %325 = vector.broadcast %324 : vector<8x1xf32> to vector<8x128xf32>
    %326 = arith.mulf %321, %325 : vector<8x128xf32>
    %327 = vector.broadcast %187 : vector<1x128xf32> to vector<8x128xf32>
    %328 = arith.mulf %326, %327 : vector<8x128xf32>
    %329 = vector.broadcast %188 : vector<1x128xf32> to vector<8x128xf32>
    %330 = arith.addf %328, %329 : vector<8x128xf32>
    %331 = arith.truncf %330 : vector<8x128xf32> to vector<8x128xbf16>
    %c1_98 = arith.constant 1 : index
    %c0_99 = arith.constant 0 : index
    %c0_100 = arith.constant 0 : index
    %332 = vector.load %arg6[%c1_98, %c0_99, %c0_100] : memref<2x128x512xbf16, #tpu.memory_space<vmem>>, vector<1x128x512xbf16>
    %333 = vector.shape_cast %332 : vector<1x128x512xbf16> to vector<128x512xbf16>
    %cst_101 = arith.constant dense<0.000000e+00> : vector<8x512xf32>
    %334 = tpu.matmul %331, %333, %cst_101 {dimension_numbers = #tpu.dot_dimension_numbers<[1], [0], [0], [1], [0, 0, 1, 1], [], []>} : vector<8x128xbf16>, vector<128x512xbf16>, vector<8x512xf32> -> vector<8x512xf32>
    %335 = vector.broadcast %189 : vector<1x512xf32> to vector<8x512xf32>
    %336 = arith.addf %334, %335 : vector<8x512xf32>
    %cst_102 = arith.constant 5.000000e-01 : f32
    %337 = vector.broadcast %cst_102 : f32 to vector<8x512xf32>
    %338 = arith.mulf %337, %336 : vector<8x512xf32>
    %cst_103 = arith.constant 0.797884583 : f32
    %339 = vector.broadcast %cst_103 : f32 to vector<8x512xf32>
    %340 = arith.mulf %339, %336 : vector<8x512xf32>
    %cst_104 = arith.constant 4.471500e-02 : f32
    %341 = vector.broadcast %cst_104 : f32 to vector<8x512xf32>
    %342 = arith.mulf %341, %336 : vector<8x512xf32>
    %343 = arith.mulf %342, %336 : vector<8x512xf32>
    %cst_105 = arith.constant 1.000000e+00 : f32
    %344 = vector.broadcast %cst_105 : f32 to vector<8x512xf32>
    %345 = arith.addf %344, %343 : vector<8x512xf32>
    %346 = arith.mulf %340, %345 : vector<8x512xf32>
    %347 = math.tanh %346 : vector<8x512xf32>
    %cst_106 = arith.constant 1.000000e+00 : f32
    %348 = vector.broadcast %cst_106 : f32 to vector<8x512xf32>
    %349 = arith.addf %348, %347 : vector<8x512xf32>
    %350 = arith.mulf %338, %349 : vector<8x512xf32>
    %351 = arith.truncf %350 : vector<8x512xf32> to vector<8x512xbf16>
    %c1_107 = arith.constant 1 : index
    %c0_108 = arith.constant 0 : index
    %c0_109 = arith.constant 0 : index
    %352 = vector.load %arg7[%c1_107, %c0_108, %c0_109] : memref<2x512x128xbf16, #tpu.memory_space<vmem>>, vector<1x512x128xbf16>
    %353 = vector.shape_cast %352 : vector<1x512x128xbf16> to vector<512x128xbf16>
    %cst_110 = arith.constant dense<0.000000e+00> : vector<8x128xf32>
    %354 = tpu.matmul %351, %353, %cst_110 {dimension_numbers = #tpu.dot_dimension_numbers<[1], [0], [0], [1], [0, 0, 1, 1], [], []>} : vector<8x512xbf16>, vector<512x128xbf16>, vector<8x128xf32> -> vector<8x128xf32>
    %355 = vector.broadcast %190 : vector<1x128xf32> to vector<8x128xf32>
    %356 = arith.addf %354, %355 : vector<8x128xf32>
    %357 = arith.addf %308, %356 : vector<8x128xf32>
    %c0_111 = arith.constant 0 : index
    %c0_112 = arith.constant 0 : index
    %358 = vector.load %arg8[%c0_111, %c0_112] : memref<2x128xf32, #tpu.memory_space<vmem>>, vector<2x128xf32>
    %359 = vector.extract_strided_slice %358 {offsets = [0, 0], sizes = [1, 128], strides = [1, 1]} : vector<2x128xf32> to vector<1x128xf32>
    %360 = vector.extract_strided_slice %358 {offsets = [1, 0], sizes = [1, 128], strides = [1, 1]} : vector<2x128xf32> to vector<1x128xf32>
    %cst_113 = arith.constant dense<0.000000e+00> : vector<8xf32>
    %361 = vector.multi_reduction <add>, %357, %cst_113 [1] : vector<8x128xf32> to vector<8xf32>
    %362 = vector.shape_cast %361 : vector<8xf32> to vector<8x1xf32>
    %cst_114 = arith.constant 1.280000e+02 : f32
    %363 = vector.broadcast %cst_114 : f32 to vector<8x1xf32>
    %364 = arith.divf %362, %363 : vector<8x1xf32>
    %365 = vector.broadcast %364 : vector<8x1xf32> to vector<8x128xf32>
    %366 = arith.subf %357, %365 : vector<8x128xf32>
    %367 = arith.mulf %366, %366 : vector<8x128xf32>
    %cst_115 = arith.constant dense<0.000000e+00> : vector<8xf32>
    %368 = vector.multi_reduction <add>, %367, %cst_115 [1] : vector<8x128xf32> to vector<8xf32>
    %369 = vector.shape_cast %368 : vector<8xf32> to vector<8x1xf32>
    %cst_116 = arith.constant 1.280000e+02 : f32
    %370 = vector.broadcast %cst_116 : f32 to vector<8x1xf32>
    %371 = arith.divf %369, %370 : vector<8x1xf32>
    %372 = vector.broadcast %364 : vector<8x1xf32> to vector<8x128xf32>
    %373 = arith.subf %357, %372 : vector<8x128xf32>
    %cst_117 = arith.constant 9.99999974E-6 : f32
    %374 = vector.broadcast %cst_117 : f32 to vector<8x1xf32>
    %375 = arith.addf %371, %374 : vector<8x1xf32>
    %376 = math.rsqrt %375 : vector<8x1xf32>
    %377 = vector.broadcast %376 : vector<8x1xf32> to vector<8x128xf32>
    %378 = arith.mulf %373, %377 : vector<8x128xf32>
    %379 = vector.broadcast %359 : vector<1x128xf32> to vector<8x128xf32>
    %380 = arith.mulf %378, %379 : vector<8x128xf32>
    %381 = vector.broadcast %360 : vector<1x128xf32> to vector<8x128xf32>
    %382 = arith.addf %380, %381 : vector<8x128xf32>
    %383 = arith.truncf %382 : vector<8x128xf32> to vector<8x128xbf16>
    %c0_118 = arith.constant 0 : index
    %c0_119 = arith.constant 0 : index
    %384 = vector.load %arg9[%c0_118, %c0_119] : memref<128x128xbf16, #tpu.memory_space<vmem>>, vector<128x128xbf16>
    %cst_120 = arith.constant dense<0.000000e+00> : vector<8x128xf32>
    %385 = tpu.matmul %383, %384, %cst_120 {dimension_numbers = #tpu.dot_dimension_numbers<[1], [0], [0], [1], [0, 0, 1, 1], [], []>} : vector<8x128xbf16>, vector<128x128xbf16>, vector<8x128xf32> -> vector<8x128xf32>
    %c0_121 = arith.constant 0 : index
    %c0_122 = arith.constant 0 : index
    %c0_123 = arith.constant 0 : index
    %386 = vector.load %arg10[%c0_121, %c0_122, %c0_123] : memref<1x8x128xf32, #tpu.memory_space<vmem>>, vector<1x8x128xf32>
    %387 = vector.shape_cast %386 : vector<1x8x128xf32> to vector<8x128xf32>
    %388 = vector.shape_cast %385 : vector<8x128xf32> to vector<1x8x128xf32>
    tpu.vector_store %arg10[%c0_121, %c0_122, %c0_123], %388 {strides = array<i32>} : memref<1x8x128xf32, #tpu.memory_space<vmem>>, vector<1x8x128xf32>,
    return
  }
  func.func @transform_0(%arg0: i32) -> (i32, i32, i32) {
    %c0_i32 = arith.constant 0 : i32
    %c0_i32_0 = arith.constant 0 : i32
    %c0_i32_1 = arith.constant 0 : i32
    return %arg0, %c0_i32, %c0_i32_0 : i32, i32, i32
  }
  func.func @transform_1(%arg0: i32) -> (i32, i32, i32) {
    %c0_i32 = arith.constant 0 : i32
    %c0_i32_0 = arith.constant 0 : i32
    %c0_i32_1 = arith.constant 0 : i32
    return %arg0, %c0_i32, %c0_i32_0 : i32, i32, i32
  }
  func.func @transform_2(%arg0: i32) -> (i32, i32, i32) {
    %c0_i32 = arith.constant 0 : i32
    %c0_i32_0 = arith.constant 0 : i32
    %c0_i32_1 = arith.constant 0 : i32
    %c0_i32_2 = arith.constant 0 : i32
    return %c0_i32, %c0_i32_0, %c0_i32_1 : i32, i32, i32
  }
  func.func @transform_3(%arg0: i32) -> (i32, i32, i32) {
    %c0_i32 = arith.constant 0 : i32
    %c0_i32_0 = arith.constant 0 : i32
    %c0_i32_1 = arith.constant 0 : i32
    %c0_i32_2 = arith.constant 0 : i32
    return %c0_i32, %c0_i32_0, %c0_i32_1 : i32, i32, i32
  }
  func.func @transform_4(%arg0: i32) -> (i32, i32, i32) {
    %c0_i32 = arith.constant 0 : i32
    %c0_i32_0 = arith.constant 0 : i32
    %c0_i32_1 = arith.constant 0 : i32
    %c0_i32_2 = arith.constant 0 : i32
    return %c0_i32, %c0_i32_0, %c0_i32_1 : i32, i32, i32
  }
  func.func @transform_5(%arg0: i32) -> (i32, i32, i32) {
    %c0_i32 = arith.constant 0 : i32
    %c0_i32_0 = arith.constant 0 : i32
    %c0_i32_1 = arith.constant 0 : i32
    %c0_i32_2 = arith.constant 0 : i32
    return %c0_i32, %c0_i32_0, %c0_i32_1 : i32, i32, i32
  }
  func.func @transform_6(%arg0: i32) -> (i32, i32, i32) {
    %c0_i32 = arith.constant 0 : i32
    %c0_i32_0 = arith.constant 0 : i32
    %c0_i32_1 = arith.constant 0 : i32
    %c0_i32_2 = arith.constant 0 : i32
    return %c0_i32, %c0_i32_0, %c0_i32_1 : i32, i32, i32
  }
  func.func @transform_7(%arg0: i32) -> (i32, i32) {
    %c0_i32 = arith.constant 0 : i32
    %c0_i32_0 = arith.constant 0 : i32
    %c0_i32_1 = arith.constant 0 : i32
    return %c0_i32, %c0_i32_0 : i32, i32
  }
  func.func @transform_8(%arg0: i32) -> (i32, i32) {
    %c0_i32 = arith.constant 0 : i32
    %c0_i32_0 = arith.constant 0 : i32
    %c0_i32_1 = arith.constant 0 : i32
    return %c0_i32, %c0_i32_0 : i32, i32
  }
  func.func @transform_9(%arg0: i32) -> (i32, i32, i32) {
    %c0_i32 = arith.constant 0 : i32
    %c0_i32_0 = arith.constant 0 : i32
    %c0_i32_1 = arith.constant 0 : i32
    return %arg0, %c0_i32, %c0_i32_0 : i32, i32, i32
  }
}

</mosaic_0001>

<llo_original>
// kernel: pipeline_forward.1
$region0: #{pipeline_forward.1}
  #allocation0 [shape = 'u32[]', space=smem, size = 0x4, offset = 0x4, fixed_abs, tag = 'smem constant byte address 0x4 - core index']
  #allocation1 [shape = 'u32[144,128]{1,0:T(1,128)}', space=vmem, size = 0x12000, scoped, tag = 'internal scratch']
  %s0 = inlined_call_operand.vmem [shape: f32[2,8,128], index: 0, kind: input, shape index: {}]
  %s1 = inlined_call_operand.vmem [shape: f32[2,8,8], index: 1, kind: input, shape index: {}]
  %s2 = inlined_call_operand.vmem [shape: f32[2,8,512], index: 2, kind: input, shape index: {}]
  %s3 = inlined_call_operand.hbm [shape: bf16[2,128,384], index: 3, kind: input, shape index: {}]
  %s4 = inlined_call_operand.vmem [shape: bf16[2,128,128], index: 4, kind: input, shape index: {}]
  %s5 = inlined_call_operand.hbm [shape: bf16[2,128,512], index: 5, kind: input, shape index: {}]
  %s6 = inlined_call_operand.hbm [shape: bf16[2,512,128], index: 6, kind: input, shape index: {}]
  %s7 = inlined_call_operand.vmem [shape: f32[2,128], index: 7, kind: input, shape index: {}]
  %s8 = inlined_call_operand.vmem [shape: bf16[128,128], index: 8, kind: input, shape index: {}]
  %s9 = inlined_call_operand.hbm [shape: f32[2,8,128], index: 9, kind: output, shape index: {}]
  %s10 = sld [smem:[#allocation0]]
  $region81: #{pipeline_forward.1} parent=0
    _
  %s12 = ssub.s32 1, %s10
  %s13 = scalar_select 0, %s12, %s10
  $region1: #{pipeline_forward.1} parent=0
    #allocation2 [shape = 'u8[196608]{0}', space=vmem, size = 0x30000, scoped, tag = 'input window, operand 3, single buffered']
    #allocation3 [shape = 's32[2]{0}', space=sflag, size = 0x8, scoped, tag = 'scoped memory for pipeline_forward.1']
    #allocation4 [shape = 's32[2]{0}', space=sflag, size = 0x8, scoped, tag = 'scoped memory for pipeline_forward.1']
    #allocation5 [shape = 'u8[262144]{0}', space=vmem, size = 0x40000, scoped, tag = 'input window, operand 5, single buffered']
    #allocation6 [shape = 's32[1]{0}', space=sflag, size = 0x4, scoped, tag = 'scoped memory for pipeline_forward.1']
    #allocation7 [shape = 'u8[262144]{0}', space=vmem, size = 0x40000, scoped, tag = 'input window, operand 6, single buffered']
    #allocation8 [shape = 'u8[8192]{0}', space=vmem, size = 0x2000, scoped, tag = 'output window, operand 0']
    %14 = vsyncpa [#allocation3], 0
    %15 = vsyncpa [#allocation6], 0
    %16 = vsyncpa [#allocation4], 0
    %s17 = scalar_lea.sflag [#allocation4], 1
    %18 = vsyncpa %s17, 0
    loop: start=0, step=1, limit=4
    $region2: #{pipeline_forward.1} parent=1 // loop_pre_header
      _
    $region3: #{pipeline_forward.1} parent=1 // loop_header
      %s20 = sphi 0, %s24
      %p21 = scmp.ge.s32.totalorder %s20, 4
      %s30 = sphi 0, %s32
      %s33 = sphi 0, %s30
      %s34 = sphi 0, %s33
      %s50 = sphi 0, %s34
      %s56 = sphi 0, %s58
      %s59 = sphi 0, %s56
      %s60 = sphi 0, %s59
      %s76 = sphi 0, %s60
      %s80 = sphi 0, %s80
      %s82 = sphi 0, %s80
      %s83 = sphi 0, %s82
      %s97 = sphi 0, %s83
      %s101 = sphi 0, %s101
      %s103 = sphi 0, %s101
      %s104 = sphi 0, %s103
      %s118 = sphi 0, %s104
      %s122 = sphi 0, %s122
      %s124 = sphi 0, %s122
      %s125 = sphi 0, %s124
      %s139 = sphi 0, %s125
      %s143 = sphi 0, %s143
      %s145 = sphi 0, %s143
      %s146 = sphi 0, %s145
      %s160 = sphi 0, %s146
      %s164 = sphi 0, %s164
      %s166 = sphi 0, %s164
      %s167 = sphi 0, %s166
      %s181 = sphi 0, %s167
      %s185 = sphi 0, %s185
      %s187 = sphi 0, %s185
      %s188 = sphi 0, %s187
      %s202 = sphi 0, %s188
      %s206 = sphi 0, %s206
      %s208 = sphi 0, %s206
      %s209 = sphi 0, %s208
      %s223 = sphi 0, %s209
      %s229 = sphi 0, %s231
      %s232 = sphi 0, %s229
      %s233 = sphi 0, %s232
      %s249 = sphi 0, %s233
    $region4: #{pipeline_forward.1} parent=1 // loop_header_branch
      %23 = sbr.rel (%p21) target = $region8
    $region5: #{pipeline_forward.1} parent=1 // loop_body
      %s25 = ssub.s32 %s20, 1
      %s26 = ssub.s32 %s20, 2
      %s27 = sadd.s32 %s20, 1
      %s28 = ssub.s32 %s20, %s27
      %p29 = scmp.eq.s32.totalorder %s28, 0
      %s31 = sadd.s32 %s30, 1
      %s32 = scalar_select %p29, %s30, %s31
      %p35 = pneg %p29
      %p36 = scmp.eq.s32.totalorder %s20, 1
      %p37 = por %p35, %p36
      %p38 = scmp.ne.s32.totalorder %s30, %s33
      %p39 = scmp.eq.s32.totalorder %s20, 0
      %p40 = por %p38, %p39
      %p41 = scmp.ne.s32.totalorder %s30, %s33
      %p42 = scmp.eq.s32.totalorder %s25, 1
      %p43 = por %p41, %p42
      %p44 = scmp.ne.s32.totalorder %s33, %s34
      %p45 = scmp.eq.s32.totalorder %s25, 0
      %p46 = por %p44, %p45
      %p47 = scmp.ne.s32.totalorder %s33, %s34
      %p48 = scmp.eq.s32.totalorder %s26, 1
      %p49 = por %p47, %p48
      %p51 = scmp.ne.s32.totalorder %s34, %s50
      %p52 = scmp.eq.s32.totalorder %s26, 0
      %p53 = por %p51, %p52
      %s54 = ssub.s32 %s20, %s27
      %p55 = scmp.eq.s32.totalorder %s54, 0
      %s57 = sadd.s32 %s56, 1
      %s58 = scalar_select %p55, %s56, %s57
      %p61 = pneg %p55
      %p62 = scmp.eq.s32.totalorder %s20, 1
      %p63 = por %p61, %p62
      %p64 = scmp.ne.s32.totalorder %s56, %s59
      %p65 = scmp.eq.s32.totalorder %s20, 0
      %p66 = por %p64, %p65
      %p67 = scmp.ne.s32.totalorder %s56, %s59
      %p68 = scmp.eq.s32.totalorder %s25, 1
      %p69 = por %p67, %p68
      %p70 = scmp.ne.s32.totalorder %s59, %s60
      %p71 = scmp.eq.s32.totalorder %s25, 0
      %p72 = por %p70, %p71
      %p73 = scmp.ne.s32.totalorder %s59, %s60
      %p74 = scmp.eq.s32.totalorder %s26, 1
      %p75 = por %p73, %p74
      %p77 = scmp.ne.s32.totalorder %s60, %s76
      %p78 = scmp.eq.s32.totalorder %s26, 0
      %p79 = por %p77, %p78
      %s81 = sadd.s32 %s80, 1
      %p84 = scmp.eq.s32.totalorder %s20, 1
      %p85 = scmp.ne.s32.totalorder %s80, %s82
      %p86 = scmp.eq.s32.totalorder %s20, 0
      %p87 = por %p85, %p86
      %p88 = scmp.ne.s32.totalorder %s80, %s82
      %p89 = scmp.eq.s32.totalorder %s25, 1
      %p90 = por %p88, %p89
      %p91 = scmp.ne.s32.totalorder %s82, %s83
      %p92 = scmp.eq.s32.totalorder %s25, 0
      %p93 = por %p91, %p92
      %p94 = scmp.ne.s32.totalorder %s82, %s83
      %p95 = scmp.eq.s32.totalorder %s26, 1
      %p96 = por %p94, %p95
      %p98 = scmp.ne.s32.totalorder %s83, %s97
      %p99 = scmp.eq.s32.totalorder %s26, 0
      %p100 = por %p98, %p99
      %s102 = sadd.s32 %s101, 1
      %p105 = scmp.eq.s32.totalorder %s20, 1
      %p106 = scmp.ne.s32.totalorder %s101, %s103
      %p107 = scmp.eq.s32.totalorder %s20, 0
      %p108 = por %p106, %p107
      %p109 = scmp.ne.s32.totalorder %s101, %s103
      %p110 = scmp.eq.s32.totalorder %s25, 1
      %p111 = por %p109, %p110
      %p112 = scmp.ne.s32.totalorder %s103, %s104
      %p113 = scmp.eq.s32.totalorder %s25, 0
      %p114 = por %p112, %p113
      %p115 = scmp.ne.s32.totalorder %s103, %s104
      %p116 = scmp.eq.s32.totalorder %s26, 1
      %p117 = por %p115, %p116
      %p119 = scmp.ne.s32.totalorder %s104, %s118
      %p120 = scmp.eq.s32.totalorder %s26, 0
      %p121 = por %p119, %p120
      %s123 = sadd.s32 %s122, 1
      %p126 = scmp.eq.s32.totalorder %s20, 1
      %p127 = scmp.ne.s32.totalorder %s122, %s124
      %p128 = scmp.eq.s32.totalorder %s20, 0
      %p129 = por %p127, %p128
      %p130 = scmp.ne.s32.totalorder %s122, %s124
      %p131 = scmp.eq.s32.totalorder %s25, 1
      %p132 = por %p130, %p131
      %p133 = scmp.ne.s32.totalorder %s124, %s125
      %p134 = scmp.eq.s32.totalorder %s25, 0
      %p135 = por %p133, %p134
      %p136 = scmp.ne.s32.totalorder %s124, %s125
      %p137 = scmp.eq.s32.totalorder %s26, 1
      %p138 = por %p136, %p137
      %p140 = scmp.ne.s32.totalorder %s125, %s139
      %p141 = scmp.eq.s32.totalorder %s26, 0
      %p142 = por %p140, %p141
      %s144 = sadd.s32 %s143, 1
      %p147 = scmp.eq.s32.totalorder %s20, 1
      %p148 = scmp.ne.s32.totalorder %s143, %s145
      %p149 = scmp.eq.s32.totalorder %s20, 0
      %p150 = por %p148, %p149
      %p151 = scmp.ne.s32.totalorder %s143, %s145
      %p152 = scmp.eq.s32.totalorder %s25, 1
      %p153 = por %p151, %p152
      %p154 = scmp.ne.s32.totalorder %s145, %s146
      %p155 = scmp.eq.s32.totalorder %s25, 0
      %p156 = por %p154, %p155
      %p157 = scmp.ne.s32.totalorder %s145, %s146
      %p158 = scmp.eq.s32.totalorder %s26, 1
      %p159 = por %p157, %p158
      %p161 = scmp.ne.s32.totalorder %s146, %s160
      %p162 = scmp.eq.s32.totalorder %s26, 0
      %p163 = por %p161, %p162
      %s165 = sadd.s32 %s164, 1
      %p168 = scmp.eq.s32.totalorder %s20, 1
      %p169 = scmp.ne.s32.totalorder %s164, %s166
      %p170 = scmp.eq.s32.totalorder %s20, 0
      %p171 = por %p169, %p170
      %p172 = scmp.ne.s32.totalorder %s164, %s166
      %p173 = scmp.eq.s32.totalorder %s25, 1
      %p174 = por %p172, %p173
      %p175 = scmp.ne.s32.totalorder %s166, %s167
      %p176 = scmp.eq.s32.totalorder %s25, 0
      %p177 = por %p175, %p176
      %p178 = scmp.ne.s32.totalorder %s166, %s167
      %p179 = scmp.eq.s32.totalorder %s26, 1
      %p180 = por %p178, %p179
      %p182 = scmp.ne.s32.totalorder %s167, %s181
      %p183 = scmp.eq.s32.totalorder %s26, 0
      %p184 = por %p182, %p183
      %s186 = sadd.s32 %s185, 1
      %p189 = scmp.eq.s32.totalorder %s20, 1
      %p190 = scmp.ne.s32.totalorder %s185, %s187
      %p191 = scmp.eq.s32.totalorder %s20, 0
      %p192 = por %p190, %p191
      %p193 = scmp.ne.s32.totalorder %s185, %s187
      %p194 = scmp.eq.s32.totalorder %s25, 1
      %p195 = por %p193, %p194
      %p196 = scmp.ne.s32.totalorder %s187, %s188
      %p197 = scmp.eq.s32.totalorder %s25, 0
      %p198 = por %p196, %p197
      %p199 = scmp.ne.s32.totalorder %s187, %s188
      %p200 = scmp.eq.s32.totalorder %s26, 1
      %p201 = por %p199, %p200
      %p203 = scmp.ne.s32.totalorder %s188, %s202
      %p204 = scmp.eq.s32.totalorder %s26, 0
      %p205 = por %p203, %p204
      %s207 = sadd.s32 %s206, 1
      %p210 = scmp.eq.s32.totalorder %s20, 1
      %p211 = scmp.ne.s32.totalorder %s206, %s208
      %p212 = scmp.eq.s32.totalorder %s20, 0
      %p213 = por %p211, %p212
      %p214 = scmp.ne.s32.totalorder %s206, %s208
      %p215 = scmp.eq.s32.totalorder %s25, 1
      %p216 = por %p214, %p215
      %p217 = scmp.ne.s32.totalorder %s208, %s209
      %p218 = scmp.eq.s32.totalorder %s25, 0
      %p219 = por %p217, %p218
      %p220 = scmp.ne.s32.totalorder %s208, %s209
      %p221 = scmp.eq.s32.totalorder %s26, 1
      %p222 = por %p220, %p221
      %p224 = scmp.ne.s32.totalorder %s209, %s223
      %p225 = scmp.eq.s32.totalorder %s26, 0
      %p226 = por %p224, %p225
      %s227 = ssub.s32 %s20, %s27
      %p228 = scmp.eq.s32.totalorder %s227, 0
      %s230 = sadd.s32 %s229, 1
      %s231 = scalar_select %p228, %s229, %s230
      %p234 = pneg %p228
      %p235 = scmp.eq.s32.totalorder %s20, 1
      %p236 = por %p234, %p235
      %p237 = scmp.ne.s32.totalorder %s229, %s232
      %p238 = scmp.eq.s32.totalorder %s20, 0
      %p239 = por %p237, %p238
      %p240 = scmp.ne.s32.totalorder %s229, %s232
      %p241 = scmp.eq.s32.totalorder %s25, 1
      %p242 = por %p240, %p241
      %p243 = scmp.ne.s32.totalorder %s232, %s233
      %p244 = scmp.eq.s32.totalorder %s25, 0
      %p245 = por %p243, %p244
      %p246 = scmp.ne.s32.totalorder %s232, %s233
      %p247 = scmp.eq.s32.totalorder %s26, 1
      %p248 = por %p246, %p247
      %p250 = scmp.ne.s32.totalorder %s233, %s249
      %p251 = scmp.eq.s32.totalorder %s26, 0
      %p252 = por %p250, %p251
      %p253 = scmp.le.s32.totalorder 1, %s20
      %p254 = scmp.lt.s32.totalorder %s20, 3
      %p255 = pnand %p253, %p254
      %p256 = pneg %p255
      // Predicated region
      $region9: #{pipeline_forward.1} parent=5 // pred_check
        _
      $region10: #{pipeline_forward.1} parent=5 // pred_check_branch
        %258 = sbr.rel (%p255) target = $region12
      $region11: #{pipeline_forward.1} parent=5 // pred_region
        %s259 = ssub.s32 %s20, 1
        // Predicated region
        $region13: #{pipeline_forward.1} parent=11 // pred_check
          %p260 = pneg %p93
        $region14: #{pipeline_forward.1} parent=11 // pred_check_branch
          %262 = sbr.rel (%p260) target = $region16
        $region15: #{pipeline_forward.1} parent=11 // pred_region
          _
        $region16: #{pipeline_forward.1} parent=11 // pred_fallthru
          _
        // Predicated region
        $region17: #{pipeline_forward.1} parent=11 // pred_check
          %p263 = pneg %p114
        $region18: #{pipeline_forward.1} parent=11 // pred_check_branch
          %265 = sbr.rel (%p263) target = $region20
        $region19: #{pipeline_forward.1} parent=11 // pred_region
          %s267 = ssub.s32 6144, 6144
          %268 = vsyncadd [#allocation3], %s267
          %s269 = sshll.u32 [#allocation2], 4
          %s270 = int_to_ptr.vmem [resolvable:$true] %s269
          %275 = dma.hbm_to_vmem [thread:$0]  %s3, 6144, %s270, [#allocation3], 192, 192, 12
        $region20: #{pipeline_forward.1} parent=11 // pred_fallthru
          _
        // Predicated region
        $region21: #{pipeline_forward.1} parent=11 // pred_check
          %p276 = pneg %p135
        $region22: #{pipeline_forward.1} parent=11 // pred_check_branch
          %278 = sbr.rel (%p276) target = $region24
        $region23: #{pipeline_forward.1} parent=11 // pred_region
          _
        $region24: #{pipeline_forward.1} parent=11 // pred_fallthru
          _
        // Predicated region
        $region25: #{pipeline_forward.1} parent=11 // pred_check
          %p279 = pneg %p156
        $region26: #{pipeline_forward.1} parent=11 // pred_check_branch
          %281 = sbr.rel (%p279) target = $region28
        $region27: #{pipeline_forward.1} parent=11 // pred_region
          %s283 = ssub.s32 8192, 8192
          %284 = vsyncadd [#allocation6], %s283
          %s285 = sshll.u32 [#allocation5], 4
          %s286 = int_to_ptr.vmem [resolvable:$true] %s285
          %291 = dma.hbm_to_vmem [thread:$0]  %s5, 8192, %s286, [#allocation6], 256, 256, 16
        $region28: #{pipeline_forward.1} parent=11 // pred_fallthru
          _
        // Predicated region
        $region29: #{pipeline_forward.1} parent=11 // pred_check
          %p292 = pneg %p177
        $region30: #{pipeline_forward.1} parent=11 // pred_check_branch
          %294 = sbr.rel (%p292) target = $region32
        $region31: #{pipeline_forward.1} parent=11 // pred_region
          %s296 = ssub.s32 8192, 8192
          %297 = vsyncadd [#allocation6], %s296
          %s298 = sshll.u32 [#allocation7], 4
          %s299 = int_to_ptr.vmem [resolvable:$true] %s298
          %304 = dma.hbm_to_vmem [thread:$0]  %s6, 8192, %s299, [#allocation6], 64, 64, 4
        $region32: #{pipeline_forward.1} parent=11 // pred_fallthru
          _
        // Predicated region
        $region33: #{pipeline_forward.1} parent=11 // pred_check
          %p305 = pneg %p198
        $region34: #{pipeline_forward.1} parent=11 // pred_check_branch
          %307 = sbr.rel (%p305) target = $region36
        $region35: #{pipeline_forward.1} parent=11 // pred_region
          _
        $region36: #{pipeline_forward.1} parent=11 // pred_fallthru
          _
        // Predicated region
        $region37: #{pipeline_forward.1} parent=11 // pred_check
          %p308 = pneg %p219
        $region38: #{pipeline_forward.1} parent=11 // pred_check_branch
          %310 = sbr.rel (%p308) target = $region40
        $region39: #{pipeline_forward.1} parent=11 // pred_region
          _
        $region40: #{pipeline_forward.1} parent=11 // pred_fallthru
          _
      $region12: #{pipeline_forward.1} parent=5 // pred_fallthru
        _
      %p311 = scmp.lt.s32.totalorder %s20, 2
      // Predicated region
      $region41: #{pipeline_forward.1} parent=5 // pred_check
        %p312 = pneg %p311
      $region42: #{pipeline_forward.1} parent=5 // pred_check_branch
        %314 = sbr.rel (%p312) target = $region44
      $region43: #{pipeline_forward.1} parent=5 // pred_region
        // Predicated region
        $region45: #{pipeline_forward.1} parent=43 // pred_check
          %p315 = pneg %p40
        $region46: #{pipeline_forward.1} parent=43 // pred_check_branch
          %317 = sbr.rel (%p315) target = $region48
        $region47: #{pipeline_forward.1} parent=43 // pred_region
          %p318 = scmp.lt.s32.totalorder %s20, 1
          %s319 = scalar_select %p318, %s20, 1
          %s320 = smul.addr %s319, 8
          %s321 = scalar_lea.vmem %s0, %s320
        $region48: #{pipeline_forward.1} parent=43 // pred_fallthru
          _
        // Predicated region
        $region49: #{pipeline_forward.1} parent=43 // pred_check
          %p322 = pneg %p66
        $region50: #{pipeline_forward.1} parent=43 // pred_check_branch
          %324 = sbr.rel (%p322) target = $region52
        $region51: #{pipeline_forward.1} parent=43 // pred_region
          %p325 = scmp.lt.s32.totalorder %s20, 1
          %s326 = scalar_select %p325, %s20, 1
          %s327 = smul.addr %s326, 8
          %s328 = scalar_lea.vmem %s1, %s327
        $region52: #{pipeline_forward.1} parent=43 // pred_fallthru
          _
      $region44: #{pipeline_forward.1} parent=5 // pred_fallthru
        _
      %p329 = scmp.le.s32.totalorder 1, %s20
      %p330 = scmp.lt.s32.totalorder %s20, 3
      %p331 = pnand %p329, %p330
      %p332 = pneg %p331
      // Predicated region
      $region53: #{pipeline_forward.1} parent=5 // pred_check
        _
      $region54: #{pipeline_forward.1} parent=5 // pred_check_branch
        %334 = sbr.rel (%p331) target = $region56
      $region55: #{pipeline_forward.1} parent=5 // pred_region
        %s335 = ssub.s32 %s20, 1
        // Predicated region
        $region57: #{pipeline_forward.1} parent=55 // pred_check
          %p336 = pneg %p114
        $region58: #{pipeline_forward.1} parent=55 // pred_check_branch
          %338 = sbr.rel (%p336) target = $region60
        $region59: #{pipeline_forward.1} parent=55 // pred_region
          %339 = dma.done [#allocation3], 6144
        $region60: #{pipeline_forward.1} parent=55 // pred_fallthru
          _
        // Predicated region
        $region61: #{pipeline_forward.1} parent=55 // pred_check
          %p340 = pneg %p156
        $region62: #{pipeline_forward.1} parent=55 // pred_check_branch
          %342 = sbr.rel (%p340) target = $region64
        $region63: #{pipeline_forward.1} parent=55 // pred_region
          %343 = dma.done [#allocation6], 8192
        $region64: #{pipeline_forward.1} parent=55 // pred_fallthru
          _
        // Predicated region
        $region65: #{pipeline_forward.1} parent=55 // pred_check
          %p344 = pneg %p177
        $region66: #{pipeline_forward.1} parent=55 // pred_check_branch
          %346 = sbr.rel (%p344) target = $region68
        $region67: #{pipeline_forward.1} parent=55 // pred_region
          %347 = dma.done [#allocation6], 8192
        $region68: #{pipeline_forward.1} parent=55 // pred_fallthru
          _
        %p348 = scmp.lt.s32.totalorder %s25, 1
        %s349 = scalar_select %p348, %s25, 1
        %s350 = smul.addr %s349, 8
        %s351 = scalar_lea.vmem %s0, %s350
        %p352 = pneg %p46
        %p353 = pneg %p43
        %p354 = scmp.lt.s32.totalorder %s25, 1
        %s355 = scalar_select %p354, %s25, 1
        %s356 = smul.addr %s355, 8
        %s357 = scalar_lea.vmem %s1, %s356
        %p358 = pneg %p72
        %p359 = pneg %p69
        %p360 = pneg %p93
        %p361 = pneg %p90
        %p362 = pneg %p114
        %p363 = pneg %p111
        %p364 = pneg %p135
        %p365 = pneg %p132
        %p366 = pneg %p156
        %p367 = pneg %p153
        %p368 = pneg %p177
        %p369 = pneg %p174
        %p370 = pneg %p198
        %p371 = pneg %p195
        %p372 = pneg %p219
        %p373 = pneg %p216
        %p374 = pneg %p245
        %p375 = pneg %p242
        %s376 = sand.u32 %s232, 1
        %s377 = scalar_lea.sflag [#allocation4], %s376
        %s378 = sand.u32 %s232, 1
        %s379 = smul.addr %s378, 8
        %s380 = scalar_lea.vmem [#allocation8], %s379
        %p381 = scmp.lt.s32.totalorder %s25, 1
        %s382 = scalar_select %p381, %s25, 1
        %s383 = smul.addr %s382, 8
        %s384 = scalar_lea.vmem %s0, %s383
        %p385 = scmp.lt.s32.totalorder %s25, 1
        %s386 = scalar_select %p385, %s25, 1
        %s387 = smul.addr %s386, 8
        %s388 = scalar_lea.vmem %s1, %s387
        %v390 = vld [vmem:[%s384] sm:$0xff]
        %v391 = vld [vmem:[%s388] sm:$0xff]
        %v392 = vld [vmem:[%s2] sm:$0xff]
        %v393 = vld [vmem:[%s2 + $0x8] sm:$0xff]
        %v394 = vld [vmem:[%s2 + $0x10] sm:$0xff]
        %v395 = vld [vmem:[%s2 + $0x18] sm:$0xff]
        %396 = vadd.xlane.f32.xlu0 %v390
        %v397 = vpop.xlane.xlu0 %396
        %v398 = vrcp.pop 128.0
        %v399 = vmul.f32 %v397, %v398
        %v400 = vsub.f32 %v390, %v399
        %v401 = vmul.f32 %v400, %v400
        %402 = vadd.xlane.f32.xlu0 %v401
        %v403 = vpop.xlane.xlu0 %402
        %v404 = vmul.f32 %v403, %v398
        %v405 = vadd.f32 %v404, 1e-05
        %v406 = vrsqrt.pop %v405
        %v407 = vmul.f32 %v400, %v406
        %v408 = vlaneseq
        %v409 = vshrl.u32 %v408, 7
        %v410 = vsub.s32 0, %v409
        %v411 = vrot.slane %v392, %v410
        %v412 = vmul.f32 %v407, %v411
        %v413 = vlaneseq
        %v414 = vshrl.u32 %v413, 7
        %v415 = vsub.s32 1, %v414
        %v416 = vrot.slane %v392, %v415
        %v417 = vadd.f32 %v412, %v416
        %v418 = vld [vmem:[#allocation2] sm:$0xff]
        %v419 = vld [vmem:[#allocation2 + $0x8] sm:$0xf]
        %v420 = vld [vmem:[#allocation2 + $0xc] sm:$0xff]
        %v421 = vld [vmem:[#allocation2 + $0x14] sm:$0xf]
        %v422 = vld [vmem:[#allocation2 + $0x18] sm:$0xff]
        %v423 = vld [vmem:[#allocation2 + $0x20] sm:$0xf]
        %v424 = vld [vmem:[#allocation2 + $0x24] sm:$0xff]
        %v425 = vld [vmem:[#allocation2 + $0x2c] sm:$0xf]
        %v426 = vld [vmem:[#allocation2 + $0x30] sm:$0xff]
        %v427 = vld [vmem:[#allocation2 + $0x38] sm:$0xf]
        %v428 = vld [vmem:[#allocation2 + $0x3c] sm:$0xff]
        %v429 = vld [vmem:[#allocation2 + $0x44] sm:$0xf]
        %v430 = vld [vmem:[#allocation2 + $0x48] sm:$0xff]
        %v431 = vld [vmem:[#allocation2 + $0x50] sm:$0xf]
        %v432 = vld [vmem:[#allocation2 + $0x54] sm:$0xff]
        %v433 = vld [vmem:[#allocation2 + $0x5c] sm:$0xf]
        %v434 = vld [vmem:[#allocation2 + $0x60] sm:$0xff]
        %v435 = vld [vmem:[#allocation2 + $0x68] sm:$0xf]
        %v436 = vld [vmem:[#allocation2 + $0x6c] sm:$0xff]
        %v437 = vld [vmem:[#allocation2 + $0x74] sm:$0xf]
        %v438 = vld [vmem:[#allocation2 + $0x78] sm:$0xff]
        %v439 = vld [vmem:[#allocation2 + $0x80] sm:$0xf]
        %v440 = vld [vmem:[#allocation2 + $0x84] sm:$0xff]
        %v441 = vld [vmem:[#allocation2 + $0x8c] sm:$0xf]
        %v442 = vld [vmem:[#allocation2 + $0x90] sm:$0xff]
        %v443 = vld [vmem:[#allocation2 + $0x98] sm:$0xf]
        %v444 = vld [vmem:[#allocation2 + $0x9c] sm:$0xff]
        %v445 = vld [vmem:[#allocation2 + $0xa4] sm:$0xf]
        %v446 = vld [vmem:[#allocation2 + $0xa8] sm:$0xff]
        %v447 = vld [vmem:[#allocation2 + $0xb0] sm:$0xf]
        %v448 = vld [vmem:[#allocation2 + $0xb4] sm:$0xff]
        %v449 = vld [vmem:[#allocation2 + $0xbc] sm:$0xf]
        %v450 = vpack.c.bf16 %v417, %v417
        %v451 = vlaneseq
        %v452 = vshrl.u32 %v451, 7
        %v453 = vsub.s32 2, %v452
        %v454 = vrot.slane %v392, %v453
        %v455 = vlaneseq
        %v456 = vshrl.u32 %v455, 7
        %v457 = vsub.s32 2, %v456
        %v458 = vrot.slane %v393, %v457
        %v459 = vlaneseq
        %v460 = vshrl.u32 %v459, 7
        %v461 = vsub.s32 2, %v460
        %v462 = vrot.slane %v394, %v461
        %v495 = vunpack.c.l.b16 %v418
        %v496 = vunpack.c.h.b16 %v418
        %v497 = vunpack.c.l.b16 %v419
        %v498 = vunpack.c.l.b16 %v420
        %v499 = vunpack.c.h.b16 %v420
        %v500 = vunpack.c.l.b16 %v421
        %v501 = vunpack.c.l.b16 %v422
        %v502 = vunpack.c.h.b16 %v422
        %v503 = vunpack.c.l.b16 %v423
        %v504 = vunpack.c.l.b16 %v424
        %v505 = vunpack.c.h.b16 %v424
        %v506 = vunpack.c.l.b16 %v425
        %v507 = vunpack.c.l.b16 %v426
        %v508 = vunpack.c.h.b16 %v426
        %v509 = vunpack.c.l.b16 %v427
        %v510 = vunpack.c.l.b16 %v428
        %v511 = vunpack.c.h.b16 %v428
        %v512 = vunpack.c.l.b16 %v429
        %v513 = vunpack.c.l.b16 %v430
        %v514 = vunpack.c.h.b16 %v430
        %v515 = vunpack.c.l.b16 %v431
        %v516 = vunpack.c.l.b16 %v432
        %v517 = vunpack.c.h.b16 %v432
        %v518 = vunpack.c.l.b16 %v433
        %v519 = vunpack.c.l.b16 %v434
        %v520 = vunpack.c.h.b16 %v434
        %v521 = vunpack.c.l.b16 %v435
        %v522 = vunpack.c.l.b16 %v436
        %v523 = vunpack.c.h.b16 %v436
        %v524 = vunpack.c.l.b16 %v437
        %v525 = vunpack.c.l.b16 %v438
        %v526 = vunpack.c.h.b16 %v438
        %v527 = vunpack.c.l.b16 %v439
        %v528 = vunpack.c.l.b16 %v440
        %v529 = vunpack.c.h.b16 %v440
        %v530 = vunpack.c.l.b16 %v441
        %v531 = vunpack.c.l.b16 %v442
        %v532 = vunpack.c.h.b16 %v442
        %v533 = vunpack.c.l.b16 %v443
        %v534 = vunpack.c.l.b16 %v444
        %v535 = vunpack.c.h.b16 %v444
        %v536 = vunpack.c.l.b16 %v445
        %v537 = vunpack.c.l.b16 %v446
        %v538 = vunpack.c.h.b16 %v446
        %v539 = vunpack.c.l.b16 %v447
        %v540 = vunpack.c.l.b16 %v448
        %v541 = vunpack.c.h.b16 %v448
        %v542 = vunpack.c.l.b16 %v449
        %v543 = vpack.c.b16 %v498, %v495
        %v544 = vpack.c.b16 %v499, %v496
        %v545 = vpack.c.b16 %v500, %v497
        %v546 = vpack.c.b16 %v504, %v501
        %v547 = vpack.c.b16 %v505, %v502
        %v548 = vpack.c.b16 %v506, %v503
        %v549 = vpack.c.b16 %v510, %v507
        %v550 = vpack.c.b16 %v511, %v508
        %v551 = vpack.c.b16 %v512, %v509
        %v552 = vpack.c.b16 %v516, %v513
        %v553 = vpack.c.b16 %v517, %v514
        %v554 = vpack.c.b16 %v518, %v515
        %v555 = vpack.c.b16 %v522, %v519
        %v556 = vpack.c.b16 %v523, %v520
        %v557 = vpack.c.b16 %v524, %v521
        %v558 = vpack.c.b16 %v528, %v525
        %v559 = vpack.c.b16 %v529, %v526
        %v560 = vpack.c.b16 %v530, %v527
        %v561 = vpack.c.b16 %v534, %v531
        %v562 = vpack.c.b16 %v535, %v532
        %v563 = vpack.c.b16 %v536, %v533
        %v564 = vpack.c.b16 %v540, %v537
        %v565 = vpack.c.b16 %v541, %v538
        %v566 = vpack.c.b16 %v542, %v539
        %591 = vmatprep.subr.bf16.mxu0 %v544
        %592 = vmatpush1.bf16.msra.mxu0 %v543
        %593 = vmatprep.subr.bf16.mxu0 %v547
        %594 = vmatpush1.bf16.msra.mxu0 %v546
        %595 = vmatprep.subr.bf16.mxu0 %v550
        %596 = vmatpush1.bf16.msra.mxu0 %v549
        %597 = vmatprep.subr.bf16.mxu0 %v553
        %598 = vmatpush1.bf16.msra.mxu0 %v552
        %599 = vmatprep.subr.bf16.mxu0 %v556
        %600 = vmatpush1.bf16.msra.mxu0 %v555
        %601 = vmatprep.subr.bf16.mxu0 %v559
        %602 = vmatpush1.bf16.msra.mxu0 %v558
        %603 = vmatprep.subr.bf16.mxu0 %v562
        %604 = vmatpush1.bf16.msra.mxu0 %v561
        %605 = vmatprep.subr.bf16.mxu0 %v565
        %606 = vmatpush1.bf16.msra.mxu0 %v564
        %607 = vmatprep.subr.bf16.mxu0 0
        %608 = vmatpush1.bf16.msra.mxu0 0
        %609 = vmatprep.subr.bf16.mxu0 0
        %610 = vmatpush1.bf16.msra.mxu0 0
        %611 = vmatprep.subr.bf16.mxu0 0
        %612 = vmatpush1.bf16.msra.mxu0 0
        %613 = vmatprep.subr.bf16.mxu0 0
        %614 = vmatpush1.bf16.msra.mxu0 0
        %615 = vmatprep.subr.bf16.mxu0 0
        %616 = vmatpush1.bf16.msra.mxu0 0
        %617 = vmatprep.subr.bf16.mxu0 0
        %618 = vmatpush1.bf16.msra.mxu0 0
        %619 = vmatprep.subr.bf16.mxu0 0
        %620 = vmatpush1.bf16.msra.mxu0 0
        %621 = vmatprep.subr.bf16.mxu0 0
        %622 = vmatpush1.bf16.msra.mxu0 0
        %623 = vmatprep.mubr.bf16.mxu0 0
        %624 = vmatmul.mubr.bf16.gmra.mrb[0].mxu0 %v450
        %v625 = vpop.f32.mrb[0].mxu0
        %v626 = vadd.f32 %v454, %v625
        %v627 = vpop.f32.mrb[0].mxu0
        %v628 = vadd.f32 %v458, %v627
        %v629 = vpop.f32.mrb[0].mxu0
        %v630 = vpop.f32.mrb[0].mxu0
        %631 = vdwg.mxu0
        %632 = vmatprep.subr.bf16.mxu0 0
        %633 = vmatpush1.bf16.msra.mxu0 %v545
        %634 = vmatprep.subr.bf16.mxu0 0
        %635 = vmatpush1.bf16.msra.mxu0 %v548
        %636 = vmatprep.subr.bf16.mxu0 0
        %637 = vmatpush1.bf16.msra.mxu0 %v551
        %638 = vmatprep.subr.bf16.mxu0 0
        %639 = vmatpush1.bf16.msra.mxu0 %v554
        %640 = vmatprep.subr.bf16.mxu0 0
        %641 = vmatpush1.bf16.msra.mxu0 %v557
        %642 = vmatprep.subr.bf16.mxu0 0
        %643 = vmatpush1.bf16.msra.mxu0 %v560
        %644 = vmatprep.subr.bf16.mxu0 0
        %645 = vmatpush1.bf16.msra.mxu0 %v563
        %646 = vmatprep.subr.bf16.mxu0 0
        %647 = vmatpush1.bf16.msra.mxu0 %v566
        %648 = vmatprep.subr.bf16.mxu0 0
        %649 = vmatpush1.bf16.msra.mxu0 0
        %650 = vmatprep.subr.bf16.mxu0 0
        %651 = vmatpush1.bf16.msra.mxu0 0
        %652 = vmatprep.subr.bf16.mxu0 0
        %653 = vmatpush1.bf16.msra.mxu0 0
        %654 = vmatprep.subr.bf16.mxu0 0
        %655 = vmatpush1.bf16.msra.mxu0 0
        %656 = vmatprep.subr.bf16.mxu0 0
        %657 = vmatpush1.bf16.msra.mxu0 0
        %658 = vmatprep.subr.bf16.mxu0 0
        %659 = vmatpush1.bf16.msra.mxu0 0
        %660 = vmatprep.subr.bf16.mxu0 0
        %661 = vmatpush1.bf16.msra.mxu0 0
        %662 = vmatprep.subr.bf16.mxu0 0
        %663 = vmatpush1.bf16.msra.mxu0 0
        %664 = vmatprep.mubr.bf16.mxu0 0
        %665 = vmatmul.mubr.bf16.gmra.mrb[0].mxu0 %v450
        %v666 = vpop.f32.mrb[0].mxu0
        %v667 = vadd.f32 %v462, %v666
        %v668 = vpop.f32.mrb[0].mxu0
        %v669 = vpop.f32.mrb[0].mxu0
        %v670 = vpop.f32.mrb[0].mxu0
        %671 = vdwg.mxu0
        %v672 = vpack.c.bf16 %v626, %v626
        %v673 = vpack.c.bf16 %v628, %v628
        %v674 = vpack.c.bf16 %v667, %v667
        %vm675 = vcmask 261120
        %v677 = vsel %vm675, %v672, 0
        %v680 = vsel %vm675, %v673, 0
        %682 = vmatprep.subr.bf16.mxu0 0
        %683 = vmatpush1.bf16.xpose.msra.mxu0 %v680
        %684 = vmatprep.subr.bf16.mxu0 0
        %685 = vmatpush1.bf16.xpose.msra.mxu0 0
        %686 = vmatprep.subr.bf16.mxu0 0
        %687 = vmatpush1.bf16.xpose.msra.mxu0 0
        %688 = vmatprep.subr.bf16.mxu0 0
        %689 = vmatpush1.bf16.xpose.msra.mxu0 0
        %690 = vmatprep.subr.bf16.mxu0 0
        %691 = vmatpush1.bf16.xpose.msra.mxu0 0
        %692 = vmatprep.subr.bf16.mxu0 0
        %693 = vmatpush1.bf16.xpose.msra.mxu0 0
        %694 = vmatprep.subr.bf16.mxu0 0
        %695 = vmatpush1.bf16.xpose.msra.mxu0 0
        %696 = vmatprep.subr.bf16.mxu0 0
        %697 = vmatpush1.bf16.xpose.msra.mxu0 0
        %698 = vmatprep.subr.bf16.mxu0 0
        %699 = vmatpush1.bf16.xpose.msra.mxu0 0
        %700 = vmatprep.subr.bf16.mxu0 0
        %701 = vmatpush1.bf16.xpose.msra.mxu0 0
        %702 = vmatprep.subr.bf16.mxu0 0
        %703 = vmatpush1.bf16.xpose.msra.mxu0 0
        %704 = vmatprep.subr.bf16.mxu0 0
        %705 = vmatpush1.bf16.xpose.msra.mxu0 0
        %706 = vmatprep.subr.bf16.mxu0 0
        %707 = vmatpush1.bf16.xpose.msra.mxu0 0
        %708 = vmatprep.subr.bf16.mxu0 0
        %709 = vmatpush1.bf16.xpose.msra.mxu0 0
        %710 = vmatprep.subr.bf16.mxu0 0
        %711 = vmatpush1.bf16.xpose.msra.mxu0 0
        %712 = vmatprep.subr.bf16.mxu0 0
        %713 = vmatpush1.bf16.xpose.msra.mxu0 0
        %714 = vmatprep.mubr.bf16.mxu0 0
        %715 = vmatmul.mubr.bf16.gmra.mrb[0].mxu0 %v677
        %v716 = vpop.f32.mrb[0].mxu0
        %v717 = vadd.f32 0.0, %v716
        %v718 = vpop.f32.mrb[0].mxu0
        %v719 = vpop.f32.mrb[0].mxu0
        %v720 = vpop.f32.mrb[0].mxu0
        %721 = vdwg.mxu0
        %v722 = vmul.f32 %v717, 0.17677669
        %v723 = vadd.f32 %v722, %v391
        %vm724 = vcmask 64512
        %v725 = vsel %vm724, %v723, -inf
        %726 = vmax.xlane.f32.xlu0 %v725
        %v727 = vpop.xlane.xlu0 %726
        %v728 = vsub.f32 %v723, %v727
        %v729 = vmul.f32 %v728, 1.442695
        %v730 = vpow.pop %v729
        %v731 = vsel %vm724, %v730, 0.0
        %732 = vadd.xlane.f32.xlu0 %v731
        %v733 = vpop.xlane.xlu0 %732
        %v734 = vrcp.pop %v733
        %v735 = vmul.f32 %v730, %v734
        %v736 = vpack.c.bf16 %v735, %v735
        %v738 = vsel %vm724, %v736, 0
        %vm740 = vcmask 1043456
        %v742 = vsel %vm740, %v674, 0
        %744 = vmatprep.subr.bf16.mxu0 0
        %745 = vmatpush1.bf16.msra.mxu0 %v742
        %746 = vmatprep.subr.bf16.mxu0 0
        %747 = vmatpush1.bf16.msra.mxu0 0
        %748 = vmatprep.subr.bf16.mxu0 0
        %749 = vmatpush1.bf16.msra.mxu0 0
        %750 = vmatprep.subr.bf16.mxu0 0
        %751 = vmatpush1.bf16.msra.mxu0 0
        %752 = vmatprep.subr.bf16.mxu0 0
        %753 = vmatpush1.bf16.msra.mxu0 0
        %754 = vmatprep.subr.bf16.mxu0 0
        %755 = vmatpush1.bf16.msra.mxu0 0
        %756 = vmatprep.subr.bf16.mxu0 0
        %757 = vmatpush1.bf16.msra.mxu0 0
        %758 = vmatprep.subr.bf16.mxu0 0
        %759 = vmatpush1.bf16.msra.mxu0 0
        %760 = vmatprep.subr.bf16.mxu0 0
        %761 = vmatpush1.bf16.msra.mxu0 0
        %762 = vmatprep.subr.bf16.mxu0 0
        %763 = vmatpush1.bf16.msra.mxu0 0
        %764 = vmatprep.subr.bf16.mxu0 0
        %765 = vmatpush1.bf16.msra.mxu0 0
        %766 = vmatprep.subr.bf16.mxu0 0
        %767 = vmatpush1.bf16.msra.mxu0 0
        %768 = vmatprep.subr.bf16.mxu0 0
        %769 = vmatpush1.bf16.msra.mxu0 0
        %770 = vmatprep.subr.bf16.mxu0 0
        %771 = vmatpush1.bf16.msra.mxu0 0
        %772 = vmatprep.subr.bf16.mxu0 0
        %773 = vmatpush1.bf16.msra.mxu0 0
        %774 = vmatprep.subr.bf16.mxu0 0
        %775 = vmatpush1.bf16.msra.mxu0 0
        %776 = vmatprep.mubr.bf16.mxu0 0
        %777 = vmatmul.mubr.bf16.gmra.mrb[0].mxu0 %v738
        %v778 = vpop.f32.mrb[0].mxu0
        %v779 = vadd.f32 0.0, %v778
        %v780 = vpop.f32.mrb[0].mxu0
        %v781 = vpop.f32.mrb[0].mxu0
        %v782 = vpop.f32.mrb[0].mxu0
        %783 = vdwg.mxu0
        %785 = vrot.lane.b32.xlu0 %v672, 96
        %v786 = vpop.permute.xlu0 %785
        %788 = vrot.lane.b32.xlu0 %v673, 96
        %v789 = vpop.permute.xlu0 %788
        %v791 = vsel %vm675, %v786, 0
        %v794 = vsel %vm675, %v789, 0
        %796 = vmatprep.subr.bf16.mxu0 0
        %797 = vmatpush1.bf16.xpose.msra.mxu0 %v794
        %798 = vmatprep.subr.bf16.mxu0 0
        %799 = vmatpush1.bf16.xpose.msra.mxu0 0
        %800 = vmatprep.subr.bf16.mxu0 0
        %801 = vmatpush1.bf16.xpose.msra.mxu0 0
        %802 = vmatprep.subr.bf16.mxu0 0
        %803 = vmatpush1.bf16.xpose.msra.mxu0 0
        %804 = vmatprep.subr.bf16.mxu0 0
        %805 = vmatpush1.bf16.xpose.msra.mxu0 0
        %806 = vmatprep.subr.bf16.mxu0 0
        %807 = vmatpush1.bf16.xpose.msra.mxu0 0
        %808 = vmatprep.subr.bf16.mxu0 0
        %809 = vmatpush1.bf16.xpose.msra.mxu0 0
        %810 = vmatprep.subr.bf16.mxu0 0
        %811 = vmatpush1.bf16.xpose.msra.mxu0 0
        %812 = vmatprep.subr.bf16.mxu0 0
        %813 = vmatpush1.bf16.xpose.msra.mxu0 0
        %814 = vmatprep.subr.bf16.mxu0 0
        %815 = vmatpush1.bf16.xpose.msra.mxu0 0
        %816 = vmatprep.subr.bf16.mxu0 0
        %817 = vmatpush1.bf16.xpose.msra.mxu0 0
        %818 = vmatprep.subr.bf16.mxu0 0
        %819 = vmatpush1.bf16.xpose.msra.mxu0 0
        %820 = vmatprep.subr.bf16.mxu0 0
        %821 = vmatpush1.bf16.xpose.msra.mxu0 0
        %822 = vmatprep.subr.bf16.mxu0 0
        %823 = vmatpush1.bf16.xpose.msra.mxu0 0
        %824 = vmatprep.subr.bf16.mxu0 0
        %825 = vmatpush1.bf16.xpose.msra.mxu0 0
        %826 = vmatprep.subr.bf16.mxu0 0
        %827 = vmatpush1.bf16.xpose.msra.mxu0 0
        %828 = vmatprep.mubr.bf16.mxu0 0
        %829 = vmatmul.mubr.bf16.gmra.mrb[0].mxu0 %v791
        %v830 = vpop.f32.mrb[0].mxu0
        %v831 = vadd.f32 0.0, %v830
        %v832 = vpop.f32.mrb[0].mxu0
        %v833 = vpop.f32.mrb[0].mxu0
        %v834 = vpop.f32.mrb[0].mxu0
        %835 = vdwg.mxu0
        %v836 = vmul.f32 %v831, 0.17677669
        %v837 = vadd.f32 %v836, %v391
        %v838 = vsel %vm724, %v837, -inf
        %839 = vmax.xlane.f32.xlu0 %v838
        %v840 = vpop.xlane.xlu0 %839
        %v841 = vsub.f32 %v837, %v840
        %v842 = vmul.f32 %v841, 1.442695
        %v843 = vpow.pop %v842
        %v844 = vsel %vm724, %v843, 0.0
        %845 = vadd.xlane.f32.xlu0 %v844
        %v846 = vpop.xlane.xlu0 %845
        %v847 = vrcp.pop %v846
        %v848 = vmul.f32 %v843, %v847
        %v849 = vpack.c.bf16 %v848, %v848
        %851 = vrot.lane.b32.xlu0 %v674, 96
        %v852 = vpop.permute.xlu0 %851
        %v854 = vsel %vm724, %v849, 0
        %v857 = vsel %vm740, %v852, 0
        %859 = vmatprep.subr.bf16.mxu0 0
        %860 = vmatpush1.bf16.msra.mxu0 %v857
        %861 = vmatprep.subr.bf16.mxu0 0
        %862 = vmatpush1.bf16.msra.mxu0 0
        %863 = vmatprep.subr.bf16.mxu0 0
        %864 = vmatpush1.bf16.msra.mxu0 0
        %865 = vmatprep.subr.bf16.mxu0 0
        %866 = vmatpush1.bf16.msra.mxu0 0
        %867 = vmatprep.subr.bf16.mxu0 0
        %868 = vmatpush1.bf16.msra.mxu0 0
        %869 = vmatprep.subr.bf16.mxu0 0
        %870 = vmatpush1.bf16.msra.mxu0 0
        %871 = vmatprep.subr.bf16.mxu0 0
        %872 = vmatpush1.bf16.msra.mxu0 0
        %873 = vmatprep.subr.bf16.mxu0 0
        %874 = vmatpush1.bf16.msra.mxu0 0
        %875 = vmatprep.subr.bf16.mxu0 0
        %876 = vmatpush1.bf16.msra.mxu0 0
        %877 = vmatprep.subr.bf16.mxu0 0
        %878 = vmatpush1.bf16.msra.mxu0 0
        %879 = vmatprep.subr.bf16.mxu0 0
        %880 = vmatpush1.bf16.msra.mxu0 0
        %881 = vmatprep.subr.bf16.mxu0 0
        %882 = vmatpush1.bf16.msra.mxu0 0
        %883 = vmatprep.subr.bf16.mxu0 0
        %884 = vmatpush1.bf16.msra.mxu0 0
        %885 = vmatprep.subr.bf16.mxu0 0
        %886 = vmatpush1.bf16.msra.mxu0 0
        %887 = vmatprep.subr.bf16.mxu0 0
        %888 = vmatpush1.bf16.msra.mxu0 0
        %889 = vmatprep.subr.bf16.mxu0 0
        %890 = vmatpush1.bf16.msra.mxu0 0
        %891 = vmatprep.mubr.bf16.mxu0 0
        %892 = vmatmul.mubr.bf16.gmra.mrb[0].mxu0 %v854
        %v893 = vpop.f32.mrb[0].mxu0
        %v894 = vadd.f32 0.0, %v893
        %v895 = vpop.f32.mrb[0].mxu0
        %v896 = vpop.f32.mrb[0].mxu0
        %v897 = vpop.f32.mrb[0].mxu0
        %898 = vdwg.mxu0
        %899 = vrot.lane.b32.xlu0 %v672, 64
        %v900 = vpop.permute.xlu0 %899
        %901 = vrot.lane.b32.xlu0 %v673, 64
        %v902 = vpop.permute.xlu0 %901
        %v904 = vsel %vm675, %v900, 0
        %v907 = vsel %vm675, %v902, 0
        %909 = vmatprep.subr.bf16.mxu0 0
        %910 = vmatpush1.bf16.xpose.msra.mxu0 %v907
        %911 = vmatprep.subr.bf16.mxu0 0
        %912 = vmatpush1.bf16.xpose.msra.mxu0 0
        %913 = vmatprep.subr.bf16.mxu0 0
        %914 = vmatpush1.bf16.xpose.msra.mxu0 0
        %915 = vmatprep.subr.bf16.mxu0 0
        %916 = vmatpush1.bf16.xpose.msra.mxu0 0
        %917 = vmatprep.subr.bf16.mxu0 0
        %918 = vmatpush1.bf16.xpose.msra.mxu0 0
        %919 = vmatprep.subr.bf16.mxu0 0
        %920 = vmatpush1.bf16.xpose.msra.mxu0 0
        %921 = vmatprep.subr.bf16.mxu0 0
        %922 = vmatpush1.bf16.xpose.msra.mxu0 0
        %923 = vmatprep.subr.bf16.mxu0 0
        %924 = vmatpush1.bf16.xpose.msra.mxu0 0
        %925 = vmatprep.subr.bf16.mxu0 0
        %926 = vmatpush1.bf16.xpose.msra.mxu0 0
        %927 = vmatprep.subr.bf16.mxu0 0
        %928 = vmatpush1.bf16.xpose.msra.mxu0 0
        %929 = vmatprep.subr.bf16.mxu0 0
        %930 = vmatpush1.bf16.xpose.msra.mxu0 0
        %931 = vmatprep.subr.bf16.mxu0 0
        %932 = vmatpush1.bf16.xpose.msra.mxu0 0
        %933 = vmatprep.subr.bf16.mxu0 0
        %934 = vmatpush1.bf16.xpose.msra.mxu0 0
        %935 = vmatprep.subr.bf16.mxu0 0
        %936 = vmatpush1.bf16.xpose.msra.mxu0 0
        %937 = vmatprep.subr.bf16.mxu0 0
        %938 = vmatpush1.bf16.xpose.msra.mxu0 0
        %939 = vmatprep.subr.bf16.mxu0 0
        %940 = vmatpush1.bf16.xpose.msra.mxu0 0
        %941 = vmatprep.mubr.bf16.mxu0 0
        %942 = vmatmul.mubr.bf16.gmra.mrb[0].mxu0 %v904
        %v943 = vpop.f32.mrb[0].mxu0
        %v944 = vadd.f32 0.0, %v943
        %v945 = vpop.f32.mrb[0].mxu0
        %v946 = vpop.f32.mrb[0].mxu0
        %v947 = vpop.f32.mrb[0].mxu0
        %948 = vdwg.mxu0
        %v949 = vmul.f32 %v944, 0.17677669
        %v950 = vadd.f32 %v949, %v391
        %v951 = vsel %vm724, %v950, -inf
        %952 = vmax.xlane.f32.xlu0 %v951
        %v953 = vpop.xlane.xlu0 %952
        %v954 = vsub.f32 %v950, %v953
        %v955 = vmul.f32 %v954, 1.442695
        %v956 = vpow.pop %v955
        %v957 = vsel %vm724, %v956, 0.0
        %958 = vadd.xlane.f32.xlu0 %v957
        %v959 = vpop.xlane.xlu0 %958
        %v960 = vrcp.pop %v959
        %v961 = vmul.f32 %v956, %v960
        %v962 = vpack.c.bf16 %v961, %v961
        %963 = vrot.lane.b32.xlu0 %v674, 64
        %v964 = vpop.permute.xlu0 %963
        %v966 = vsel %vm724, %v962, 0
        %v969 = vsel %vm740, %v964, 0
        %971 = vmatprep.subr.bf16.mxu0 0
        %972 = vmatpush1.bf16.msra.mxu0 %v969
        %973 = vmatprep.subr.bf16.mxu0 0
        %974 = vmatpush1.bf16.msra.mxu0 0
        %975 = vmatprep.subr.bf16.mxu0 0
        %976 = vmatpush1.bf16.msra.mxu0 0
        %977 = vmatprep.subr.bf16.mxu0 0
        %978 = vmatpush1.bf16.msra.mxu0 0
        %979 = vmatprep.subr.bf16.mxu0 0
        %980 = vmatpush1.bf16.msra.mxu0 0
        %981 = vmatprep.subr.bf16.mxu0 0
        %982 = vmatpush1.bf16.msra.mxu0 0
        %983 = vmatprep.subr.bf16.mxu0 0
        %984 = vmatpush1.bf16.msra.mxu0 0
        %985 = vmatprep.subr.bf16.mxu0 0
        %986 = vmatpush1.bf16.msra.mxu0 0
        %987 = vmatprep.subr.bf16.mxu0 0
        %988 = vmatpush1.bf16.msra.mxu0 0
        %989 = vmatprep.subr.bf16.mxu0 0
        %990 = vmatpush1.bf16.msra.mxu0 0
        %991 = vmatprep.subr.bf16.mxu0 0
        %992 = vmatpush1.bf16.msra.mxu0 0
        %993 = vmatprep.subr.bf16.mxu0 0
        %994 = vmatpush1.bf16.msra.mxu0 0
        %995 = vmatprep.subr.bf16.mxu0 0
        %996 = vmatpush1.bf16.msra.mxu0 0
        %997 = vmatprep.subr.bf16.mxu0 0
        %998 = vmatpush1.bf16.msra.mxu0 0
        %999 = vmatprep.subr.bf16.mxu0 0
        %1000 = vmatpush1.bf16.msra.mxu0 0
        %1001 = vmatprep.subr.bf16.mxu0 0
        %1002 = vmatpush1.bf16.msra.mxu0 0
        %1003 = vmatprep.mubr.bf16.mxu0 0
        %1004 = vmatmul.mubr.bf16.gmra.mrb[0].mxu0 %v966
        %v1005 = vpop.f32.mrb[0].mxu0
        %v1006 = vadd.f32 0.0, %v1005
        %v1007 = vpop.f32.mrb[0].mxu0
        %v1008 = vpop.f32.mrb[0].mxu0
        %v1009 = vpop.f32.mrb[0].mxu0
        %1010 = vdwg.mxu0
        %1011 = vrot.lane.b32.xlu0 %v672, 32
        %v1012 = vpop.permute.xlu0 %1011
        %1013 = vrot.lane.b32.xlu0 %v673, 32
        %v1014 = vpop.permute.xlu0 %1013
        %v1016 = vsel %vm675, %v1012, 0
        %v1019 = vsel %vm675, %v1014, 0
        %1021 = vmatprep.subr.bf16.mxu0 0
        %1022 = vmatpush1.bf16.xpose.msra.mxu0 %v1019
        %1023 = vmatprep.subr.bf16.mxu0 0
        %1024 = vmatpush1.bf16.xpose.msra.mxu0 0
        %1025 = vmatprep.subr.bf16.mxu0 0
        %1026 = vmatpush1.bf16.xpose.msra.mxu0 0
        %1027 = vmatprep.subr.bf16.mxu0 0
        %1028 = vmatpush1.bf16.xpose.msra.mxu0 0
        %1029 = vmatprep.subr.bf16.mxu0 0
        %1030 = vmatpush1.bf16.xpose.msra.mxu0 0
        %1031 = vmatprep.subr.bf16.mxu0 0
        %1032 = vmatpush1.bf16.xpose.msra.mxu0 0
        %1033 = vmatprep.subr.bf16.mxu0 0
        %1034 = vmatpush1.bf16.xpose.msra.mxu0 0
        %1035 = vmatprep.subr.bf16.mxu0 0
        %1036 = vmatpush1.bf16.xpose.msra.mxu0 0
        %1037 = vmatprep.subr.bf16.mxu0 0
        %1038 = vmatpush1.bf16.xpose.msra.mxu0 0
        %1039 = vmatprep.subr.bf16.mxu0 0
        %1040 = vmatpush1.bf16.xpose.msra.mxu0 0
        %1041 = vmatprep.subr.bf16.mxu0 0
        %1042 = vmatpush1.bf16.xpose.msra.mxu0 0
        %1043 = vmatprep.subr.bf16.mxu0 0
        %1044 = vmatpush1.bf16.xpose.msra.mxu0 0
        %1045 = vmatprep.subr.bf16.mxu0 0
        %1046 = vmatpush1.bf16.xpose.msra.mxu0 0
        %1047 = vmatprep.subr.bf16.mxu0 0
        %1048 = vmatpush1.bf16.xpose.msra.mxu0 0
        %1049 = vmatprep.subr.bf16.mxu0 0
        %1050 = vmatpush1.bf16.xpose.msra.mxu0 0
        %1051 = vmatprep.subr.bf16.mxu0 0
        %1052 = vmatpush1.bf16.xpose.msra.mxu0 0
        %1053 = vmatprep.mubr.bf16.mxu0 0
        %1054 = vmatmul.mubr.bf16.gmra.mrb[0].mxu0 %v1016
        %v1055 = vpop.f32.mrb[0].mxu0
        %v1056 = vadd.f32 0.0, %v1055
        %v1057 = vpop.f32.mrb[0].mxu0
        %v1058 = vpop.f32.mrb[0].mxu0
        %v1059 = vpop.f32.mrb[0].mxu0
        %1060 = vdwg.mxu0
        %v1061 = vmul.f32 %v1056, 0.17677669
        %v1062 = vadd.f32 %v1061, %v391
        %v1063 = vsel %vm724, %v1062, -inf
        %1064 = vmax.xlane.f32.xlu0 %v1063
        %v1065 = vpop.xlane.xlu0 %1064
        %v1066 = vsub.f32 %v1062, %v1065
        %v1067 = vmul.f32 %v1066, 1.442695
        %v1068 = vpow.pop %v1067
        %v1069 = vsel %vm724, %v1068, 0.0
        %1070 = vadd.xlane.f32.xlu0 %v1069
        %v1071 = vpop.xlane.xlu0 %1070
        %v1072 = vrcp.pop %v1071
        %v1073 = vmul.f32 %v1068, %v1072
        %v1074 = vpack.c.bf16 %v1073, %v1073
        %1075 = vrot.lane.b32.xlu0 %v674, 32
        %v1076 = vpop.permute.xlu0 %1075
        %v1078 = vsel %vm724, %v1074, 0
        %v1081 = vsel %vm740, %v1076, 0
        %1083 = vmatprep.subr.bf16.mxu0 0
        %1084 = vmatpush1.bf16.msra.mxu0 %v1081
        %1085 = vmatprep.subr.bf16.mxu0 0
        %1086 = vmatpush1.bf16.msra.mxu0 0
        %1087 = vmatprep.subr.bf16.mxu0 0
        %1088 = vmatpush1.bf16.msra.mxu0 0
        %1089 = vmatprep.subr.bf16.mxu0 0
        %1090 = vmatpush1.bf16.msra.mxu0 0
        %1091 = vmatprep.subr.bf16.mxu0 0
        %1092 = vmatpush1.bf16.msra.mxu0 0
        %1093 = vmatprep.subr.bf16.mxu0 0
        %1094 = vmatpush1.bf16.msra.mxu0 0
        %1095 = vmatprep.subr.bf16.mxu0 0
        %1096 = vmatpush1.bf16.msra.mxu0 0
        %1097 = vmatprep.subr.bf16.mxu0 0
        %1098 = vmatpush1.bf16.msra.mxu0 0
        %1099 = vmatprep.subr.bf16.mxu0 0
        %1100 = vmatpush1.bf16.msra.mxu0 0
        %1101 = vmatprep.subr.bf16.mxu0 0
        %1102 = vmatpush1.bf16.msra.mxu0 0
        %1103 = vmatprep.subr.bf16.mxu0 0
        %1104 = vmatpush1.bf16.msra.mxu0 0
        %1105 = vmatprep.subr.bf16.mxu0 0
        %1106 = vmatpush1.bf16.msra.mxu0 0
        %1107 = vmatprep.subr.bf16.mxu0 0
        %1108 = vmatpush1.bf16.msra.mxu0 0
        %1109 = vmatprep.subr.bf16.mxu0 0
        %1110 = vmatpush1.bf16.msra.mxu0 0
        %1111 = vmatprep.subr.bf16.mxu0 0
        %1112 = vmatpush1.bf16.msra.mxu0 0
        %1113 = vmatprep.subr.bf16.mxu0 0
        %1114 = vmatpush1.bf16.msra.mxu0 0
        %1115 = vmatprep.mubr.bf16.mxu0 0
        %1116 = vmatmul.mubr.bf16.gmra.mrb[0].mxu0 %v1078
        %v1117 = vpop.f32.mrb[0].mxu0
        %v1118 = vadd.f32 0.0, %v1117
        %v1119 = vpop.f32.mrb[0].mxu0
        %v1120 = vpop.f32.mrb[0].mxu0
        %v1121 = vpop.f32.mrb[0].mxu0
        %1122 = vdwg.mxu0
        %1124 = vrot.lane.b32.xlu0 %v894, 32
        %v1125 = vpop.permute.xlu0 %1124
        %1128 = vrot.lane.b32.xlu0 %v1006, 64
        %v1129 = vpop.permute.xlu0 %1128
        %1132 = vrot.lane.b32.xlu0 %v1118, 96
        %v1133 = vpop.permute.xlu0 %1132
        %v1135 = vsel %vm675, %v779, %v1125
        %vm1136 = vcmask 523264
        %v1137 = vsel %vm1136, %v1135, %v1129
        %vm1138 = vcmask 785408
        %v1139 = vsel %vm1138, %v1137, %v1133
        %v1140 = vpack.c.bf16 %v1139, %v1139
        %v1141 = vld [vmem:[%s4] sm:$0xf]
        %v1142 = vld [vmem:[%s4 + $0x4] sm:$0xf]
        %v1143 = vld [vmem:[%s4 + $0x8] sm:$0xf]
        %v1144 = vld [vmem:[%s4 + $0xc] sm:$0xf]
        %v1145 = vld [vmem:[%s4 + $0x10] sm:$0xf]
        %v1146 = vld [vmem:[%s4 + $0x14] sm:$0xf]
        %v1147 = vld [vmem:[%s4 + $0x18] sm:$0xf]
        %v1148 = vld [vmem:[%s4 + $0x1c] sm:$0xf]
        %v1149 = vld [vmem:[%s4 + $0x20] sm:$0xf]
        %v1150 = vld [vmem:[%s4 + $0x24] sm:$0xf]
        %v1151 = vld [vmem:[%s4 + $0x28] sm:$0xf]
        %v1152 = vld [vmem:[%s4 + $0x2c] sm:$0xf]
        %v1153 = vld [vmem:[%s4 + $0x30] sm:$0xf]
        %v1154 = vld [vmem:[%s4 + $0x34] sm:$0xf]
        %v1155 = vld [vmem:[%s4 + $0x38] sm:$0xf]
        %v1156 = vld [vmem:[%s4 + $0x3c] sm:$0xf]
        %v1157 = vlaneseq
        %v1158 = vshrl.u32 %v1157, 7
        %v1159 = vsub.s32 3, %v1158
        %v1160 = vrot.slane %v392, %v1159
        %v1177 = vunpack.c.l.b16 %v1141
        %v1178 = vunpack.c.l.b16 %v1142
        %v1179 = vunpack.c.l.b16 %v1143
        %v1180 = vunpack.c.l.b16 %v1144
        %v1181 = vunpack.c.l.b16 %v1145
        %v1182 = vunpack.c.l.b16 %v1146
        %v1183 = vunpack.c.l.b16 %v1147
        %v1184 = vunpack.c.l.b16 %v1148
        %v1185 = vunpack.c.l.b16 %v1149
        %v1186 = vunpack.c.l.b16 %v1150
        %v1187 = vunpack.c.l.b16 %v1151
        %v1188 = vunpack.c.l.b16 %v1152
        %v1189 = vunpack.c.l.b16 %v1153
        %v1190 = vunpack.c.l.b16 %v1154
        %v1191 = vunpack.c.l.b16 %v1155
        %v1192 = vunpack.c.l.b16 %v1156
        %v1193 = vpack.c.b16 %v1178, %v1177
        %v1194 = vpack.c.b16 %v1180, %v1179
        %v1195 = vpack.c.b16 %v1182, %v1181
        %v1196 = vpack.c.b16 %v1184, %v1183
        %v1197 = vpack.c.b16 %v1186, %v1185
        %v1198 = vpack.c.b16 %v1188, %v1187
        %v1199 = vpack.c.b16 %v1190, %v1189
        %v1200 = vpack.c.b16 %v1192, %v1191
        %1209 = vmatprep.subr.bf16.mxu0 0
        %1210 = vmatpush1.bf16.msra.mxu0 %v1193
        %1211 = vmatprep.subr.bf16.mxu0 0
        %1212 = vmatpush1.bf16.msra.mxu0 %v1194
        %1213 = vmatprep.subr.bf16.mxu0 0
        %1214 = vmatpush1.bf16.msra.mxu0 %v1195
        %1215 = vmatprep.subr.bf16.mxu0 0
        %1216 = vmatpush1.bf16.msra.mxu0 %v1196
        %1217 = vmatprep.subr.bf16.mxu0 0
        %1218 = vmatpush1.bf16.msra.mxu0 %v1197
        %1219 = vmatprep.subr.bf16.mxu0 0
        %1220 = vmatpush1.bf16.msra.mxu0 %v1198
        %1221 = vmatprep.subr.bf16.mxu0 0
        %1222 = vmatpush1.bf16.msra.mxu0 %v1199
        %1223 = vmatprep.subr.bf16.mxu0 0
        %1224 = vmatpush1.bf16.msra.mxu0 %v1200
        %1225 = vmatprep.subr.bf16.mxu0 0
        %1226 = vmatpush1.bf16.msra.mxu0 0
        %1227 = vmatprep.subr.bf16.mxu0 0
        %1228 = vmatpush1.bf16.msra.mxu0 0
        %1229 = vmatprep.subr.bf16.mxu0 0
        %1230 = vmatpush1.bf16.msra.mxu0 0
        %1231 = vmatprep.subr.bf16.mxu0 0
        %1232 = vmatpush1.bf16.msra.mxu0 0
        %1233 = vmatprep.subr.bf16.mxu0 0
        %1234 = vmatpush1.bf16.msra.mxu0 0
        %1235 = vmatprep.subr.bf16.mxu0 0
        %1236 = vmatpush1.bf16.msra.mxu0 0
        %1237 = vmatprep.subr.bf16.mxu0 0
        %1238 = vmatpush1.bf16.msra.mxu0 0
        %1239 = vmatprep.subr.bf16.mxu0 0
        %1240 = vmatpush1.bf16.msra.mxu0 0
        %1241 = vmatprep.mubr.bf16.mxu0 0
        %1242 = vmatmul.mubr.bf16.gmra.mrb[0].mxu0 %v1140
        %v1243 = vpop.f32.mrb[0].mxu0
        %v1244 = vadd.f32 %v1160, %v1243
        %v1245 = vpop.f32.mrb[0].mxu0
        %v1246 = vpop.f32.mrb[0].mxu0
        %v1247 = vpop.f32.mrb[0].mxu0
        %1248 = vdwg.mxu0
        %v1249 = vadd.f32 %v390, %v1244
        %1250 = vadd.xlane.f32.xlu0 %v1249
        %v1251 = vpop.xlane.xlu0 %1250
        %v1252 = vmul.f32 %v1251, %v398
        %v1253 = vsub.f32 %v1249, %v1252
        %v1254 = vmul.f32 %v1253, %v1253
        %1255 = vadd.xlane.f32.xlu0 %v1254
        %v1256 = vpop.xlane.xlu0 %1255
        %v1257 = vmul.f32 %v1256, %v398
        %v1258 = vadd.f32 %v1257, 1e-05
        %v1259 = vrsqrt.pop %v1258
        %v1260 = vmul.f32 %v1253, %v1259
        %v1261 = vlaneseq
        %v1262 = vshrl.u32 %v1261, 7
        %v1263 = vsub.s32 4, %v1262
        %v1264 = vrot.slane %v392, %v1263
        %v1265 = vmul.f32 %v1260, %v1264
        %v1266 = vlaneseq
        %v1267 = vshrl.u32 %v1266, 7
        %v1268 = vsub.s32 5, %v1267
        %v1269 = vrot.slane %v392, %v1268
        %v1270 = vadd.f32 %v1265, %v1269
        %v1271 = vpack.c.bf16 %v1270, %v1270
        %v1272 = vld [vmem:[#allocation5] sm:$0xff]
        %v1273 = vld [vmem:[#allocation5 + $0x8] sm:$0xff]
        %v1274 = vld [vmem:[#allocation5 + $0x10] sm:$0xff]
        %v1275 = vld [vmem:[#allocation5 + $0x18] sm:$0xff]
        %v1276 = vld [vmem:[#allocation5 + $0x20] sm:$0xff]
        %v1277 = vld [vmem:[#allocation5 + $0x28] sm:$0xff]
        %v1278 = vld [vmem:[#allocation5 + $0x30] sm:$0xff]
        %v1279 = vld [vmem:[#allocation5 + $0x38] sm:$0xff]
        %v1280 = vld [vmem:[#allocation5 + $0x40] sm:$0xff]
        %v1281 = vld [vmem:[#allocation5 + $0x48] sm:$0xff]
        %v1282 = vld [vmem:[#allocation5 + $0x50] sm:$0xff]
        %v1283 = vld [vmem:[#allocation5 + $0x58] sm:$0xff]
        %v1284 = vld [vmem:[#allocation5 + $0x60] sm:$0xff]
        %v1285 = vld [vmem:[#allocation5 + $0x68] sm:$0xff]
        %v1286 = vld [vmem:[#allocation5 + $0x70] sm:$0xff]
        %v1287 = vld [vmem:[#allocation5 + $0x78] sm:$0xff]
        %v1288 = vld [vmem:[#allocation5 + $0x80] sm:$0xff]
        %v1289 = vld [vmem:[#allocation5 + $0x88] sm:$0xff]
        %v1290 = vld [vmem:[#allocation5 + $0x90] sm:$0xff]
        %v1291 = vld [vmem:[#allocation5 + $0x98] sm:$0xff]
        %v1292 = vld [vmem:[#allocation5 + $0xa0] sm:$0xff]
        %v1293 = vld [vmem:[#allocation5 + $0xa8] sm:$0xff]
        %v1294 = vld [vmem:[#allocation5 + $0xb0] sm:$0xff]
        %v1295 = vld [vmem:[#allocation5 + $0xb8] sm:$0xff]
        %v1296 = vld [vmem:[#allocation5 + $0xc0] sm:$0xff]
        %v1297 = vld [vmem:[#allocation5 + $0xc8] sm:$0xff]
        %v1298 = vld [vmem:[#allocation5 + $0xd0] sm:$0xff]
        %v1299 = vld [vmem:[#allocation5 + $0xd8] sm:$0xff]
        %v1300 = vld [vmem:[#allocation5 + $0xe0] sm:$0xff]
        %v1301 = vld [vmem:[#allocation5 + $0xe8] sm:$0xff]
        %v1302 = vld [vmem:[#allocation5 + $0xf0] sm:$0xff]
        %v1303 = vld [vmem:[#allocation5 + $0xf8] sm:$0xff]
        %v1304 = vlaneseq
        %v1305 = vshrl.u32 %v1304, 7
        %v1306 = vsub.s32 6, %v1305
        %v1307 = vrot.slane %v392, %v1306
        %v1308 = vlaneseq
        %v1309 = vshrl.u32 %v1308, 7
        %v1310 = vsub.s32 6, %v1309
        %v1311 = vrot.slane %v393, %v1310
        %v1312 = vlaneseq
        %v1313 = vshrl.u32 %v1312, 7
        %v1314 = vsub.s32 6, %v1313
        %v1315 = vrot.slane %v394, %v1314
        %v1316 = vlaneseq
        %v1317 = vshrl.u32 %v1316, 7
        %v1318 = vsub.s32 6, %v1317
        %v1319 = vrot.slane %v395, %v1318
        %v1352 = vunpack.c.l.b16 %v1272
        %v1353 = vunpack.c.h.b16 %v1272
        %v1354 = vunpack.c.l.b16 %v1273
        %v1355 = vunpack.c.h.b16 %v1273
        %v1356 = vunpack.c.l.b16 %v1274
        %v1357 = vunpack.c.h.b16 %v1274
        %v1358 = vunpack.c.l.b16 %v1275
        %v1359 = vunpack.c.h.b16 %v1275
        %v1360 = vunpack.c.l.b16 %v1276
        %v1361 = vunpack.c.h.b16 %v1276
        %v1362 = vunpack.c.l.b16 %v1277
        %v1363 = vunpack.c.h.b16 %v1277
        %v1364 = vunpack.c.l.b16 %v1278
        %v1365 = vunpack.c.h.b16 %v1278
        %v1366 = vunpack.c.l.b16 %v1279
        %v1367 = vunpack.c.h.b16 %v1279
        %v1368 = vunpack.c.l.b16 %v1280
        %v1369 = vunpack.c.h.b16 %v1280
        %v1370 = vunpack.c.l.b16 %v1281
        %v1371 = vunpack.c.h.b16 %v1281
        %v1372 = vunpack.c.l.b16 %v1282
        %v1373 = vunpack.c.h.b16 %v1282
        %v1374 = vunpack.c.l.b16 %v1283
        %v1375 = vunpack.c.h.b16 %v1283
        %v1376 = vunpack.c.l.b16 %v1284
        %v1377 = vunpack.c.h.b16 %v1284
        %v1378 = vunpack.c.l.b16 %v1285
        %v1379 = vunpack.c.h.b16 %v1285
        %v1380 = vunpack.c.l.b16 %v1286
        %v1381 = vunpack.c.h.b16 %v1286
        %v1382 = vunpack.c.l.b16 %v1287
        %v1383 = vunpack.c.h.b16 %v1287
        %v1384 = vunpack.c.l.b16 %v1288
        %v1385 = vunpack.c.h.b16 %v1288
        %v1386 = vunpack.c.l.b16 %v1289
        %v1387 = vunpack.c.h.b16 %v1289
        %v1388 = vunpack.c.l.b16 %v1290
        %v1389 = vunpack.c.h.b16 %v1290
        %v1390 = vunpack.c.l.b16 %v1291
        %v1391 = vunpack.c.h.b16 %v1291
        %v1392 = vunpack.c.l.b16 %v1292
        %v1393 = vunpack.c.h.b16 %v1292
        %v1394 = vunpack.c.l.b16 %v1293
        %v1395 = vunpack.c.h.b16 %v1293
        %v1396 = vunpack.c.l.b16 %v1294
        %v1397 = vunpack.c.h.b16 %v1294
        %v1398 = vunpack.c.l.b16 %v1295
        %v1399 = vunpack.c.h.b16 %v1295
        %v1400 = vunpack.c.l.b16 %v1296
        %v1401 = vunpack.c.h.b16 %v1296
        %v1402 = vunpack.c.l.b16 %v1297
        %v1403 = vunpack.c.h.b16 %v1297
        %v1404 = vunpack.c.l.b16 %v1298
        %v1405 = vunpack.c.h.b16 %v1298
        %v1406 = vunpack.c.l.b16 %v1299
        %v1407 = vunpack.c.h.b16 %v1299
        %v1408 = vunpack.c.l.b16 %v1300
        %v1409 = vunpack.c.h.b16 %v1300
        %v1410 = vunpack.c.l.b16 %v1301
        %v1411 = vunpack.c.h.b16 %v1301
        %v1412 = vunpack.c.l.b16 %v1302
        %v1413 = vunpack.c.h.b16 %v1302
        %v1414 = vunpack.c.l.b16 %v1303
        %v1415 = vunpack.c.h.b16 %v1303
        %v1416 = vpack.c.b16 %v1356, %v1352
        %v1417 = vpack.c.b16 %v1357, %v1353
        %v1418 = vpack.c.b16 %v1358, %v1354
        %v1419 = vpack.c.b16 %v1359, %v1355
        %v1420 = vpack.c.b16 %v1364, %v1360
        %v1421 = vpack.c.b16 %v1365, %v1361
        %v1422 = vpack.c.b16 %v1366, %v1362
        %v1423 = vpack.c.b16 %v1367, %v1363
        %v1424 = vpack.c.b16 %v1372, %v1368
        %v1425 = vpack.c.b16 %v1373, %v1369
        %v1426 = vpack.c.b16 %v1374, %v1370
        %v1427 = vpack.c.b16 %v1375, %v1371
        %v1428 = vpack.c.b16 %v1380, %v1376
        %v1429 = vpack.c.b16 %v1381, %v1377
        %v1430 = vpack.c.b16 %v1382, %v1378
        %v1431 = vpack.c.b16 %v1383, %v1379
        %v1432 = vpack.c.b16 %v1388, %v1384
        %v1433 = vpack.c.b16 %v1389, %v1385
        %v1434 = vpack.c.b16 %v1390, %v1386
        %v1435 = vpack.c.b16 %v1391, %v1387
        %v1436 = vpack.c.b16 %v1396, %v1392
        %v1437 = vpack.c.b16 %v1397, %v1393
        %v1438 = vpack.c.b16 %v1398, %v1394
        %v1439 = vpack.c.b16 %v1399, %v1395
        %v1440 = vpack.c.b16 %v1404, %v1400
        %v1441 = vpack.c.b16 %v1405, %v1401
        %v1442 = vpack.c.b16 %v1406, %v1402
        %v1443 = vpack.c.b16 %v1407, %v1403
        %v1444 = vpack.c.b16 %v1412, %v1408
        %v1445 = vpack.c.b16 %v1413, %v1409
        %v1446 = vpack.c.b16 %v1414, %v1410
        %v1447 = vpack.c.b16 %v1415, %v1411
        %1480 = vmatprep.subr.bf16.mxu0 %v1417
        %1481 = vmatpush1.bf16.msra.mxu0 %v1416
        %1482 = vmatprep.subr.bf16.mxu0 %v1421
        %1483 = vmatpush1.bf16.msra.mxu0 %v1420
        %1484 = vmatprep.subr.bf16.mxu0 %v1425
        %1485 = vmatpush1.bf16.msra.mxu0 %v1424
        %1486 = vmatprep.subr.bf16.mxu0 %v1429
        %1487 = vmatpush1.bf16.msra.mxu0 %v1428
        %1488 = vmatprep.subr.bf16.mxu0 %v1433
        %1489 = vmatpush1.bf16.msra.mxu0 %v1432
        %1490 = vmatprep.subr.bf16.mxu0 %v1437
        %1491 = vmatpush1.bf16.msra.mxu0 %v1436
        %1492 = vmatprep.subr.bf16.mxu0 %v1441
        %1493 = vmatpush1.bf16.msra.mxu0 %v1440
        %1494 = vmatprep.subr.bf16.mxu0 %v1445
        %1495 = vmatpush1.bf16.msra.mxu0 %v1444
        %1496 = vmatprep.subr.bf16.mxu0 0
        %1497 = vmatpush1.bf16.msra.mxu0 0
        %1498 = vmatprep.subr.bf16.mxu0 0
        %1499 = vmatpush1.bf16.msra.mxu0 0
        %1500 = vmatprep.subr.bf16.mxu0 0
        %1501 = vmatpush1.bf16.msra.mxu0 0
        %1502 = vmatprep.subr.bf16.mxu0 0
        %1503 = vmatpush1.bf16.msra.mxu0 0
        %1504 = vmatprep.subr.bf16.mxu0 0
        %1505 = vmatpush1.bf16.msra.mxu0 0
        %1506 = vmatprep.subr.bf16.mxu0 0
        %1507 = vmatpush1.bf16.msra.mxu0 0
        %1508 = vmatprep.subr.bf16.mxu0 0
        %1509 = vmatpush1.bf16.msra.mxu0 0
        %1510 = vmatprep.subr.bf16.mxu0 0
        %1511 = vmatpush1.bf16.msra.mxu0 0
        %1512 = vmatprep.mubr.bf16.mxu0 0
        %1513 = vmatmul.mubr.bf16.gmra.mrb[0].mxu0 %v1271
        %v1514 = vpop.f32.mrb[0].mxu0
        %v1515 = vadd.f32 %v1307, %v1514
        %v1516 = vpop.f32.mrb[0].mxu0
        %v1517 = vadd.f32 %v1311, %v1516
        %v1518 = vpop.f32.mrb[0].mxu0
        %v1519 = vpop.f32.mrb[0].mxu0
        %1520 = vdwg.mxu0
        %1521 = vmatprep.subr.bf16.mxu0 %v1419
        %1522 = vmatpush1.bf16.msra.mxu0 %v1418
        %1523 = vmatprep.subr.bf16.mxu0 %v1423
        %1524 = vmatpush1.bf16.msra.mxu0 %v1422
        %1525 = vmatprep.subr.bf16.mxu0 %v1427
        %1526 = vmatpush1.bf16.msra.mxu0 %v1426
        %1527 = vmatprep.subr.bf16.mxu0 %v1431
        %1528 = vmatpush1.bf16.msra.mxu0 %v1430
        %1529 = vmatprep.subr.bf16.mxu0 %v1435
        %1530 = vmatpush1.bf16.msra.mxu0 %v1434
        %1531 = vmatprep.subr.bf16.mxu0 %v1439
        %1532 = vmatpush1.bf16.msra.mxu0 %v1438
        %1533 = vmatprep.subr.bf16.mxu0 %v1443
        %1534 = vmatpush1.bf16.msra.mxu0 %v1442
        %1535 = vmatprep.subr.bf16.mxu0 %v1447
        %1536 = vmatpush1.bf16.msra.mxu0 %v1446
        %1537 = vmatprep.subr.bf16.mxu0 0
        %1538 = vmatpush1.bf16.msra.mxu0 0
        %1539 = vmatprep.subr.bf16.mxu0 0
        %1540 = vmatpush1.bf16.msra.mxu0 0
        %1541 = vmatprep.subr.bf16.mxu0 0
        %1542 = vmatpush1.bf16.msra.mxu0 0
        %1543 = vmatprep.subr.bf16.mxu0 0
        %1544 = vmatpush1.bf16.msra.mxu0 0
        %1545 = vmatprep.subr.bf16.mxu0 0
        %1546 = vmatpush1.bf16.msra.mxu0 0
        %1547 = vmatprep.subr.bf16.mxu0 0
        %1548 = vmatpush1.bf16.msra.mxu0 0
        %1549 = vmatprep.subr.bf16.mxu0 0
        %1550 = vmatpush1.bf16.msra.mxu0 0
        %1551 = vmatprep.subr.bf16.mxu0 0
        %1552 = vmatpush1.bf16.msra.mxu0 0
        %1553 = vmatprep.mubr.bf16.mxu0 0
        %1554 = vmatmul.mubr.bf16.gmra.mrb[0].mxu0 %v1271
        %v1555 = vpop.f32.mrb[0].mxu0
        %v1556 = vadd.f32 %v1315, %v1555
        %v1557 = vpop.f32.mrb[0].mxu0
        %v1558 = vadd.f32 %v1319, %v1557
        %v1559 = vpop.f32.mrb[0].mxu0
        %v1560 = vpop.f32.mrb[0].mxu0
        %1561 = vdwg.mxu0
        %v1562 = vmul.f32 %v1515, 0.5
        %v1563 = vmul.f32 %v1517, 0.5
        %v1564 = vmul.f32 %v1556, 0.5
        %v1565 = vmul.f32 %v1558, 0.5
        %v1566 = vmul.f32 %v1515, 0.7978846
        %v1567 = vmul.f32 %v1517, 0.7978846
        %v1568 = vmul.f32 %v1556, 0.7978846
        %v1569 = vmul.f32 %v1558, 0.7978846
        %v1570 = vmul.f32 %v1515, 0.044715
        %v1571 = vmul.f32 %v1517, 0.044715
        %v1572 = vmul.f32 %v1556, 0.044715
        %v1573 = vmul.f32 %v1558, 0.044715
        %v1574 = vmul.f32 %v1570, %v1515
        %v1575 = vmul.f32 %v1571, %v1517
        %v1576 = vmul.f32 %v1572, %v1556
        %v1577 = vmul.f32 %v1573, %v1558
        %v1578 = vadd.f32 %v1574, 1.0
        %v1579 = vadd.f32 %v1575, 1.0
        %v1580 = vadd.f32 %v1576, 1.0
        %v1581 = vadd.f32 %v1577, 1.0
        %v1582 = vmul.f32 %v1566, %v1578
        %v1583 = vmul.f32 %v1567, %v1579
        %v1584 = vmul.f32 %v1568, %v1580
        %v1585 = vmul.f32 %v1569, %v1581
        %v1586 = vtanh.pop %v1582
        %v1587 = vtanh.pop %v1583
        %v1588 = vtanh.pop %v1584
        %v1589 = vtanh.pop %v1585
        %v1590 = vadd.f32 %v1586, 1.0
        %v1591 = vadd.f32 %v1587, 1.0
        %v1592 = vadd.f32 %v1588, 1.0
        %v1593 = vadd.f32 %v1589, 1.0
        %v1594 = vmul.f32 %v1562, %v1590
        %v1595 = vmul.f32 %v1563, %v1591
        %v1596 = vmul.f32 %v1564, %v1592
        %v1597 = vmul.f32 %v1565, %v1593
        %v1598 = vpack.c.bf16 %v1594, %v1594
        %v1599 = vpack.c.bf16 %v1595, %v1595
        %v1600 = vpack.c.bf16 %v1596, %v1596
        %v1601 = vpack.c.bf16 %v1597, %v1597
        %v1602 = vld [vmem:[#allocation7] sm:$0xf]
        %v1603 = vld [vmem:[#allocation7 + $0x4] sm:$0xf]
        %v1604 = vld [vmem:[#allocation7 + $0x8] sm:$0xf]
        %v1605 = vld [vmem:[#allocation7 + $0xc] sm:$0xf]
        %v1606 = vld [vmem:[#allocation7 + $0x10] sm:$0xf]
        %v1607 = vld [vmem:[#allocation7 + $0x14] sm:$0xf]
        %v1608 = vld [vmem:[#allocation7 + $0x18] sm:$0xf]
        %v1609 = vld [vmem:[#allocation7 + $0x1c] sm:$0xf]
        %v1610 = vld [vmem:[#allocation7 + $0x20] sm:$0xf]
        %v1611 = vld [vmem:[#allocation7 + $0x24] sm:$0xf]
        %v1612 = vld [vmem:[#allocation7 + $0x28] sm:$0xf]
        %v1613 = vld [vmem:[#allocation7 + $0x2c] sm:$0xf]
        %v1614 = vld [vmem:[#allocation7 + $0x30] sm:$0xf]
        %v1615 = vld [vmem:[#allocation7 + $0x34] sm:$0xf]
        %v1616 = vld [vmem:[#allocation7 + $0x38] sm:$0xf]
        %v1617 = vld [vmem:[#allocation7 + $0x3c] sm:$0xf]
        %v1618 = vld [vmem:[#allocation7 + $0x40] sm:$0xf]
        %v1619 = vld [vmem:[#allocation7 + $0x44] sm:$0xf]
        %v1620 = vld [vmem:[#allocation7 + $0x48] sm:$0xf]
        %v1621 = vld [vmem:[#allocation7 + $0x4c] sm:$0xf]
        %v1622 = vld [vmem:[#allocation7 + $0x50] sm:$0xf]
        %v1623 = vld [vmem:[#allocation7 + $0x54] sm:$0xf]
        %v1624 = vld [vmem:[#allocation7 + $0x58] sm:$0xf]
        %v1625 = vld [vmem:[#allocation7 + $0x5c] sm:$0xf]
        %v1626 = vld [vmem:[#allocation7 + $0x60] sm:$0xf]
        %v1627 = vld [vmem:[#allocation7 + $0x64] sm:$0xf]
        %v1628 = vld [vmem:[#allocation7 + $0x68] sm:$0xf]
        %v1629 = vld [vmem:[#allocation7 + $0x6c] sm:$0xf]
        %v1630 = vld [vmem:[#allocation7 + $0x70] sm:$0xf]
        %v1631 = vld [vmem:[#allocation7 + $0x74] sm:$0xf]
        %v1632 = vld [vmem:[#allocation7 + $0x78] sm:$0xf]
        %v1633 = vld [vmem:[#allocation7 + $0x7c] sm:$0xf]
        %v1634 = vld [vmem:[#allocation7 + $0x80] sm:$0xf]
        %v1635 = vld [vmem:[#allocation7 + $0x84] sm:$0xf]
        %v1636 = vld [vmem:[#allocation7 + $0x88] sm:$0xf]
        %v1637 = vld [vmem:[#allocation7 + $0x8c] sm:$0xf]
        %v1638 = vld [vmem:[#allocation7 + $0x90] sm:$0xf]
        %v1639 = vld [vmem:[#allocation7 + $0x94] sm:$0xf]
        %v1640 = vld [vmem:[#allocation7 + $0x98] sm:$0xf]
        %v1641 = vld [vmem:[#allocation7 + $0x9c] sm:$0xf]
        %v1642 = vld [vmem:[#allocation7 + $0xa0] sm:$0xf]
        %v1643 = vld [vmem:[#allocation7 + $0xa4] sm:$0xf]
        %v1644 = vld [vmem:[#allocation7 + $0xa8] sm:$0xf]
        %v1645 = vld [vmem:[#allocation7 + $0xac] sm:$0xf]
        %v1646 = vld [vmem:[#allocation7 + $0xb0] sm:$0xf]
        %v1647 = vld [vmem:[#allocation7 + $0xb4] sm:$0xf]
        %v1648 = vld [vmem:[#allocation7 + $0xb8] sm:$0xf]
        %v1649 = vld [vmem:[#allocation7 + $0xbc] sm:$0xf]
        %v1650 = vld [vmem:[#allocation7 + $0xc0] sm:$0xf]
        %v1651 = vld [vmem:[#allocation7 + $0xc4] sm:$0xf]
        %v1652 = vld [vmem:[#allocation7 + $0xc8] sm:$0xf]
        %v1653 = vld [vmem:[#allocation7 + $0xcc] sm:$0xf]
        %v1654 = vld [vmem:[#allocation7 + $0xd0] sm:$0xf]
        %v1655 = vld [vmem:[#allocation7 + $0xd4] sm:$0xf]
        %v1656 = vld [vmem:[#allocation7 + $0xd8] sm:$0xf]
        %v1657 = vld [vmem:[#allocation7 + $0xdc] sm:$0xf]
        %v1658 = vld [vmem:[#allocation7 + $0xe0] sm:$0xf]
        %v1659 = vld [vmem:[#allocation7 + $0xe4] sm:$0xf]
        %v1660 = vld [vmem:[#allocation7 + $0xe8] sm:$0xf]
        %v1661 = vld [vmem:[#allocation7 + $0xec] sm:$0xf]
        %v1662 = vld [vmem:[#allocation7 + $0xf0] sm:$0xf]
        %v1663 = vld [vmem:[#allocation7 + $0xf4] sm:$0xf]
        %v1664 = vld [vmem:[#allocation7 + $0xf8] sm:$0xf]
        %v1665 = vld [vmem:[#allocation7 + $0xfc] sm:$0xf]
        %v1666 = vlaneseq
        %v1667 = vshrl.u32 %v1666, 7
        %v1668 = vsub.s32 7, %v1667
        %v1669 = vrot.slane %v392, %v1668
        %v1734 = vunpack.c.l.b16 %v1602
        %v1735 = vunpack.c.l.b16 %v1603
        %v1736 = vunpack.c.l.b16 %v1604
        %v1737 = vunpack.c.l.b16 %v1605
        %v1738 = vunpack.c.l.b16 %v1606
        %v1739 = vunpack.c.l.b16 %v1607
        %v1740 = vunpack.c.l.b16 %v1608
        %v1741 = vunpack.c.l.b16 %v1609
        %v1742 = vunpack.c.l.b16 %v1610
        %v1743 = vunpack.c.l.b16 %v1611
        %v1744 = vunpack.c.l.b16 %v1612
        %v1745 = vunpack.c.l.b16 %v1613
        %v1746 = vunpack.c.l.b16 %v1614
        %v1747 = vunpack.c.l.b16 %v1615
        %v1748 = vunpack.c.l.b16 %v1616
        %v1749 = vunpack.c.l.b16 %v1617
        %v1750 = vunpack.c.l.b16 %v1618
        %v1751 = vunpack.c.l.b16 %v1619
        %v1752 = vunpack.c.l.b16 %v1620
        %v1753 = vunpack.c.l.b16 %v1621
        %v1754 = vunpack.c.l.b16 %v1622
        %v1755 = vunpack.c.l.b16 %v1623
        %v1756 = vunpack.c.l.b16 %v1624
        %v1757 = vunpack.c.l.b16 %v1625
        %v1758 = vunpack.c.l.b16 %v1626
        %v1759 = vunpack.c.l.b16 %v1627
        %v1760 = vunpack.c.l.b16 %v1628
        %v1761 = vunpack.c.l.b16 %v1629
        %v1762 = vunpack.c.l.b16 %v1630
        %v1763 = vunpack.c.l.b16 %v1631
        %v1764 = vunpack.c.l.b16 %v1632
        %v1765 = vunpack.c.l.b16 %v1633
        %v1766 = vunpack.c.l.b16 %v1634
        %v1767 = vunpack.c.l.b16 %v1635
        %v1768 = vunpack.c.l.b16 %v1636
        %v1769 = vunpack.c.l.b16 %v1637
        %v1770 = vunpack.c.l.b16 %v1638
        %v1771 = vunpack.c.l.b16 %v1639
        %v1772 = vunpack.c.l.b16 %v1640
        %v1773 = vunpack.c.l.b16 %v1641
        %v1774 = vunpack.c.l.b16 %v1642
        %v1775 = vunpack.c.l.b16 %v1643
        %v1776 = vunpack.c.l.b16 %v1644
        %v1777 = vunpack.c.l.b16 %v1645
        %v1778 = vunpack.c.l.b16 %v1646
        %v1779 = vunpack.c.l.b16 %v1647
        %v1780 = vunpack.c.l.b16 %v1648
        %v1781 = vunpack.c.l.b16 %v1649
        %v1782 = vunpack.c.l.b16 %v1650
        %v1783 = vunpack.c.l.b16 %v1651
        %v1784 = vunpack.c.l.b16 %v1652
        %v1785 = vunpack.c.l.b16 %v1653
        %v1786 = vunpack.c.l.b16 %v1654
        %v1787 = vunpack.c.l.b16 %v1655
        %v1788 = vunpack.c.l.b16 %v1656
        %v1789 = vunpack.c.l.b16 %v1657
        %v1790 = vunpack.c.l.b16 %v1658
        %v1791 = vunpack.c.l.b16 %v1659
        %v1792 = vunpack.c.l.b16 %v1660
        %v1793 = vunpack.c.l.b16 %v1661
        %v1794 = vunpack.c.l.b16 %v1662
        %v1795 = vunpack.c.l.b16 %v1663
        %v1796 = vunpack.c.l.b16 %v1664
        %v1797 = vunpack.c.l.b16 %v1665
        %v1798 = vpack.c.b16 %v1735, %v1734
        %v1799 = vpack.c.b16 %v1737, %v1736
        %v1800 = vpack.c.b16 %v1739, %v1738
        %v1801 = vpack.c.b16 %v1741, %v1740
        %v1802 = vpack.c.b16 %v1743, %v1742
        %v1803 = vpack.c.b16 %v1745, %v1744
        %v1804 = vpack.c.b16 %v1747, %v1746
        %v1805 = vpack.c.b16 %v1749, %v1748
        %v1806 = vpack.c.b16 %v1751, %v1750
        %v1807 = vpack.c.b16 %v1753, %v1752
        %v1808 = vpack.c.b16 %v1755, %v1754
        %v1809 = vpack.c.b16 %v1757, %v1756
        %v1810 = vpack.c.b16 %v1759, %v1758
        %v1811 = vpack.c.b16 %v1761, %v1760
        %v1812 = vpack.c.b16 %v1763, %v1762
        %v1813 = vpack.c.b16 %v1765, %v1764
        %v1814 = vpack.c.b16 %v1767, %v1766
        %v1815 = vpack.c.b16 %v1769, %v1768
        %v1816 = vpack.c.b16 %v1771, %v1770
        %v1817 = vpack.c.b16 %v1773, %v1772
        %v1818 = vpack.c.b16 %v1775, %v1774
        %v1819 = vpack.c.b16 %v1777, %v1776
        %v1820 = vpack.c.b16 %v1779, %v1778
        %v1821 = vpack.c.b16 %v1781, %v1780
        %v1822 = vpack.c.b16 %v1783, %v1782
        %v1823 = vpack.c.b16 %v1785, %v1784
        %v1824 = vpack.c.b16 %v1787, %v1786
        %v1825 = vpack.c.b16 %v1789, %v1788
        %v1826 = vpack.c.b16 %v1791, %v1790
        %v1827 = vpack.c.b16 %v1793, %v1792
        %v1828 = vpack.c.b16 %v1795, %v1794
        %v1829 = vpack.c.b16 %v1797, %v1796
        %1862 = vmatprep.subr.bf16.mxu0 0
        %1863 = vmatpush1.bf16.msra.mxu0 %v1798
        %1864 = vmatprep.subr.bf16.mxu0 0
        %1865 = vmatpush1.bf16.msra.mxu0 %v1799
        %1866 = vmatprep.subr.bf16.mxu0 0
        %1867 = vmatpush1.bf16.msra.mxu0 %v1800
        %1868 = vmatprep.subr.bf16.mxu0 0
        %1869 = vmatpush1.bf16.msra.mxu0 %v1801
        %1870 = vmatprep.subr.bf16.mxu0 0
        %1871 = vmatpush1.bf16.msra.mxu0 %v1802
        %1872 = vmatprep.subr.bf16.mxu0 0
        %1873 = vmatpush1.bf16.msra.mxu0 %v1803
        %1874 = vmatprep.subr.bf16.mxu0 0
        %1875 = vmatpush1.bf16.msra.mxu0 %v1804
        %1876 = vmatprep.subr.bf16.mxu0 0
        %1877 = vmatpush1.bf16.msra.mxu0 %v1805
        %1878 = vmatprep.subr.bf16.mxu0 0
        %1879 = vmatpush1.bf16.msra.mxu0 %v1806
        %1880 = vmatprep.subr.bf16.mxu0 0
        %1881 = vmatpush1.bf16.msra.mxu0 %v1807
        %1882 = vmatprep.subr.bf16.mxu0 0
        %1883 = vmatpush1.bf16.msra.mxu0 %v1808
        %1884 = vmatprep.subr.bf16.mxu0 0
        %1885 = vmatpush1.bf16.msra.mxu0 %v1809
        %1886 = vmatprep.subr.bf16.mxu0 0
        %1887 = vmatpush1.bf16.msra.mxu0 %v1810
        %1888 = vmatprep.subr.bf16.mxu0 0
        %1889 = vmatpush1.bf16.msra.mxu0 %v1811
        %1890 = vmatprep.subr.bf16.mxu0 0
        %1891 = vmatpush1.bf16.msra.mxu0 %v1812
        %1892 = vmatprep.subr.bf16.mxu0 0
        %1893 = vmatpush1.bf16.msra.mxu0 %v1813
        %1894 = vmatprep.mubr.bf16.mxu0 %v1599
        %1895 = vmatmul.mubr.bf16.gmra.mrb[0].mxu0 %v1598
        %v1896 = vpop.f32.mrb[0].mxu0
        %v1897 = vadd.f32 %v1669, %v1896
        %v1898 = vpop.f32.mrb[0].mxu0
        %v1899 = vpop.f32.mrb[0].mxu0
        %v1900 = vpop.f32.mrb[0].mxu0
        %1901 = vdwg.mxu0
        %1902 = vmatprep.subr.bf16.mxu0 0
        %1903 = vmatpush1.bf16.msra.mxu0 %v1814
        %1904 = vmatprep.subr.bf16.mxu0 0
        %1905 = vmatpush1.bf16.msra.mxu0 %v1815
        %1906 = vmatprep.subr.bf16.mxu0 0
        %1907 = vmatpush1.bf16.msra.mxu0 %v1816
        %1908 = vmatprep.subr.bf16.mxu0 0
        %1909 = vmatpush1.bf16.msra.mxu0 %v1817
        %1910 = vmatprep.subr.bf16.mxu0 0
        %1911 = vmatpush1.bf16.msra.mxu0 %v1818
        %1912 = vmatprep.subr.bf16.mxu0 0
        %1913 = vmatpush1.bf16.msra.mxu0 %v1819
        %1914 = vmatprep.subr.bf16.mxu0 0
        %1915 = vmatpush1.bf16.msra.mxu0 %v1820
        %1916 = vmatprep.subr.bf16.mxu0 0
        %1917 = vmatpush1.bf16.msra.mxu0 %v1821
        %1918 = vmatprep.subr.bf16.mxu0 0
        %1919 = vmatpush1.bf16.msra.mxu0 %v1822
        %1920 = vmatprep.subr.bf16.mxu0 0
        %1921 = vmatpush1.bf16.msra.mxu0 %v1823
        %1922 = vmatprep.subr.bf16.mxu0 0
        %1923 = vmatpush1.bf16.msra.mxu0 %v1824
        %1924 = vmatprep.subr.bf16.mxu0 0
        %1925 = vmatpush1.bf16.msra.mxu0 %v1825
        %1926 = vmatprep.subr.bf16.mxu0 0
        %1927 = vmatpush1.bf16.msra.mxu0 %v1826
        %1928 = vmatprep.subr.bf16.mxu0 0
        %1929 = vmatpush1.bf16.msra.mxu0 %v1827
        %1930 = vmatprep.subr.bf16.mxu0 0
        %1931 = vmatpush1.bf16.msra.mxu0 %v1828
        %1932 = vmatprep.subr.bf16.mxu0 0
        %1933 = vmatpush1.bf16.msra.mxu0 %v1829
        %1934 = vmatprep.mubr.bf16.mxu0 %v1601
        %1935 = vmatmul.mubr.bf16.gmra.mrb[0].mxu0 %v1600
        %v1936 = vpop.f32.mrb[0].mxu0
        %v1937 = vadd.f32 %v1897, %v1936
        %v1938 = vpop.f32.mrb[0].mxu0
        %v1939 = vpop.f32.mrb[0].mxu0
        %v1940 = vpop.f32.mrb[0].mxu0
        %1941 = vdwg.mxu0
        %v1942 = vadd.f32 %v1249, %v1937
        %s1943 = scalar_lea.vmem %s2, 32
        %v1944 = vld [vmem:[%s1943] sm:$0xff]
        %v1945 = vld [vmem:[%s1943 + $0x8] sm:$0xff]
        %v1946 = vld [vmem:[%s1943 + $0x10] sm:$0xff]
        %v1947 = vld [vmem:[%s1943 + $0x18] sm:$0xff]
        %1948 = vadd.xlane.f32.xlu0 %v1942
        %v1949 = vpop.xlane.xlu0 %1948
        %v1950 = vmul.f32 %v1949, %v398
        %v1951 = vsub.f32 %v1942, %v1950
        %v1952 = vmul.f32 %v1951, %v1951
        %1953 = vadd.xlane.f32.xlu0 %v1952
        %v1954 = vpop.xlane.xlu0 %1953
        %v1955 = vmul.f32 %v1954, %v398
        %v1956 = vadd.f32 %v1955, 1e-05
        %v1957 = vrsqrt.pop %v1956
        %v1958 = vmul.f32 %v1951, %v1957
        %v1959 = vlaneseq
        %v1960 = vshrl.u32 %v1959, 7
        %v1961 = vsub.s32 0, %v1960
        %v1962 = vrot.slane %v1944, %v1961
        %v1963 = vmul.f32 %v1958, %v1962
        %v1964 = vlaneseq
        %v1965 = vshrl.u32 %v1964, 7
        %v1966 = vsub.s32 1, %v1965
        %v1967 = vrot.slane %v1944, %v1966
        %v1968 = vadd.f32 %v1963, %v1967
        %s1969 = scalar_lea.vmem [#allocation2], 192
        %v1970 = vld [vmem:[%s1969] sm:$0xff]
        %v1971 = vld [vmem:[%s1969 + $0x8] sm:$0xf]
        %v1972 = vld [vmem:[%s1969 + $0xc] sm:$0xff]
        %v1973 = vld [vmem:[%s1969 + $0x14] sm:$0xf]
        %v1974 = vld [vmem:[%s1969 + $0x18] sm:$0xff]
        %v1975 = vld [vmem:[%s1969 + $0x20] sm:$0xf]
        %v1976 = vld [vmem:[%s1969 + $0x24] sm:$0xff]
        %v1977 = vld [vmem:[%s1969 + $0x2c] sm:$0xf]
        %v1978 = vld [vmem:[%s1969 + $0x30] sm:$0xff]
        %v1979 = vld [vmem:[%s1969 + $0x38] sm:$0xf]
        %v1980 = vld [vmem:[%s1969 + $0x3c] sm:$0xff]
        %v1981 = vld [vmem:[%s1969 + $0x44] sm:$0xf]
        %v1982 = vld [vmem:[%s1969 + $0x48] sm:$0xff]
        %v1983 = vld [vmem:[%s1969 + $0x50] sm:$0xf]
        %v1984 = vld [vmem:[%s1969 + $0x54] sm:$0xff]
        %v1985 = vld [vmem:[%s1969 + $0x5c] sm:$0xf]
        %v1986 = vld [vmem:[%s1969 + $0x60] sm:$0xff]
        %v1987 = vld [vmem:[%s1969 + $0x68] sm:$0xf]
        %v1988 = vld [vmem:[%s1969 + $0x6c] sm:$0xff]
        %v1989 = vld [vmem:[%s1969 + $0x74] sm:$0xf]
        %v1990 = vld [vmem:[%s1969 + $0x78] sm:$0xff]
        %v1991 = vld [vmem:[%s1969 + $0x80] sm:$0xf]
        %v1992 = vld [vmem:[%s1969 + $0x84] sm:$0xff]
        %v1993 = vld [vmem:[%s1969 + $0x8c] sm:$0xf]
        %v1994 = vld [vmem:[%s1969 + $0x90] sm:$0xff]
        %v1995 = vld [vmem:[%s1969 + $0x98] sm:$0xf]
        %v1996 = vld [vmem:[%s1969 + $0x9c] sm:$0xff]
        %v1997 = vld [vmem:[%s1969 + $0xa4] sm:$0xf]
        %v1998 = vld [vmem:[%s1969 + $0xa8] sm:$0xff]
        %v1999 = vld [vmem:[%s1969 + $0xb0] sm:$0xf]
        %v2000 = vld [vmem:[%s1969 + $0xb4] sm:$0xff]
        %v2001 = vld [vmem:[%s1969 + $0xbc] sm:$0xf]
        %v2002 = vpack.c.bf16 %v1968, %v1968
        %v2003 = vlaneseq
        %v2004 = vshrl.u32 %v2003, 7
        %v2005 = vsub.s32 2, %v2004
        %v2006 = vrot.slane %v1944, %v2005
        %v2007 = vlaneseq
        %v2008 = vshrl.u32 %v2007, 7
        %v2009 = vsub.s32 2, %v2008
        %v2010 = vrot.slane %v1945, %v2009
        %v2011 = vlaneseq
        %v2012 = vshrl.u32 %v2011, 7
        %v2013 = vsub.s32 2, %v2012
        %v2014 = vrot.slane %v1946, %v2013
        %v2047 = vunpack.c.l.b16 %v1970
        %v2048 = vunpack.c.h.b16 %v1970
        %v2049 = vunpack.c.l.b16 %v1971
        %v2050 = vunpack.c.l.b16 %v1972
        %v2051 = vunpack.c.h.b16 %v1972
        %v2052 = vunpack.c.l.b16 %v1973
        %v2053 = vunpack.c.l.b16 %v1974
        %v2054 = vunpack.c.h.b16 %v1974
        %v2055 = vunpack.c.l.b16 %v1975
        %v2056 = vunpack.c.l.b16 %v1976
        %v2057 = vunpack.c.h.b16 %v1976
        %v2058 = vunpack.c.l.b16 %v1977
        %v2059 = vunpack.c.l.b16 %v1978
        %v2060 = vunpack.c.h.b16 %v1978
        %v2061 = vunpack.c.l.b16 %v1979
        %v2062 = vunpack.c.l.b16 %v1980
        %v2063 = vunpack.c.h.b16 %v1980
        %v2064 = vunpack.c.l.b16 %v1981
        %v2065 = vunpack.c.l.b16 %v1982
        %v2066 = vunpack.c.h.b16 %v1982
        %v2067 = vunpack.c.l.b16 %v1983
        %v2068 = vunpack.c.l.b16 %v1984
        %v2069 = vunpack.c.h.b16 %v1984
        %v2070 = vunpack.c.l.b16 %v1985
        %v2071 = vunpack.c.l.b16 %v1986
        %v2072 = vunpack.c.h.b16 %v1986
        %v2073 = vunpack.c.l.b16 %v1987
        %v2074 = vunpack.c.l.b16 %v1988
        %v2075 = vunpack.c.h.b16 %v1988
        %v2076 = vunpack.c.l.b16 %v1989
        %v2077 = vunpack.c.l.b16 %v1990
        %v2078 = vunpack.c.h.b16 %v1990
        %v2079 = vunpack.c.l.b16 %v1991
        %v2080 = vunpack.c.l.b16 %v1992
        %v2081 = vunpack.c.h.b16 %v1992
        %v2082 = vunpack.c.l.b16 %v1993
        %v2083 = vunpack.c.l.b16 %v1994
        %v2084 = vunpack.c.h.b16 %v1994
        %v2085 = vunpack.c.l.b16 %v1995
        %v2086 = vunpack.c.l.b16 %v1996
        %v2087 = vunpack.c.h.b16 %v1996
        %v2088 = vunpack.c.l.b16 %v1997
        %v2089 = vunpack.c.l.b16 %v1998
        %v2090 = vunpack.c.h.b16 %v1998
        %v2091 = vunpack.c.l.b16 %v1999
        %v2092 = vunpack.c.l.b16 %v2000
        %v2093 = vunpack.c.h.b16 %v2000
        %v2094 = vunpack.c.l.b16 %v2001
        %v2095 = vpack.c.b16 %v2050, %v2047
        %v2096 = vpack.c.b16 %v2051, %v2048
        %v2097 = vpack.c.b16 %v2052, %v2049
        %v2098 = vpack.c.b16 %v2056, %v2053
        %v2099 = vpack.c.b16 %v2057, %v2054
        %v2100 = vpack.c.b16 %v2058, %v2055
        %v2101 = vpack.c.b16 %v2062, %v2059
        %v2102 = vpack.c.b16 %v2063, %v2060
        %v2103 = vpack.c.b16 %v2064, %v2061
        %v2104 = vpack.c.b16 %v2068, %v2065
        %v2105 = vpack.c.b16 %v2069, %v2066
        %v2106 = vpack.c.b16 %v2070, %v2067
        %v2107 = vpack.c.b16 %v2074, %v2071
        %v2108 = vpack.c.b16 %v2075, %v2072
        %v2109 = vpack.c.b16 %v2076, %v2073
        %v2110 = vpack.c.b16 %v2080, %v2077
        %v2111 = vpack.c.b16 %v2081, %v2078
        %v2112 = vpack.c.b16 %v2082, %v2079
        %v2113 = vpack.c.b16 %v2086, %v2083
        %v2114 = vpack.c.b16 %v2087, %v2084
        %v2115 = vpack.c.b16 %v2088, %v2085
        %v2116 = vpack.c.b16 %v2092, %v2089
        %v2117 = vpack.c.b16 %v2093, %v2090
        %v2118 = vpack.c.b16 %v2094, %v2091
        %2143 = vmatprep.subr.bf16.mxu0 %v2096
        %2144 = vmatpush1.bf16.msra.mxu0 %v2095
        %2145 = vmatprep.subr.bf16.mxu0 %v2099
        %2146 = vmatpush1.bf16.msra.mxu0 %v2098
        %2147 = vmatprep.subr.bf16.mxu0 %v2102
        %2148 = vmatpush1.bf16.msra.mxu0 %v2101
        %2149 = vmatprep.subr.bf16.mxu0 %v2105
        %2150 = vmatpush1.bf16.msra.mxu0 %v2104
        %2151 = vmatprep.subr.bf16.mxu0 %v2108
        %2152 = vmatpush1.bf16.msra.mxu0 %v2107
        %2153 = vmatprep.subr.bf16.mxu0 %v2111
        %2154 = vmatpush1.bf16.msra.mxu0 %v2110
        %2155 = vmatprep.subr.bf16.mxu0 %v2114
        %2156 = vmatpush1.bf16.msra.mxu0 %v2113
        %2157 = vmatprep.subr.bf16.mxu0 %v2117
        %2158 = vmatpush1.bf16.msra.mxu0 %v2116
        %2159 = vmatprep.subr.bf16.mxu0 0
        %2160 = vmatpush1.bf16.msra.mxu0 0
        %2161 = vmatprep.subr.bf16.mxu0 0
        %2162 = vmatpush1.bf16.msra.mxu0 0
        %2163 = vmatprep.subr.bf16.mxu0 0
        %2164 = vmatpush1.bf16.msra.mxu0 0
        %2165 = vmatprep.subr.bf16.mxu0 0
        %2166 = vmatpush1.bf16.msra.mxu0 0
        %2167 = vmatprep.subr.bf16.mxu0 0
        %2168 = vmatpush1.bf16.msra.mxu0 0
        %2169 = vmatprep.subr.bf16.mxu0 0
        %2170 = vmatpush1.bf16.msra.mxu0 0
        %2171 = vmatprep.subr.bf16.mxu0 0
        %2172 = vmatpush1.bf16.msra.mxu0 0
        %2173 = vmatprep.subr.bf16.mxu0 0
        %2174 = vmatpush1.bf16.msra.mxu0 0
        %2175 = vmatprep.mubr.bf16.mxu0 0
        %2176 = vmatmul.mubr.bf16.gmra.mrb[0].mxu0 %v2002
        %v2177 = vpop.f32.mrb[0].mxu0
        %v2178 = vadd.f32 %v2006, %v2177
        %v2179 = vpop.f32.mrb[0].mxu0
        %v2180 = vadd.f32 %v2010, %v2179
        %v2181 = vpop.f32.mrb[0].mxu0
        %v2182 = vpop.f32.mrb[0].mxu0
        %2183 = vdwg.mxu0
        %2184 = vmatprep.subr.bf16.mxu0 0
        %2185 = vmatpush1.bf16.msra.mxu0 %v2097
        %2186 = vmatprep.subr.bf16.mxu0 0
        %2187 = vmatpush1.bf16.msra.mxu0 %v2100
        %2188 = vmatprep.subr.bf16.mxu0 0
        %2189 = vmatpush1.bf16.msra.mxu0 %v2103
        %2190 = vmatprep.subr.bf16.mxu0 0
        %2191 = vmatpush1.bf16.msra.mxu0 %v2106
        %2192 = vmatprep.subr.bf16.mxu0 0
        %2193 = vmatpush1.bf16.msra.mxu0 %v2109
        %2194 = vmatprep.subr.bf16.mxu0 0
        %2195 = vmatpush1.bf16.msra.mxu0 %v2112
        %2196 = vmatprep.subr.bf16.mxu0 0
        %2197 = vmatpush1.bf16.msra.mxu0 %v2115
        %2198 = vmatprep.subr.bf16.mxu0 0
        %2199 = vmatpush1.bf16.msra.mxu0 %v2118
        %2200 = vmatprep.subr.bf16.mxu0 0
        %2201 = vmatpush1.bf16.msra.mxu0 0
        %2202 = vmatprep.subr.bf16.mxu0 0
        %2203 = vmatpush1.bf16.msra.mxu0 0
        %2204 = vmatprep.subr.bf16.mxu0 0
        %2205 = vmatpush1.bf16.msra.mxu0 0
        %2206 = vmatprep.subr.bf16.mxu0 0
        %2207 = vmatpush1.bf16.msra.mxu0 0
        %2208 = vmatprep.subr.bf16.mxu0 0
        %2209 = vmatpush1.bf16.msra.mxu0 0
        %2210 = vmatprep.subr.bf16.mxu0 0
        %2211 = vmatpush1.bf16.msra.mxu0 0
        %2212 = vmatprep.subr.bf16.mxu0 0
        %2213 = vmatpush1.bf16.msra.mxu0 0
        %2214 = vmatprep.subr.bf16.mxu0 0
        %2215 = vmatpush1.bf16.msra.mxu0 0
        %2216 = vmatprep.mubr.bf16.mxu0 0
        %2217 = vmatmul.mubr.bf16.gmra.mrb[0].mxu0 %v2002
        %v2218 = vpop.f32.mrb[0].mxu0
        %v2219 = vadd.f32 %v2014, %v2218
        %v2220 = vpop.f32.mrb[0].mxu0
        %v2221 = vpop.f32.mrb[0].mxu0
        %v2222 = vpop.f32.mrb[0].mxu0
        %2223 = vdwg.mxu0
        %v2224 = vpack.c.bf16 %v2178, %v2178
        %v2225 = vpack.c.bf16 %v2180, %v2180
        %v2226 = vpack.c.bf16 %v2219, %v2219
        %v2228 = vsel %vm675, %v2224, 0
        %v2231 = vsel %vm675, %v2225, 0
        %2233 = vmatprep.subr.bf16.mxu0 0
        %2234 = vmatpush1.bf16.xpose.msra.mxu0 %v2231
        %2235 = vmatprep.subr.bf16.mxu0 0
        %2236 = vmatpush1.bf16.xpose.msra.mxu0 0
        %2237 = vmatprep.subr.bf16.mxu0 0
        %2238 = vmatpush1.bf16.xpose.msra.mxu0 0
        %2239 = vmatprep.subr.bf16.mxu0 0
        %2240 = vmatpush1.bf16.xpose.msra.mxu0 0
        %2241 = vmatprep.subr.bf16.mxu0 0
        %2242 = vmatpush1.bf16.xpose.msra.mxu0 0
        %2243 = vmatprep.subr.bf16.mxu0 0
        %2244 = vmatpush1.bf16.xpose.msra.mxu0 0
        %2245 = vmatprep.subr.bf16.mxu0 0
        %2246 = vmatpush1.bf16.xpose.msra.mxu0 0
        %2247 = vmatprep.subr.bf16.mxu0 0
        %2248 = vmatpush1.bf16.xpose.msra.mxu0 0
        %2249 = vmatprep.subr.bf16.mxu0 0
        %2250 = vmatpush1.bf16.xpose.msra.mxu0 0
        %2251 = vmatprep.subr.bf16.mxu0 0
        %2252 = vmatpush1.bf16.xpose.msra.mxu0 0
        %2253 = vmatprep.subr.bf16.mxu0 0
        %2254 = vmatpush1.bf16.xpose.msra.mxu0 0
        %2255 = vmatprep.subr.bf16.mxu0 0
        %2256 = vmatpush1.bf16.xpose.msra.mxu0 0
        %2257 = vmatprep.subr.bf16.mxu0 0
        %2258 = vmatpush1.bf16.xpose.msra.mxu0 0
        %2259 = vmatprep.subr.bf16.mxu0 0
        %2260 = vmatpush1.bf16.xpose.msra.mxu0 0
        %2261 = vmatprep.subr.bf16.mxu0 0
        %2262 = vmatpush1.bf16.xpose.msra.mxu0 0
        %2263 = vmatprep.subr.bf16.mxu0 0
        %2264 = vmatpush1.bf16.xpose.msra.mxu0 0
        %2265 = vmatprep.mubr.bf16.mxu0 0
        %2266 = vmatmul.mubr.bf16.gmra.mrb[0].mxu0 %v2228
        %v2267 = vpop.f32.mrb[0].mxu0
        %v2268 = vadd.f32 0.0, %v2267
        %v2269 = vpop.f32.mrb[0].mxu0
        %v2270 = vpop.f32.mrb[0].mxu0
        %v2271 = vpop.f32.mrb[0].mxu0
        %2272 = vdwg.mxu0
        %v2273 = vmul.f32 %v2268, 0.17677669
        %v2274 = vadd.f32 %v2273, %v391
        %v2275 = vsel %vm724, %v2274, -inf
        %2276 = vmax.xlane.f32.xlu0 %v2275
        %v2277 = vpop.xlane.xlu0 %2276
        %v2278 = vsub.f32 %v2274, %v2277
        %v2279 = vmul.f32 %v2278, 1.442695
        %v2280 = vpow.pop %v2279
        %v2281 = vsel %vm724, %v2280, 0.0
        %2282 = vadd.xlane.f32.xlu0 %v2281
        %v2283 = vpop.xlane.xlu0 %2282
        %v2284 = vrcp.pop %v2283
        %v2285 = vmul.f32 %v2280, %v2284
        %v2286 = vpack.c.bf16 %v2285, %v2285
        %v2288 = vsel %vm724, %v2286, 0
        %v2291 = vsel %vm740, %v2226, 0
        %2293 = vmatprep.subr.bf16.mxu0 0
        %2294 = vmatpush1.bf16.msra.mxu0 %v2291
        %2295 = vmatprep.subr.bf16.mxu0 0
        %2296 = vmatpush1.bf16.msra.mxu0 0
        %2297 = vmatprep.subr.bf16.mxu0 0
        %2298 = vmatpush1.bf16.msra.mxu0 0
        %2299 = vmatprep.subr.bf16.mxu0 0
        %2300 = vmatpush1.bf16.msra.mxu0 0
        %2301 = vmatprep.subr.bf16.mxu0 0
        %2302 = vmatpush1.bf16.msra.mxu0 0
        %2303 = vmatprep.subr.bf16.mxu0 0
        %2304 = vmatpush1.bf16.msra.mxu0 0
        %2305 = vmatprep.subr.bf16.mxu0 0
        %2306 = vmatpush1.bf16.msra.mxu0 0
        %2307 = vmatprep.subr.bf16.mxu0 0
        %2308 = vmatpush1.bf16.msra.mxu0 0
        %2309 = vmatprep.subr.bf16.mxu0 0
        %2310 = vmatpush1.bf16.msra.mxu0 0
        %2311 = vmatprep.subr.bf16.mxu0 0
        %2312 = vmatpush1.bf16.msra.mxu0 0
        %2313 = vmatprep.subr.bf16.mxu0 0
        %2314 = vmatpush1.bf16.msra.mxu0 0
        %2315 = vmatprep.subr.bf16.mxu0 0
        %2316 = vmatpush1.bf16.msra.mxu0 0
        %2317 = vmatprep.subr.bf16.mxu0 0
        %2318 = vmatpush1.bf16.msra.mxu0 0
        %2319 = vmatprep.subr.bf16.mxu0 0
        %2320 = vmatpush1.bf16.msra.mxu0 0
        %2321 = vmatprep.subr.bf16.mxu0 0
        %2322 = vmatpush1.bf16.msra.mxu0 0
        %2323 = vmatprep.subr.bf16.mxu0 0
        %2324 = vmatpush1.bf16.msra.mxu0 0
        %2325 = vmatprep.mubr.bf16.mxu0 0
        %2326 = vmatmul.mubr.bf16.gmra.mrb[0].mxu0 %v2288
        %v2327 = vpop.f32.mrb[0].mxu0
        %v2328 = vadd.f32 0.0, %v2327
        %v2329 = vpop.f32.mrb[0].mxu0
        %v2330 = vpop.f32.mrb[0].mxu0
        %v2331 = vpop.f32.mrb[0].mxu0
        %2332 = vdwg.mxu0
        %2334 = vrot.lane.b32.xlu0 %v2224, 96
        %v2335 = vpop.permute.xlu0 %2334
        %2337 = vrot.lane.b32.xlu0 %v2225, 96
        %v2338 = vpop.permute.xlu0 %2337
        %v2340 = vsel %vm675, %v2335, 0
        %v2343 = vsel %vm675, %v2338, 0
        %2345 = vmatprep.subr.bf16.mxu0 0
        %2346 = vmatpush1.bf16.xpose.msra.mxu0 %v2343
        %2347 = vmatprep.subr.bf16.mxu0 0
        %2348 = vmatpush1.bf16.xpose.msra.mxu0 0
        %2349 = vmatprep.subr.bf16.mxu0 0
        %2350 = vmatpush1.bf16.xpose.msra.mxu0 0
        %2351 = vmatprep.subr.bf16.mxu0 0
        %2352 = vmatpush1.bf16.xpose.msra.mxu0 0
        %2353 = vmatprep.subr.bf16.mxu0 0
        %2354 = vmatpush1.bf16.xpose.msra.mxu0 0
        %2355 = vmatprep.subr.bf16.mxu0 0
        %2356 = vmatpush1.bf16.xpose.msra.mxu0 0
        %2357 = vmatprep.subr.bf16.mxu0 0
        %2358 = vmatpush1.bf16.xpose.msra.mxu0 0
        %2359 = vmatprep.subr.bf16.mxu0 0
        %2360 = vmatpush1.bf16.xpose.msra.mxu0 0
        %2361 = vmatprep.subr.bf16.mxu0 0
        %2362 = vmatpush1.bf16.xpose.msra.mxu0 0
        %2363 = vmatprep.subr.bf16.mxu0 0
        %2364 = vmatpush1.bf16.xpose.msra.mxu0 0
        %2365 = vmatprep.subr.bf16.mxu0 0
        %2366 = vmatpush1.bf16.xpose.msra.mxu0 0
        %2367 = vmatprep.subr.bf16.mxu0 0
        %2368 = vmatpush1.bf16.xpose.msra.mxu0 0
        %2369 = vmatprep.subr.bf16.mxu0 0
        %2370 = vmatpush1.bf16.xpose.msra.mxu0 0
        %2371 = vmatprep.subr.bf16.mxu0 0
        %2372 = vmatpush1.bf16.xpose.msra.mxu0 0
        %2373 = vmatprep.subr.bf16.mxu0 0
        %2374 = vmatpush1.bf16.xpose.msra.mxu0 0
        %2375 = vmatprep.subr.bf16.mxu0 0
        %2376 = vmatpush1.bf16.xpose.msra.mxu0 0
        %2377 = vmatprep.mubr.bf16.mxu0 0
        %2378 = vmatmul.mubr.bf16.gmra.mrb[0].mxu0 %v2340
        %v2379 = vpop.f32.mrb[0].mxu0
        %v2380 = vadd.f32 0.0, %v2379
        %v2381 = vpop.f32.mrb[0].mxu0
        %v2382 = vpop.f32.mrb[0].mxu0
        %v2383 = vpop.f32.mrb[0].mxu0
        %2384 = vdwg.mxu0
        %v2385 = vmul.f32 %v2380, 0.17677669
        %v2386 = vadd.f32 %v2385, %v391
        %v2387 = vsel %vm724, %v2386, -inf
        %2388 = vmax.xlane.f32.xlu0 %v2387
        %v2389 = vpop.xlane.xlu0 %2388
        %v2390 = vsub.f32 %v2386, %v2389
        %v2391 = vmul.f32 %v2390, 1.442695
        %v2392 = vpow.pop %v2391
        %v2393 = vsel %vm724, %v2392, 0.0
        %2394 = vadd.xlane.f32.xlu0 %v2393
        %v2395 = vpop.xlane.xlu0 %2394
        %v2396 = vrcp.pop %v2395
        %v2397 = vmul.f32 %v2392, %v2396
        %v2398 = vpack.c.bf16 %v2397, %v2397
        %2400 = vrot.lane.b32.xlu0 %v2226, 96
        %v2401 = vpop.permute.xlu0 %2400
        %v2403 = vsel %vm724, %v2398, 0
        %v2406 = vsel %vm740, %v2401, 0
        %2408 = vmatprep.subr.bf16.mxu0 0
        %2409 = vmatpush1.bf16.msra.mxu0 %v2406
        %2410 = vmatprep.subr.bf16.mxu0 0
        %2411 = vmatpush1.bf16.msra.mxu0 0
        %2412 = vmatprep.subr.bf16.mxu0 0
        %2413 = vmatpush1.bf16.msra.mxu0 0
        %2414 = vmatprep.subr.bf16.mxu0 0
        %2415 = vmatpush1.bf16.msra.mxu0 0
        %2416 = vmatprep.subr.bf16.mxu0 0
        %2417 = vmatpush1.bf16.msra.mxu0 0
        %2418 = vmatprep.subr.bf16.mxu0 0
        %2419 = vmatpush1.bf16.msra.mxu0 0
        %2420 = vmatprep.subr.bf16.mxu0 0
        %2421 = vmatpush1.bf16.msra.mxu0 0
        %2422 = vmatprep.subr.bf16.mxu0 0
        %2423 = vmatpush1.bf16.msra.mxu0 0
        %2424 = vmatprep.subr.bf16.mxu0 0
        %2425 = vmatpush1.bf16.msra.mxu0 0
        %2426 = vmatprep.subr.bf16.mxu0 0
        %2427 = vmatpush1.bf16.msra.mxu0 0
        %2428 = vmatprep.subr.bf16.mxu0 0
        %2429 = vmatpush1.bf16.msra.mxu0 0
        %2430 = vmatprep.subr.bf16.mxu0 0
        %2431 = vmatpush1.bf16.msra.mxu0 0
        %2432 = vmatprep.subr.bf16.mxu0 0
        %2433 = vmatpush1.bf16.msra.mxu0 0
        %2434 = vmatprep.subr.bf16.mxu0 0
        %2435 = vmatpush1.bf16.msra.mxu0 0
        %2436 = vmatprep.subr.bf16.mxu0 0
        %2437 = vmatpush1.bf16.msra.mxu0 0
        %2438 = vmatprep.subr.bf16.mxu0 0
        %2439 = vmatpush1.bf16.msra.mxu0 0
        %2440 = vmatprep.mubr.bf16.mxu0 0
        %2441 = vmatmul.mubr.bf16.gmra.mrb[0].mxu0 %v2403
        %v2442 = vpop.f32.mrb[0].mxu0
        %v2443 = vadd.f32 0.0, %v2442
        %v2444 = vpop.f32.mrb[0].mxu0
        %v2445 = vpop.f32.mrb[0].mxu0
        %v2446 = vpop.f32.mrb[0].mxu0
        %2447 = vdwg.mxu0
        %2448 = vrot.lane.b32.xlu0 %v2224, 64
        %v2449 = vpop.permute.xlu0 %2448
        %2450 = vrot.lane.b32.xlu0 %v2225, 64
        %v2451 = vpop.permute.xlu0 %2450
        %v2453 = vsel %vm675, %v2449, 0
        %v2456 = vsel %vm675, %v2451, 0
        %2458 = vmatprep.subr.bf16.mxu0 0
        %2459 = vmatpush1.bf16.xpose.msra.mxu0 %v2456
        %2460 = vmatprep.subr.bf16.mxu0 0
        %2461 = vmatpush1.bf16.xpose.msra.mxu0 0
        %2462 = vmatprep.subr.bf16.mxu0 0
        %2463 = vmatpush1.bf16.xpose.msra.mxu0 0
        %2464 = vmatprep.subr.bf16.mxu0 0
        %2465 = vmatpush1.bf16.xpose.msra.mxu0 0
        %2466 = vmatprep.subr.bf16.mxu0 0
        %2467 = vmatpush1.bf16.xpose.msra.mxu0 0
        %2468 = vmatprep.subr.bf16.mxu0 0
        %2469 = vmatpush1.bf16.xpose.msra.mxu0 0
        %2470 = vmatprep.subr.bf16.mxu0 0
        %2471 = vmatpush1.bf16.xpose.msra.mxu0 0
        %2472 = vmatprep.subr.bf16.mxu0 0
        %2473 = vmatpush1.bf16.xpose.msra.mxu0 0
        %2474 = vmatprep.subr.bf16.mxu0 0
        %2475 = vmatpush1.bf16.xpose.msra.mxu0 0
        %2476 = vmatprep.subr.bf16.mxu0 0
        %2477 = vmatpush1.bf16.xpose.msra.mxu0 0
        %2478 = vmatprep.subr.bf16.mxu0 0
        %2479 = vmatpush1.bf16.xpose.msra.mxu0 0
        %2480 = vmatprep.subr.bf16.mxu0 0
        %2481 = vmatpush1.bf16.xpose.msra.mxu0 0
        %2482 = vmatprep.subr.bf16.mxu0 0
        %2483 = vmatpush1.bf16.xpose.msra.mxu0 0
        %2484 = vmatprep.subr.bf16.mxu0 0
        %2485 = vmatpush1.bf16.xpose.msra.mxu0 0
        %2486 = vmatprep.subr.bf16.mxu0 0
        %2487 = vmatpush1.bf16.xpose.msra.mxu0 0
        %2488 = vmatprep.subr.bf16.mxu0 0
        %2489 = vmatpush1.bf16.xpose.msra.mxu0 0
        %2490 = vmatprep.mubr.bf16.mxu0 0
        %2491 = vmatmul.mubr.bf16.gmra.mrb[0].mxu0 %v2453
        %v2492 = vpop.f32.mrb[0].mxu0
        %v2493 = vadd.f32 0.0, %v2492
        %v2494 = vpop.f32.mrb[0].mxu0
        %v2495 = vpop.f32.mrb[0].mxu0
        %v2496 = vpop.f32.mrb[0].mxu0
        %2497 = vdwg.mxu0
        %v2498 = vmul.f32 %v2493, 0.17677669
        %v2499 = vadd.f32 %v2498, %v391
        %v2500 = vsel %vm724, %v2499, -inf
        %2501 = vmax.xlane.f32.xlu0 %v2500
        %v2502 = vpop.xlane.xlu0 %2501
        %v2503 = vsub.f32 %v2499, %v2502
        %v2504 = vmul.f32 %v2503, 1.442695
        %v2505 = vpow.pop %v2504
        %v2506 = vsel %vm724, %v2505, 0.0
        %2507 = vadd.xlane.f32.xlu0 %v2506
        %v2508 = vpop.xlane.xlu0 %2507
        %v2509 = vrcp.pop %v2508
        %v2510 = vmul.f32 %v2505, %v2509
        %v2511 = vpack.c.bf16 %v2510, %v2510
        %2512 = vrot.lane.b32.xlu0 %v2226, 64
        %v2513 = vpop.permute.xlu0 %2512
        %v2515 = vsel %vm724, %v2511, 0
        %v2518 = vsel %vm740, %v2513, 0
        %2520 = vmatprep.subr.bf16.mxu0 0
        %2521 = vmatpush1.bf16.msra.mxu0 %v2518
        %2522 = vmatprep.subr.bf16.mxu0 0
        %2523 = vmatpush1.bf16.msra.mxu0 0
        %2524 = vmatprep.subr.bf16.mxu0 0
        %2525 = vmatpush1.bf16.msra.mxu0 0
        %2526 = vmatprep.subr.bf16.mxu0 0
        %2527 = vmatpush1.bf16.msra.mxu0 0
        %2528 = vmatprep.subr.bf16.mxu0 0
        %2529 = vmatpush1.bf16.msra.mxu0 0
        %2530 = vmatprep.subr.bf16.mxu0 0
        %2531 = vmatpush1.bf16.msra.mxu0 0
        %2532 = vmatprep.subr.bf16.mxu0 0
        %2533 = vmatpush1.bf16.msra.mxu0 0
        %2534 = vmatprep.subr.bf16.mxu0 0
        %2535 = vmatpush1.bf16.msra.mxu0 0
        %2536 = vmatprep.subr.bf16.mxu0 0
        %2537 = vmatpush1.bf16.msra.mxu0 0
        %2538 = vmatprep.subr.bf16.mxu0 0
        %2539 = vmatpush1.bf16.msra.mxu0 0
        %2540 = vmatprep.subr.bf16.mxu0 0
        %2541 = vmatpush1.bf16.msra.mxu0 0
        %2542 = vmatprep.subr.bf16.mxu0 0
        %2543 = vmatpush1.bf16.msra.mxu0 0
        %2544 = vmatprep.subr.bf16.mxu0 0
        %2545 = vmatpush1.bf16.msra.mxu0 0
        %2546 = vmatprep.subr.bf16.mxu0 0
        %2547 = vmatpush1.bf16.msra.mxu0 0
        %2548 = vmatprep.subr.bf16.mxu0 0
        %2549 = vmatpush1.bf16.msra.mxu0 0
        %2550 = vmatprep.subr.bf16.mxu0 0
        %2551 = vmatpush1.bf16.msra.mxu0 0
        %2552 = vmatprep.mubr.bf16.mxu0 0
        %2553 = vmatmul.mubr.bf16.gmra.mrb[0].mxu0 %v2515
        %v2554 = vpop.f32.mrb[0].mxu0
        %v2555 = vadd.f32 0.0, %v2554
        %v2556 = vpop.f32.mrb[0].mxu0
        %v2557 = vpop.f32.mrb[0].mxu0
        %v2558 = vpop.f32.mrb[0].mxu0
        %2559 = vdwg.mxu0
        %2560 = vrot.lane.b32.xlu0 %v2224, 32
        %v2561 = vpop.permute.xlu0 %2560
        %2562 = vrot.lane.b32.xlu0 %v2225, 32
        %v2563 = vpop.permute.xlu0 %2562
        %v2565 = vsel %vm675, %v2561, 0
        %v2568 = vsel %vm675, %v2563, 0
        %2570 = vmatprep.subr.bf16.mxu0 0
        %2571 = vmatpush1.bf16.xpose.msra.mxu0 %v2568
        %2572 = vmatprep.subr.bf16.mxu0 0
        %2573 = vmatpush1.bf16.xpose.msra.mxu0 0
        %2574 = vmatprep.subr.bf16.mxu0 0
        %2575 = vmatpush1.bf16.xpose.msra.mxu0 0
        %2576 = vmatprep.subr.bf16.mxu0 0
        %2577 = vmatpush1.bf16.xpose.msra.mxu0 0
        %2578 = vmatprep.subr.bf16.mxu0 0
        %2579 = vmatpush1.bf16.xpose.msra.mxu0 0
        %2580 = vmatprep.subr.bf16.mxu0 0
        %2581 = vmatpush1.bf16.xpose.msra.mxu0 0
        %2582 = vmatprep.subr.bf16.mxu0 0
        %2583 = vmatpush1.bf16.xpose.msra.mxu0 0
        %2584 = vmatprep.subr.bf16.mxu0 0
        %2585 = vmatpush1.bf16.xpose.msra.mxu0 0
        %2586 = vmatprep.subr.bf16.mxu0 0
        %2587 = vmatpush1.bf16.xpose.msra.mxu0 0
        %2588 = vmatprep.subr.bf16.mxu0 0
        %2589 = vmatpush1.bf16.xpose.msra.mxu0 0
        %2590 = vmatprep.subr.bf16.mxu0 0
        %2591 = vmatpush1.bf16.xpose.msra.mxu0 0
        %2592 = vmatprep.subr.bf16.mxu0 0
        %2593 = vmatpush1.bf16.xpose.msra.mxu0 0
        %2594 = vmatprep.subr.bf16.mxu0 0
        %2595 = vmatpush1.bf16.xpose.msra.mxu0 0
        %2596 = vmatprep.subr.bf16.mxu0 0
        %2597 = vmatpush1.bf16.xpose.msra.mxu0 0
        %2598 = vmatprep.subr.bf16.mxu0 0
        %2599 = vmatpush1.bf16.xpose.msra.mxu0 0
        %2600 = vmatprep.subr.bf16.mxu0 0
        %2601 = vmatpush1.bf16.xpose.msra.mxu0 0
        %2602 = vmatprep.mubr.bf16.mxu0 0
        %2603 = vmatmul.mubr.bf16.gmra.mrb[0].mxu0 %v2565
        %v2604 = vpop.f32.mrb[0].mxu0
        %v2605 = vadd.f32 0.0, %v2604
        %v2606 = vpop.f32.mrb[0].mxu0
        %v2607 = vpop.f32.mrb[0].mxu0
        %v2608 = vpop.f32.mrb[0].mxu0
        %2609 = vdwg.mxu0
        %v2610 = vmul.f32 %v2605, 0.17677669
        %v2611 = vadd.f32 %v2610, %v391
        %v2612 = vsel %vm724, %v2611, -inf
        %2613 = vmax.xlane.f32.xlu0 %v2612
        %v2614 = vpop.xlane.xlu0 %2613
        %v2615 = vsub.f32 %v2611, %v2614
        %v2616 = vmul.f32 %v2615, 1.442695
        %v2617 = vpow.pop %v2616
        %v2618 = vsel %vm724, %v2617, 0.0
        %2619 = vadd.xlane.f32.xlu0 %v2618
        %v2620 = vpop.xlane.xlu0 %2619
        %v2621 = vrcp.pop %v2620
        %v2622 = vmul.f32 %v2617, %v2621
        %v2623 = vpack.c.bf16 %v2622, %v2622
        %2624 = vrot.lane.b32.xlu0 %v2226, 32
        %v2625 = vpop.permute.xlu0 %2624
        %v2627 = vsel %vm724, %v2623, 0
        %v2630 = vsel %vm740, %v2625, 0
        %2632 = vmatprep.subr.bf16.mxu0 0
        %2633 = vmatpush1.bf16.msra.mxu0 %v2630
        %2634 = vmatprep.subr.bf16.mxu0 0
        %2635 = vmatpush1.bf16.msra.mxu0 0
        %2636 = vmatprep.subr.bf16.mxu0 0
        %2637 = vmatpush1.bf16.msra.mxu0 0
        %2638 = vmatprep.subr.bf16.mxu0 0
        %2639 = vmatpush1.bf16.msra.mxu0 0
        %2640 = vmatprep.subr.bf16.mxu0 0
        %2641 = vmatpush1.bf16.msra.mxu0 0
        %2642 = vmatprep.subr.bf16.mxu0 0
        %2643 = vmatpush1.bf16.msra.mxu0 0
        %2644 = vmatprep.subr.bf16.mxu0 0
        %2645 = vmatpush1.bf16.msra.mxu0 0
        %2646 = vmatprep.subr.bf16.mxu0 0
        %2647 = vmatpush1.bf16.msra.mxu0 0
        %2648 = vmatprep.subr.bf16.mxu0 0
        %2649 = vmatpush1.bf16.msra.mxu0 0
        %2650 = vmatprep.subr.bf16.mxu0 0
        %2651 = vmatpush1.bf16.msra.mxu0 0
        %2652 = vmatprep.subr.bf16.mxu0 0
        %2653 = vmatpush1.bf16.msra.mxu0 0
        %2654 = vmatprep.subr.bf16.mxu0 0
        %2655 = vmatpush1.bf16.msra.mxu0 0
        %2656 = vmatprep.subr.bf16.mxu0 0
        %2657 = vmatpush1.bf16.msra.mxu0 0
        %2658 = vmatprep.subr.bf16.mxu0 0
        %2659 = vmatpush1.bf16.msra.mxu0 0
        %2660 = vmatprep.subr.bf16.mxu0 0
        %2661 = vmatpush1.bf16.msra.mxu0 0
        %2662 = vmatprep.subr.bf16.mxu0 0
        %2663 = vmatpush1.bf16.msra.mxu0 0
        %2664 = vmatprep.mubr.bf16.mxu0 0
        %2665 = vmatmul.mubr.bf16.gmra.mrb[0].mxu0 %v2627
        %v2666 = vpop.f32.mrb[0].mxu0
        %v2667 = vadd.f32 0.0, %v2666
        %v2668 = vpop.f32.mrb[0].mxu0
        %v2669 = vpop.f32.mrb[0].mxu0
        %v2670 = vpop.f32.mrb[0].mxu0
        %2671 = vdwg.mxu0
        %2673 = vrot.lane.b32.xlu0 %v2443, 32
        %v2674 = vpop.permute.xlu0 %2673
        %2677 = vrot.lane.b32.xlu0 %v2555, 64
        %v2678 = vpop.permute.xlu0 %2677
        %2681 = vrot.lane.b32.xlu0 %v2667, 96
        %v2682 = vpop.permute.xlu0 %2681
        %v2684 = vsel %vm675, %v2328, %v2674
        %v2685 = vsel %vm1136, %v2684, %v2678
        %v2686 = vsel %vm1138, %v2685, %v2682
        %v2687 = vpack.c.bf16 %v2686, %v2686
        %s2688 = scalar_lea.vmem %s4, 64
        %v2689 = vld [vmem:[%s2688] sm:$0xf]
        %v2690 = vld [vmem:[%s2688 + $0x4] sm:$0xf]
        %v2691 = vld [vmem:[%s2688 + $0x8] sm:$0xf]
        %v2692 = vld [vmem:[%s2688 + $0xc] sm:$0xf]
        %v2693 = vld [vmem:[%s2688 + $0x10] sm:$0xf]
        %v2694 = vld [vmem:[%s2688 + $0x14] sm:$0xf]
        %v2695 = vld [vmem:[%s2688 + $0x18] sm:$0xf]
        %v2696 = vld [vmem:[%s2688 + $0x1c] sm:$0xf]
        %v2697 = vld [vmem:[%s2688 + $0x20] sm:$0xf]
        %v2698 = vld [vmem:[%s2688 + $0x24] sm:$0xf]
        %v2699 = vld [vmem:[%s2688 + $0x28] sm:$0xf]
        %v2700 = vld [vmem:[%s2688 + $0x2c] sm:$0xf]
        %v2701 = vld [vmem:[%s2688 + $0x30] sm:$0xf]
        %v2702 = vld [vmem:[%s2688 + $0x34] sm:$0xf]
        %v2703 = vld [vmem:[%s2688 + $0x38] sm:$0xf]
        %v2704 = vld [vmem:[%s2688 + $0x3c] sm:$0xf]
        %v2705 = vlaneseq
        %v2706 = vshrl.u32 %v2705, 7
        %v2707 = vsub.s32 3, %v2706
        %v2708 = vrot.slane %v1944, %v2707
        %v2725 = vunpack.c.l.b16 %v2689
        %v2726 = vunpack.c.l.b16 %v2690
        %v2727 = vunpack.c.l.b16 %v2691
        %v2728 = vunpack.c.l.b16 %v2692
        %v2729 = vunpack.c.l.b16 %v2693
        %v2730 = vunpack.c.l.b16 %v2694
        %v2731 = vunpack.c.l.b16 %v2695
        %v2732 = vunpack.c.l.b16 %v2696
        %v2733 = vunpack.c.l.b16 %v2697
        %v2734 = vunpack.c.l.b16 %v2698
        %v2735 = vunpack.c.l.b16 %v2699
        %v2736 = vunpack.c.l.b16 %v2700
        %v2737 = vunpack.c.l.b16 %v2701
        %v2738 = vunpack.c.l.b16 %v2702
        %v2739 = vunpack.c.l.b16 %v2703
        %v2740 = vunpack.c.l.b16 %v2704
        %v2741 = vpack.c.b16 %v2726, %v2725
        %v2742 = vpack.c.b16 %v2728, %v2727
        %v2743 = vpack.c.b16 %v2730, %v2729
        %v2744 = vpack.c.b16 %v2732, %v2731
        %v2745 = vpack.c.b16 %v2734, %v2733
        %v2746 = vpack.c.b16 %v2736, %v2735
        %v2747 = vpack.c.b16 %v2738, %v2737
        %v2748 = vpack.c.b16 %v2740, %v2739
        %2757 = vmatprep.subr.bf16.mxu0 0
        %2758 = vmatpush1.bf16.msra.mxu0 %v2741
        %2759 = vmatprep.subr.bf16.mxu0 0
        %2760 = vmatpush1.bf16.msra.mxu0 %v2742
        %2761 = vmatprep.subr.bf16.mxu0 0
        %2762 = vmatpush1.bf16.msra.mxu0 %v2743
        %2763 = vmatprep.subr.bf16.mxu0 0
        %2764 = vmatpush1.bf16.msra.mxu0 %v2744
        %2765 = vmatprep.subr.bf16.mxu0 0
        %2766 = vmatpush1.bf16.msra.mxu0 %v2745
        %2767 = vmatprep.subr.bf16.mxu0 0
        %2768 = vmatpush1.bf16.msra.mxu0 %v2746
        %2769 = vmatprep.subr.bf16.mxu0 0
        %2770 = vmatpush1.bf16.msra.mxu0 %v2747
        %2771 = vmatprep.subr.bf16.mxu0 0
        %2772 = vmatpush1.bf16.msra.mxu0 %v2748
        %2773 = vmatprep.subr.bf16.mxu0 0
        %2774 = vmatpush1.bf16.msra.mxu0 0
        %2775 = vmatprep.subr.bf16.mxu0 0
        %2776 = vmatpush1.bf16.msra.mxu0 0
        %2777 = vmatprep.subr.bf16.mxu0 0
        %2778 = vmatpush1.bf16.msra.mxu0 0
        %2779 = vmatprep.subr.bf16.mxu0 0
        %2780 = vmatpush1.bf16.msra.mxu0 0
        %2781 = vmatprep.subr.bf16.mxu0 0
        %2782 = vmatpush1.bf16.msra.mxu0 0
        %2783 = vmatprep.subr.bf16.mxu0 0
        %2784 = vmatpush1.bf16.msra.mxu0 0
        %2785 = vmatprep.subr.bf16.mxu0 0
        %2786 = vmatpush1.bf16.msra.mxu0 0
        %2787 = vmatprep.subr.bf16.mxu0 0
        %2788 = vmatpush1.bf16.msra.mxu0 0
        %2789 = vmatprep.mubr.bf16.mxu0 0
        %2790 = vmatmul.mubr.bf16.gmra.mrb[0].mxu0 %v2687
        %v2791 = vpop.f32.mrb[0].mxu0
        %v2792 = vadd.f32 %v2708, %v2791
        %v2793 = vpop.f32.mrb[0].mxu0
        %v2794 = vpop.f32.mrb[0].mxu0
        %v2795 = vpop.f32.mrb[0].mxu0
        %2796 = vdwg.mxu0
        %v2797 = vadd.f32 %v1942, %v2792
        %2798 = vadd.xlane.f32.xlu0 %v2797
        %v2799 = vpop.xlane.xlu0 %2798
        %v2800 = vmul.f32 %v2799, %v398
        %v2801 = vsub.f32 %v2797, %v2800
        %v2802 = vmul.f32 %v2801, %v2801
        %2803 = vadd.xlane.f32.xlu0 %v2802
        %v2804 = vpop.xlane.xlu0 %2803
        %v2805 = vmul.f32 %v2804, %v398
        %v2806 = vadd.f32 %v2805, 1e-05
        %v2807 = vrsqrt.pop %v2806
        %v2808 = vmul.f32 %v2801, %v2807
        %v2809 = vlaneseq
        %v2810 = vshrl.u32 %v2809, 7
        %v2811 = vsub.s32 4, %v2810
        %v2812 = vrot.slane %v1944, %v2811
        %v2813 = vmul.f32 %v2808, %v2812
        %v2814 = vlaneseq
        %v2815 = vshrl.u32 %v2814, 7
        %v2816 = vsub.s32 5, %v2815
        %v2817 = vrot.slane %v1944, %v2816
        %v2818 = vadd.f32 %v2813, %v2817
        %v2819 = vpack.c.bf16 %v2818, %v2818
        %s2820 = scalar_lea.vmem [#allocation5], 256
        %v2821 = vld [vmem:[%s2820] sm:$0xff]
        %v2822 = vld [vmem:[%s2820 + $0x8] sm:$0xff]
        %v2823 = vld [vmem:[%s2820 + $0x10] sm:$0xff]
        %v2824 = vld [vmem:[%s2820 + $0x18] sm:$0xff]
        %v2825 = vld [vmem:[%s2820 + $0x20] sm:$0xff]
        %v2826 = vld [vmem:[%s2820 + $0x28] sm:$0xff]
        %v2827 = vld [vmem:[%s2820 + $0x30] sm:$0xff]
        %v2828 = vld [vmem:[%s2820 + $0x38] sm:$0xff]
        %v2829 = vld [vmem:[%s2820 + $0x40] sm:$0xff]
        %v2830 = vld [vmem:[%s2820 + $0x48] sm:$0xff]
        %v2831 = vld [vmem:[%s2820 + $0x50] sm:$0xff]
        %v2832 = vld [vmem:[%s2820 + $0x58] sm:$0xff]
        %v2833 = vld [vmem:[%s2820 + $0x60] sm:$0xff]
        %v2834 = vld [vmem:[%s2820 + $0x68] sm:$0xff]
        %v2835 = vld [vmem:[%s2820 + $0x70] sm:$0xff]
        %v2836 = vld [vmem:[%s2820 + $0x78] sm:$0xff]
        %v2837 = vld [vmem:[%s2820 + $0x80] sm:$0xff]
        %v2838 = vld [vmem:[%s2820 + $0x88] sm:$0xff]
        %v2839 = vld [vmem:[%s2820 + $0x90] sm:$0xff]
        %v2840 = vld [vmem:[%s2820 + $0x98] sm:$0xff]
        %v2841 = vld [vmem:[%s2820 + $0xa0] sm:$0xff]
        %v2842 = vld [vmem:[%s2820 + $0xa8] sm:$0xff]
        %v2843 = vld [vmem:[%s2820 + $0xb0] sm:$0xff]
        %v2844 = vld [vmem:[%s2820 + $0xb8] sm:$0xff]
        %v2845 = vld [vmem:[%s2820 + $0xc0] sm:$0xff]
        %v2846 = vld [vmem:[%s2820 + $0xc8] sm:$0xff]
        %v2847 = vld [vmem:[%s2820 + $0xd0] sm:$0xff]
        %v2848 = vld [vmem:[%s2820 + $0xd8] sm:$0xff]
        %v2849 = vld [vmem:[%s2820 + $0xe0] sm:$0xff]
        %v2850 = vld [vmem:[%s2820 + $0xe8] sm:$0xff]
        %v2851 = vld [vmem:[%s2820 + $0xf0] sm:$0xff]
        %v2852 = vld [vmem:[%s2820 + $0xf8] sm:$0xff]
        %v2853 = vlaneseq
        %v2854 = vshrl.u32 %v2853, 7
        %v2855 = vsub.s32 6, %v2854
        %v2856 = vrot.slane %v1944, %v2855
        %v2857 = vlaneseq
        %v2858 = vshrl.u32 %v2857, 7
        %v2859 = vsub.s32 6, %v2858
        %v2860 = vrot.slane %v1945, %v2859
        %v2861 = vlaneseq
        %v2862 = vshrl.u32 %v2861, 7
        %v2863 = vsub.s32 6, %v2862
        %v2864 = vrot.slane %v1946, %v2863
        %v2865 = vlaneseq
        %v2866 = vshrl.u32 %v2865, 7
        %v2867 = vsub.s32 6, %v2866
        %v2868 = vrot.slane %v1947, %v2867
        %v2901 = vunpack.c.l.b16 %v2821
        %v2902 = vunpack.c.h.b16 %v2821
        %v2903 = vunpack.c.l.b16 %v2822
        %v2904 = vunpack.c.h.b16 %v2822
        %v2905 = vunpack.c.l.b16 %v2823
        %v2906 = vunpack.c.h.b16 %v2823
        %v2907 = vunpack.c.l.b16 %v2824
        %v2908 = vunpack.c.h.b16 %v2824
        %v2909 = vunpack.c.l.b16 %v2825
        %v2910 = vunpack.c.h.b16 %v2825
        %v2911 = vunpack.c.l.b16 %v2826
        %v2912 = vunpack.c.h.b16 %v2826
        %v2913 = vunpack.c.l.b16 %v2827
        %v2914 = vunpack.c.h.b16 %v2827
        %v2915 = vunpack.c.l.b16 %v2828
        %v2916 = vunpack.c.h.b16 %v2828
        %v2917 = vunpack.c.l.b16 %v2829
        %v2918 = vunpack.c.h.b16 %v2829
        %v2919 = vunpack.c.l.b16 %v2830
        %v2920 = vunpack.c.h.b16 %v2830
        %v2921 = vunpack.c.l.b16 %v2831
        %v2922 = vunpack.c.h.b16 %v2831
        %v2923 = vunpack.c.l.b16 %v2832
        %v2924 = vunpack.c.h.b16 %v2832
        %v2925 = vunpack.c.l.b16 %v2833
        %v2926 = vunpack.c.h.b16 %v2833
        %v2927 = vunpack.c.l.b16 %v2834
        %v2928 = vunpack.c.h.b16 %v2834
        %v2929 = vunpack.c.l.b16 %v2835
        %v2930 = vunpack.c.h.b16 %v2835
        %v2931 = vunpack.c.l.b16 %v2836
        %v2932 = vunpack.c.h.b16 %v2836
        %v2933 = vunpack.c.l.b16 %v2837
        %v2934 = vunpack.c.h.b16 %v2837
        %v2935 = vunpack.c.l.b16 %v2838
        %v2936 = vunpack.c.h.b16 %v2838
        %v2937 = vunpack.c.l.b16 %v2839
        %v2938 = vunpack.c.h.b16 %v2839
        %v2939 = vunpack.c.l.b16 %v2840
        %v2940 = vunpack.c.h.b16 %v2840
        %v2941 = vunpack.c.l.b16 %v2841
        %v2942 = vunpack.c.h.b16 %v2841
        %v2943 = vunpack.c.l.b16 %v2842
        %v2944 = vunpack.c.h.b16 %v2842
        %v2945 = vunpack.c.l.b16 %v2843
        %v2946 = vunpack.c.h.b16 %v2843
        %v2947 = vunpack.c.l.b16 %v2844
        %v2948 = vunpack.c.h.b16 %v2844
        %v2949 = vunpack.c.l.b16 %v2845
        %v2950 = vunpack.c.h.b16 %v2845
        %v2951 = vunpack.c.l.b16 %v2846
        %v2952 = vunpack.c.h.b16 %v2846
        %v2953 = vunpack.c.l.b16 %v2847
        %v2954 = vunpack.c.h.b16 %v2847
        %v2955 = vunpack.c.l.b16 %v2848
        %v2956 = vunpack.c.h.b16 %v2848
        %v2957 = vunpack.c.l.b16 %v2849
        %v2958 = vunpack.c.h.b16 %v2849
        %v2959 = vunpack.c.l.b16 %v2850
        %v2960 = vunpack.c.h.b16 %v2850
        %v2961 = vunpack.c.l.b16 %v2851
        %v2962 = vunpack.c.h.b16 %v2851
        %v2963 = vunpack.c.l.b16 %v2852
        %v2964 = vunpack.c.h.b16 %v2852
        %v2965 = vpack.c.b16 %v2905, %v2901
        %v2966 = vpack.c.b16 %v2906, %v2902
        %v2967 = vpack.c.b16 %v2907, %v2903
        %v2968 = vpack.c.b16 %v2908, %v2904
        %v2969 = vpack.c.b16 %v2913, %v2909
        %v2970 = vpack.c.b16 %v2914, %v2910
        %v2971 = vpack.c.b16 %v2915, %v2911
        %v2972 = vpack.c.b16 %v2916, %v2912
        %v2973 = vpack.c.b16 %v2921, %v2917
        %v2974 = vpack.c.b16 %v2922, %v2918
        %v2975 = vpack.c.b16 %v2923, %v2919
        %v2976 = vpack.c.b16 %v2924, %v2920
        %v2977 = vpack.c.b16 %v2929, %v2925
        %v2978 = vpack.c.b16 %v2930, %v2926
        %v2979 = vpack.c.b16 %v2931, %v2927
        %v2980 = vpack.c.b16 %v2932, %v2928
        %v2981 = vpack.c.b16 %v2937, %v2933
        %v2982 = vpack.c.b16 %v2938, %v2934
        %v2983 = vpack.c.b16 %v2939, %v2935
        %v2984 = vpack.c.b16 %v2940, %v2936
        %v2985 = vpack.c.b16 %v2945, %v2941
        %v2986 = vpack.c.b16 %v2946, %v2942
        %v2987 = vpack.c.b16 %v2947, %v2943
        %v2988 = vpack.c.b16 %v2948, %v2944
        %v2989 = vpack.c.b16 %v2953, %v2949
        %v2990 = vpack.c.b16 %v2954, %v2950
        %v2991 = vpack.c.b16 %v2955, %v2951
        %v2992 = vpack.c.b16 %v2956, %v2952
        %v2993 = vpack.c.b16 %v2961, %v2957
        %v2994 = vpack.c.b16 %v2962, %v2958
        %v2995 = vpack.c.b16 %v2963, %v2959
        %v2996 = vpack.c.b16 %v2964, %v2960
        %3029 = vmatprep.subr.bf16.mxu0 %v2966
        %3030 = vmatpush1.bf16.msra.mxu0 %v2965
        %3031 = vmatprep.subr.bf16.mxu0 %v2970
        %3032 = vmatpush1.bf16.msra.mxu0 %v2969
        %3033 = vmatprep.subr.bf16.mxu0 %v2974
        %3034 = vmatpush1.bf16.msra.mxu0 %v2973
        %3035 = vmatprep.subr.bf16.mxu0 %v2978
        %3036 = vmatpush1.bf16.msra.mxu0 %v2977
        %3037 = vmatprep.subr.bf16.mxu0 %v2982
        %3038 = vmatpush1.bf16.msra.mxu0 %v2981
        %3039 = vmatprep.subr.bf16.mxu0 %v2986
        %3040 = vmatpush1.bf16.msra.mxu0 %v2985
        %3041 = vmatprep.subr.bf16.mxu0 %v2990
        %3042 = vmatpush1.bf16.msra.mxu0 %v2989
        %3043 = vmatprep.subr.bf16.mxu0 %v2994
        %3044 = vmatpush1.bf16.msra.mxu0 %v2993
        %3045 = vmatprep.subr.bf16.mxu0 0
        %3046 = vmatpush1.bf16.msra.mxu0 0
        %3047 = vmatprep.subr.bf16.mxu0 0
        %3048 = vmatpush1.bf16.msra.mxu0 0
        %3049 = vmatprep.subr.bf16.mxu0 0
        %3050 = vmatpush1.bf16.msra.mxu0 0
        %3051 = vmatprep.subr.bf16.mxu0 0
        %3052 = vmatpush1.bf16.msra.mxu0 0
        %3053 = vmatprep.subr.bf16.mxu0 0
        %3054 = vmatpush1.bf16.msra.mxu0 0
        %3055 = vmatprep.subr.bf16.mxu0 0
        %3056 = vmatpush1.bf16.msra.mxu0 0
        %3057 = vmatprep.subr.bf16.mxu0 0
        %3058 = vmatpush1.bf16.msra.mxu0 0
        %3059 = vmatprep.subr.bf16.mxu0 0
        %3060 = vmatpush1.bf16.msra.mxu0 0
        %3061 = vmatprep.mubr.bf16.mxu0 0
        %3062 = vmatmul.mubr.bf16.gmra.mrb[0].mxu0 %v2819
        %v3063 = vpop.f32.mrb[0].mxu0
        %v3064 = vadd.f32 %v2856, %v3063
        %v3065 = vpop.f32.mrb[0].mxu0
        %v3066 = vadd.f32 %v2860, %v3065
        %v3067 = vpop.f32.mrb[0].mxu0
        %v3068 = vpop.f32.mrb[0].mxu0
        %3069 = vdwg.mxu0
        %3070 = vmatprep.subr.bf16.mxu0 %v2968
        %3071 = vmatpush1.bf16.msra.mxu0 %v2967
        %3072 = vmatprep.subr.bf16.mxu0 %v2972
        %3073 = vmatpush1.bf16.msra.mxu0 %v2971
        %3074 = vmatprep.subr.bf16.mxu0 %v2976
        %3075 = vmatpush1.bf16.msra.mxu0 %v2975
        %3076 = vmatprep.subr.bf16.mxu0 %v2980
        %3077 = vmatpush1.bf16.msra.mxu0 %v2979
        %3078 = vmatprep.subr.bf16.mxu0 %v2984
        %3079 = vmatpush1.bf16.msra.mxu0 %v2983
        %3080 = vmatprep.subr.bf16.mxu0 %v2988
        %3081 = vmatpush1.bf16.msra.mxu0 %v2987
        %3082 = vmatprep.subr.bf16.mxu0 %v2992
        %3083 = vmatpush1.bf16.msra.mxu0 %v2991
        %3084 = vmatprep.subr.bf16.mxu0 %v2996
        %3085 = vmatpush1.bf16.msra.mxu0 %v2995
        %3086 = vmatprep.subr.bf16.mxu0 0
        %3087 = vmatpush1.bf16.msra.mxu0 0
        %3088 = vmatprep.subr.bf16.mxu0 0
        %3089 = vmatpush1.bf16.msra.mxu0 0
        %3090 = vmatprep.subr.bf16.mxu0 0
        %3091 = vmatpush1.bf16.msra.mxu0 0
        %3092 = vmatprep.subr.bf16.mxu0 0
        %3093 = vmatpush1.bf16.msra.mxu0 0
        %3094 = vmatprep.subr.bf16.mxu0 0
        %3095 = vmatpush1.bf16.msra.mxu0 0
        %3096 = vmatprep.subr.bf16.mxu0 0
        %3097 = vmatpush1.bf16.msra.mxu0 0
        %3098 = vmatprep.subr.bf16.mxu0 0
        %3099 = vmatpush1.bf16.msra.mxu0 0
        %3100 = vmatprep.subr.bf16.mxu0 0
        %3101 = vmatpush1.bf16.msra.mxu0 0
        %3102 = vmatprep.mubr.bf16.mxu0 0
        %3103 = vmatmul.mubr.bf16.gmra.mrb[0].mxu0 %v2819
        %v3104 = vpop.f32.mrb[0].mxu0
        %v3105 = vadd.f32 %v2864, %v3104
        %v3106 = vpop.f32.mrb[0].mxu0
        %v3107 = vadd.f32 %v2868, %v3106
        %v3108 = vpop.f32.mrb[0].mxu0
        %v3109 = vpop.f32.mrb[0].mxu0
        %3110 = vdwg.mxu0
        %v3111 = vmul.f32 %v3064, 0.5
        %v3112 = vmul.f32 %v3066, 0.5
        %v3113 = vmul.f32 %v3105, 0.5
        %v3114 = vmul.f32 %v3107, 0.5
        %v3115 = vmul.f32 %v3064, 0.7978846
        %v3116 = vmul.f32 %v3066, 0.7978846
        %v3117 = vmul.f32 %v3105, 0.7978846
        %v3118 = vmul.f32 %v3107, 0.7978846
        %v3119 = vmul.f32 %v3064, 0.044715
        %v3120 = vmul.f32 %v3066, 0.044715
        %v3121 = vmul.f32 %v3105, 0.044715
        %v3122 = vmul.f32 %v3107, 0.044715
        %v3123 = vmul.f32 %v3119, %v3064
        %v3124 = vmul.f32 %v3120, %v3066
        %v3125 = vmul.f32 %v3121, %v3105
        %v3126 = vmul.f32 %v3122, %v3107
        %v3127 = vadd.f32 %v3123, 1.0
        %v3128 = vadd.f32 %v3124, 1.0
        %v3129 = vadd.f32 %v3125, 1.0
        %v3130 = vadd.f32 %v3126, 1.0
        %v3131 = vmul.f32 %v3115, %v3127
        %v3132 = vmul.f32 %v3116, %v3128
        %v3133 = vmul.f32 %v3117, %v3129
        %v3134 = vmul.f32 %v3118, %v3130
        %v3135 = vtanh.pop %v3131
        %v3136 = vtanh.pop %v3132
        %v3137 = vtanh.pop %v3133
        %v3138 = vtanh.pop %v3134
        %v3139 = vadd.f32 %v3135, 1.0
        %v3140 = vadd.f32 %v3136, 1.0
        %v3141 = vadd.f32 %v3137, 1.0
        %v3142 = vadd.f32 %v3138, 1.0
        %v3143 = vmul.f32 %v3111, %v3139
        %v3144 = vmul.f32 %v3112, %v3140
        %v3145 = vmul.f32 %v3113, %v3141
        %v3146 = vmul.f32 %v3114, %v3142
        %v3147 = vpack.c.bf16 %v3143, %v3143
        %v3148 = vpack.c.bf16 %v3144, %v3144
        %v3149 = vpack.c.bf16 %v3145, %v3145
        %v3150 = vpack.c.bf16 %v3146, %v3146
        %s3151 = scalar_lea.vmem [#allocation7], 256
        %v3152 = vld [vmem:[%s3151] sm:$0xf]
        %v3153 = vld [vmem:[%s3151 + $0x4] sm:$0xf]
        %v3154 = vld [vmem:[%s3151 + $0x8] sm:$0xf]
        %v3155 = vld [vmem:[%s3151 + $0xc] sm:$0xf]
        %v3156 = vld [vmem:[%s3151 + $0x10] sm:$0xf]
        %v3157 = vld [vmem:[%s3151 + $0x14] sm:$0xf]
        %v3158 = vld [vmem:[%s3151 + $0x18] sm:$0xf]
        %v3159 = vld [vmem:[%s3151 + $0x1c] sm:$0xf]
        %v3160 = vld [vmem:[%s3151 + $0x20] sm:$0xf]
        %v3161 = vld [vmem:[%s3151 + $0x24] sm:$0xf]
        %v3162 = vld [vmem:[%s3151 + $0x28] sm:$0xf]
        %v3163 = vld [vmem:[%s3151 + $0x2c] sm:$0xf]
        %v3164 = vld [vmem:[%s3151 + $0x30] sm:$0xf]
        %v3165 = vld [vmem:[%s3151 + $0x34] sm:$0xf]
        %v3166 = vld [vmem:[%s3151 + $0x38] sm:$0xf]
        %v3167 = vld [vmem:[%s3151 + $0x3c] sm:$0xf]
        %v3168 = vld [vmem:[%s3151 + $0x40] sm:$0xf]
        %v3169 = vld [vmem:[%s3151 + $0x44] sm:$0xf]
        %v3170 = vld [vmem:[%s3151 + $0x48] sm:$0xf]
        %v3171 = vld [vmem:[%s3151 + $0x4c] sm:$0xf]
        %v3172 = vld [vmem:[%s3151 + $0x50] sm:$0xf]
        %v3173 = vld [vmem:[%s3151 + $0x54] sm:$0xf]
        %v3174 = vld [vmem:[%s3151 + $0x58] sm:$0xf]
        %v3175 = vld [vmem:[%s3151 + $0x5c] sm:$0xf]
        %v3176 = vld [vmem:[%s3151 + $0x60] sm:$0xf]
        %v3177 = vld [vmem:[%s3151 + $0x64] sm:$0xf]
        %v3178 = vld [vmem:[%s3151 + $0x68] sm:$0xf]
        %v3179 = vld [vmem:[%s3151 + $0x6c] sm:$0xf]
        %v3180 = vld [vmem:[%s3151 + $0x70] sm:$0xf]
        %v3181 = vld [vmem:[%s3151 + $0x74] sm:$0xf]
        %v3182 = vld [vmem:[%s3151 + $0x78] sm:$0xf]
        %v3183 = vld [vmem:[%s3151 + $0x7c] sm:$0xf]
        %v3184 = vld [vmem:[%s3151 + $0x80] sm:$0xf]
        %v3185 = vld [vmem:[%s3151 + $0x84] sm:$0xf]
        %v3186 = vld [vmem:[%s3151 + $0x88] sm:$0xf]
        %v3187 = vld [vmem:[%s3151 + $0x8c] sm:$0xf]
        %v3188 = vld [vmem:[%s3151 + $0x90] sm:$0xf]
        %v3189 = vld [vmem:[%s3151 + $0x94] sm:$0xf]
        %v3190 = vld [vmem:[%s3151 + $0x98] sm:$0xf]
        %v3191 = vld [vmem:[%s3151 + $0x9c] sm:$0xf]
        %v3192 = vld [vmem:[%s3151 + $0xa0] sm:$0xf]
        %v3193 = vld [vmem:[%s3151 + $0xa4] sm:$0xf]
        %v3194 = vld [vmem:[%s3151 + $0xa8] sm:$0xf]
        %v3195 = vld [vmem:[%s3151 + $0xac] sm:$0xf]
        %v3196 = vld [vmem:[%s3151 + $0xb0] sm:$0xf]
        %v3197 = vld [vmem:[%s3151 + $0xb4] sm:$0xf]
        %v3198 = vld [vmem:[%s3151 + $0xb8] sm:$0xf]
        %v3199 = vld [vmem:[%s3151 + $0xbc] sm:$0xf]
        %v3200 = vld [vmem:[%s3151 + $0xc0] sm:$0xf]
        %v3201 = vld [vmem:[%s3151 + $0xc4] sm:$0xf]
        %v3202 = vld [vmem:[%s3151 + $0xc8] sm:$0xf]
        %v3203 = vld [vmem:[%s3151 + $0xcc] sm:$0xf]
        %v3204 = vld [vmem:[%s3151 + $0xd0] sm:$0xf]
        %v3205 = vld [vmem:[%s3151 + $0xd4] sm:$0xf]
        %v3206 = vld [vmem:[%s3151 + $0xd8] sm:$0xf]
        %v3207 = vld [vmem:[%s3151 + $0xdc] sm:$0xf]
        %v3208 = vld [vmem:[%s3151 + $0xe0] sm:$0xf]
        %v3209 = vld [vmem:[%s3151 + $0xe4] sm:$0xf]
        %v3210 = vld [vmem:[%s3151 + $0xe8] sm:$0xf]
        %v3211 = vld [vmem:[%s3151 + $0xec] sm:$0xf]
        %v3212 = vld [vmem:[%s3151 + $0xf0] sm:$0xf]
        %v3213 = vld [vmem:[%s3151 + $0xf4] sm:$0xf]
        %v3214 = vld [vmem:[%s3151 + $0xf8] sm:$0xf]
        %v3215 = vld [vmem:[%s3151 + $0xfc] sm:$0xf]
        %v3216 = vlaneseq
        %v3217 = vshrl.u32 %v3216, 7
        %v3218 = vsub.s32 7, %v3217
        %v3219 = vrot.slane %v1944, %v3218
        %v3284 = vunpack.c.l.b16 %v3152
        %v3285 = vunpack.c.l.b16 %v3153
        %v3286 = vunpack.c.l.b16 %v3154
        %v3287 = vunpack.c.l.b16 %v3155
        %v3288 = vunpack.c.l.b16 %v3156
        %v3289 = vunpack.c.l.b16 %v3157
        %v3290 = vunpack.c.l.b16 %v3158
        %v3291 = vunpack.c.l.b16 %v3159
        %v3292 = vunpack.c.l.b16 %v3160
        %v3293 = vunpack.c.l.b16 %v3161
        %v3294 = vunpack.c.l.b16 %v3162
        %v3295 = vunpack.c.l.b16 %v3163
        %v3296 = vunpack.c.l.b16 %v3164
        %v3297 = vunpack.c.l.b16 %v3165
        %v3298 = vunpack.c.l.b16 %v3166
        %v3299 = vunpack.c.l.b16 %v3167
        %v3300 = vunpack.c.l.b16 %v3168
        %v3301 = vunpack.c.l.b16 %v3169
        %v3302 = vunpack.c.l.b16 %v3170
        %v3303 = vunpack.c.l.b16 %v3171
        %v3304 = vunpack.c.l.b16 %v3172
        %v3305 = vunpack.c.l.b16 %v3173
        %v3306 = vunpack.c.l.b16 %v3174
        %v3307 = vunpack.c.l.b16 %v3175
        %v3308 = vunpack.c.l.b16 %v3176
        %v3309 = vunpack.c.l.b16 %v3177
        %v3310 = vunpack.c.l.b16 %v3178
        %v3311 = vunpack.c.l.b16 %v3179
        %v3312 = vunpack.c.l.b16 %v3180
        %v3313 = vunpack.c.l.b16 %v3181
        %v3314 = vunpack.c.l.b16 %v3182
        %v3315 = vunpack.c.l.b16 %v3183
        %v3316 = vunpack.c.l.b16 %v3184
        %v3317 = vunpack.c.l.b16 %v3185
        %v3318 = vunpack.c.l.b16 %v3186
        %v3319 = vunpack.c.l.b16 %v3187
        %v3320 = vunpack.c.l.b16 %v3188
        %v3321 = vunpack.c.l.b16 %v3189
        %v3322 = vunpack.c.l.b16 %v3190
        %v3323 = vunpack.c.l.b16 %v3191
        %v3324 = vunpack.c.l.b16 %v3192
        %v3325 = vunpack.c.l.b16 %v3193
        %v3326 = vunpack.c.l.b16 %v3194
        %v3327 = vunpack.c.l.b16 %v3195
        %v3328 = vunpack.c.l.b16 %v3196
        %v3329 = vunpack.c.l.b16 %v3197
        %v3330 = vunpack.c.l.b16 %v3198
        %v3331 = vunpack.c.l.b16 %v3199
        %v3332 = vunpack.c.l.b16 %v3200
        %v3333 = vunpack.c.l.b16 %v3201
        %v3334 = vunpack.c.l.b16 %v3202
        %v3335 = vunpack.c.l.b16 %v3203
        %v3336 = vunpack.c.l.b16 %v3204
        %v3337 = vunpack.c.l.b16 %v3205
        %v3338 = vunpack.c.l.b16 %v3206
        %v3339 = vunpack.c.l.b16 %v3207
        %v3340 = vunpack.c.l.b16 %v3208
        %v3341 = vunpack.c.l.b16 %v3209
        %v3342 = vunpack.c.l.b16 %v3210
        %v3343 = vunpack.c.l.b16 %v3211
        %v3344 = vunpack.c.l.b16 %v3212
        %v3345 = vunpack.c.l.b16 %v3213
        %v3346 = vunpack.c.l.b16 %v3214
        %v3347 = vunpack.c.l.b16 %v3215
        %v3348 = vpack.c.b16 %v3285, %v3284
        %v3349 = vpack.c.b16 %v3287, %v3286
        %v3350 = vpack.c.b16 %v3289, %v3288
        %v3351 = vpack.c.b16 %v3291, %v3290
        %v3352 = vpack.c.b16 %v3293, %v3292
        %v3353 = vpack.c.b16 %v3295, %v3294
        %v3354 = vpack.c.b16 %v3297, %v3296
        %v3355 = vpack.c.b16 %v3299, %v3298
        %v3356 = vpack.c.b16 %v3301, %v3300
        %v3357 = vpack.c.b16 %v3303, %v3302
        %v3358 = vpack.c.b16 %v3305, %v3304
        %v3359 = vpack.c.b16 %v3307, %v3306
        %v3360 = vpack.c.b16 %v3309, %v3308
        %v3361 = vpack.c.b16 %v3311, %v3310
        %v3362 = vpack.c.b16 %v3313, %v3312
        %v3363 = vpack.c.b16 %v3315, %v3314
        %v3364 = vpack.c.b16 %v3317, %v3316
        %v3365 = vpack.c.b16 %v3319, %v3318
        %v3366 = vpack.c.b16 %v3321, %v3320
        %v3367 = vpack.c.b16 %v3323, %v3322
        %v3368 = vpack.c.b16 %v3325, %v3324
        %v3369 = vpack.c.b16 %v3327, %v3326
        %v3370 = vpack.c.b16 %v3329, %v3328
        %v3371 = vpack.c.b16 %v3331, %v3330
        %v3372 = vpack.c.b16 %v3333, %v3332
        %v3373 = vpack.c.b16 %v3335, %v3334
        %v3374 = vpack.c.b16 %v3337, %v3336
        %v3375 = vpack.c.b16 %v3339, %v3338
        %v3376 = vpack.c.b16 %v3341, %v3340
        %v3377 = vpack.c.b16 %v3343, %v3342
        %v3378 = vpack.c.b16 %v3345, %v3344
        %v3379 = vpack.c.b16 %v3347, %v3346
        %3412 = vmatprep.subr.bf16.mxu0 0
        %3413 = vmatpush1.bf16.msra.mxu0 %v3348
        %3414 = vmatprep.subr.bf16.mxu0 0
        %3415 = vmatpush1.bf16.msra.mxu0 %v3349
        %3416 = vmatprep.subr.bf16.mxu0 0
        %3417 = vmatpush1.bf16.msra.mxu0 %v3350
        %3418 = vmatprep.subr.bf16.mxu0 0
        %3419 = vmatpush1.bf16.msra.mxu0 %v3351
        %3420 = vmatprep.subr.bf16.mxu0 0
        %3421 = vmatpush1.bf16.msra.mxu0 %v3352
        %3422 = vmatprep.subr.bf16.mxu0 0
        %3423 = vmatpush1.bf16.msra.mxu0 %v3353
        %3424 = vmatprep.subr.bf16.mxu0 0
        %3425 = vmatpush1.bf16.msra.mxu0 %v3354
        %3426 = vmatprep.subr.bf16.mxu0 0
        %3427 = vmatpush1.bf16.msra.mxu0 %v3355
        %3428 = vmatprep.subr.bf16.mxu0 0
        %3429 = vmatpush1.bf16.msra.mxu0 %v3356
        %3430 = vmatprep.subr.bf16.mxu0 0
        %3431 = vmatpush1.bf16.msra.mxu0 %v3357
        %3432 = vmatprep.subr.bf16.mxu0 0
        %3433 = vmatpush1.bf16.msra.mxu0 %v3358
        %3434 = vmatprep.subr.bf16.mxu0 0
        %3435 = vmatpush1.bf16.msra.mxu0 %v3359
        %3436 = vmatprep.subr.bf16.mxu0 0
        %3437 = vmatpush1.bf16.msra.mxu0 %v3360
        %3438 = vmatprep.subr.bf16.mxu0 0
        %3439 = vmatpush1.bf16.msra.mxu0 %v3361
        %3440 = vmatprep.subr.bf16.mxu0 0
        %3441 = vmatpush1.bf16.msra.mxu0 %v3362
        %3442 = vmatprep.subr.bf16.mxu0 0
        %3443 = vmatpush1.bf16.msra.mxu0 %v3363
        %3444 = vmatprep.mubr.bf16.mxu0 %v3148
        %3445 = vmatmul.mubr.bf16.gmra.mrb[0].mxu0 %v3147
        %v3446 = vpop.f32.mrb[0].mxu0
        %v3447 = vadd.f32 %v3219, %v3446
        %v3448 = vpop.f32.mrb[0].mxu0
        %v3449 = vpop.f32.mrb[0].mxu0
        %v3450 = vpop.f32.mrb[0].mxu0
        %3451 = vdwg.mxu0
        %3452 = vmatprep.subr.bf16.mxu0 0
        %3453 = vmatpush1.bf16.msra.mxu0 %v3364
        %3454 = vmatprep.subr.bf16.mxu0 0
        %3455 = vmatpush1.bf16.msra.mxu0 %v3365
        %3456 = vmatprep.subr.bf16.mxu0 0
        %3457 = vmatpush1.bf16.msra.mxu0 %v3366
        %3458 = vmatprep.subr.bf16.mxu0 0
        %3459 = vmatpush1.bf16.msra.mxu0 %v3367
        %3460 = vmatprep.subr.bf16.mxu0 0
        %3461 = vmatpush1.bf16.msra.mxu0 %v3368
        %3462 = vmatprep.subr.bf16.mxu0 0
        %3463 = vmatpush1.bf16.msra.mxu0 %v3369
        %3464 = vmatprep.subr.bf16.mxu0 0
        %3465 = vmatpush1.bf16.msra.mxu0 %v3370
        %3466 = vmatprep.subr.bf16.mxu0 0
        %3467 = vmatpush1.bf16.msra.mxu0 %v3371
        %3468 = vmatprep.subr.bf16.mxu0 0
        %3469 = vmatpush1.bf16.msra.mxu0 %v3372
        %3470 = vmatprep.subr.bf16.mxu0 0
        %3471 = vmatpush1.bf16.msra.mxu0 %v3373
        %3472 = vmatprep.subr.bf16.mxu0 0
        %3473 = vmatpush1.bf16.msra.mxu0 %v3374
        %3474 = vmatprep.subr.bf16.mxu0 0
        %3475 = vmatpush1.bf16.msra.mxu0 %v3375
        %3476 = vmatprep.subr.bf16.mxu0 0
        %3477 = vmatpush1.bf16.msra.mxu0 %v3376
        %3478 = vmatprep.subr.bf16.mxu0 0
        %3479 = vmatpush1.bf16.msra.mxu0 %v3377
        %3480 = vmatprep.subr.bf16.mxu0 0
        %3481 = vmatpush1.bf16.msra.mxu0 %v3378
        %3482 = vmatprep.subr.bf16.mxu0 0
        %3483 = vmatpush1.bf16.msra.mxu0 %v3379
        %3484 = vmatprep.mubr.bf16.mxu0 %v3150
        %3485 = vmatmul.mubr.bf16.gmra.mrb[0].mxu0 %v3149
        %v3486 = vpop.f32.mrb[0].mxu0
        %v3487 = vadd.f32 %v3447, %v3486
        %v3488 = vpop.f32.mrb[0].mxu0
        %v3489 = vpop.f32.mrb[0].mxu0
        %v3490 = vpop.f32.mrb[0].mxu0
        %3491 = vdwg.mxu0
        %v3492 = vadd.f32 %v2797, %v3487
        %v3493 = vld [vmem:[%s7] sm:$0x3]
        %3494 = vadd.xlane.f32.xlu0 %v3492
        %v3495 = vpop.xlane.xlu0 %3494
        %v3496 = vmul.f32 %v3495, %v398
        %v3497 = vsub.f32 %v3492, %v3496
        %v3498 = vmul.f32 %v3497, %v3497
        %3499 = vadd.xlane.f32.xlu0 %v3498
        %v3500 = vpop.xlane.xlu0 %3499
        %v3501 = vmul.f32 %v3500, %v398
        %v3502 = vadd.f32 %v3501, 1e-05
        %v3503 = vrsqrt.pop %v3502
        %v3504 = vmul.f32 %v3497, %v3503
        %v3505 = vlaneseq
        %v3506 = vshrl.u32 %v3505, 7
        %v3507 = vsub.s32 0, %v3506
        %v3508 = vrot.slane %v3493, %v3507
        %v3509 = vmul.f32 %v3504, %v3508
        %v3510 = vlaneseq
        %v3511 = vshrl.u32 %v3510, 7
        %v3512 = vsub.s32 1, %v3511
        %v3513 = vrot.slane %v3493, %v3512
        %v3514 = vadd.f32 %v3509, %v3513
        %v3515 = vpack.c.bf16 %v3514, %v3514
        %v3516 = vld [vmem:[%s8] sm:$0xf]
        %v3517 = vld [vmem:[%s8 + $0x4] sm:$0xf]
        %v3518 = vld [vmem:[%s8 + $0x8] sm:$0xf]
        %v3519 = vld [vmem:[%s8 + $0xc] sm:$0xf]
        %v3520 = vld [vmem:[%s8 + $0x10] sm:$0xf]
        %v3521 = vld [vmem:[%s8 + $0x14] sm:$0xf]
        %v3522 = vld [vmem:[%s8 + $0x18] sm:$0xf]
        %v3523 = vld [vmem:[%s8 + $0x1c] sm:$0xf]
        %v3524 = vld [vmem:[%s8 + $0x20] sm:$0xf]
        %v3525 = vld [vmem:[%s8 + $0x24] sm:$0xf]
        %v3526 = vld [vmem:[%s8 + $0x28] sm:$0xf]
        %v3527 = vld [vmem:[%s8 + $0x2c] sm:$0xf]
        %v3528 = vld [vmem:[%s8 + $0x30] sm:$0xf]
        %v3529 = vld [vmem:[%s8 + $0x34] sm:$0xf]
        %v3530 = vld [vmem:[%s8 + $0x38] sm:$0xf]
        %v3531 = vld [vmem:[%s8 + $0x3c] sm:$0xf]
        %v3548 = vunpack.c.l.b16 %v3516
        %v3549 = vunpack.c.l.b16 %v3517
        %v3550 = vunpack.c.l.b16 %v3518
        %v3551 = vunpack.c.l.b16 %v3519
        %v3552 = vunpack.c.l.b16 %v3520
        %v3553 = vunpack.c.l.b16 %v3521
        %v3554 = vunpack.c.l.b16 %v3522
        %v3555 = vunpack.c.l.b16 %v3523
        %v3556 = vunpack.c.l.b16 %v3524
        %v3557 = vunpack.c.l.b16 %v3525
        %v3558 = vunpack.c.l.b16 %v3526
        %v3559 = vunpack.c.l.b16 %v3527
        %v3560 = vunpack.c.l.b16 %v3528
        %v3561 = vunpack.c.l.b16 %v3529
        %v3562 = vunpack.c.l.b16 %v3530
        %v3563 = vunpack.c.l.b16 %v3531
        %v3564 = vpack.c.b16 %v3549, %v3548
        %v3565 = vpack.c.b16 %v3551, %v3550
        %v3566 = vpack.c.b16 %v3553, %v3552
        %v3567 = vpack.c.b16 %v3555, %v3554
        %v3568 = vpack.c.b16 %v3557, %v3556
        %v3569 = vpack.c.b16 %v3559, %v3558
        %v3570 = vpack.c.b16 %v3561, %v3560
        %v3571 = vpack.c.b16 %v3563, %v3562
        %3580 = vmatprep.subr.bf16.mxu0 0
        %3581 = vmatpush1.bf16.msra.mxu0 %v3564
        %3582 = vmatprep.subr.bf16.mxu0 0
        %3583 = vmatpush1.bf16.msra.mxu0 %v3565
        %3584 = vmatprep.subr.bf16.mxu0 0
        %3585 = vmatpush1.bf16.msra.mxu0 %v3566
        %3586 = vmatprep.subr.bf16.mxu0 0
        %3587 = vmatpush1.bf16.msra.mxu0 %v3567
        %3588 = vmatprep.subr.bf16.mxu0 0
        %3589 = vmatpush1.bf16.msra.mxu0 %v3568
        %3590 = vmatprep.subr.bf16.mxu0 0
        %3591 = vmatpush1.bf16.msra.mxu0 %v3569
        %3592 = vmatprep.subr.bf16.mxu0 0
        %3593 = vmatpush1.bf16.msra.mxu0 %v3570
        %3594 = vmatprep.subr.bf16.mxu0 0
        %3595 = vmatpush1.bf16.msra.mxu0 %v3571
        %3596 = vmatprep.subr.bf16.mxu0 0
        %3597 = vmatpush1.bf16.msra.mxu0 0
        %3598 = vmatprep.subr.bf16.mxu0 0
        %3599 = vmatpush1.bf16.msra.mxu0 0
        %3600 = vmatprep.subr.bf16.mxu0 0
        %3601 = vmatpush1.bf16.msra.mxu0 0
        %3602 = vmatprep.subr.bf16.mxu0 0
        %3603 = vmatpush1.bf16.msra.mxu0 0
        %3604 = vmatprep.subr.bf16.mxu0 0
        %3605 = vmatpush1.bf16.msra.mxu0 0
        %3606 = vmatprep.subr.bf16.mxu0 0
        %3607 = vmatpush1.bf16.msra.mxu0 0
        %3608 = vmatprep.subr.bf16.mxu0 0
        %3609 = vmatpush1.bf16.msra.mxu0 0
        %3610 = vmatprep.subr.bf16.mxu0 0
        %3611 = vmatpush1.bf16.msra.mxu0 0
        %3612 = vmatprep.mubr.bf16.mxu0 0
        %3613 = vmatmul.mubr.bf16.gmra.mrb[0].mxu0 %v3515
        %v3614 = vpop.f32.mrb[0].mxu0
        %v3615 = vadd.f32 0.0, %v3614
        %v3616 = vpop.f32.mrb[0].mxu0
        %v3617 = vpop.f32.mrb[0].mxu0
        %v3618 = vpop.f32.mrb[0].mxu0
        %3619 = vdwg.mxu0
        %3620 = vst [vmem:[%s380] sm:$0xff] %v3615
        %s3621 = sand.u32 %s232, 1
        %s3622 = scalar_lea.sflag [#allocation4], %s3621
        %s3623 = sand.u32 %s232, 1
        %s3624 = smul.addr %s3623, 8
        %s3625 = scalar_lea.vmem [#allocation8], %s3624
        // Predicated region
        $region69: #{pipeline_forward.1} parent=55 // pred_check
          %p3626 = pneg %p242
        $region70: #{pipeline_forward.1} parent=55 // pred_check_branch
          %3628 = sbr.rel (%p3626) target = $region72
        $region71: #{pipeline_forward.1} parent=55 // pred_region
          %s3630 = ssub.s32 128, 128
          %3631 = vsyncadd %s3622, %s3630
          %s3632 = smul.addr %s25, 128
          %s3633 = scalar_lea.hbm %s9, %s3632
          %s3635 = sshll.u32 %s3625, 4
          %s3636 = int_to_ptr.vmem [resolvable:$true] %s3635
          %3638 = dma.vmem_to_hbm [thread:$0]  %s3636, 128, %s3633, %s3622
        $region72: #{pipeline_forward.1} parent=55 // pred_fallthru
          _
      $region56: #{pipeline_forward.1} parent=5 // pred_fallthru
        _
      %p3639 = scmp.le.s32.totalorder 2, %s20
      // Predicated region
      $region73: #{pipeline_forward.1} parent=5 // pred_check
        %p3640 = pneg %p3639
      $region74: #{pipeline_forward.1} parent=5 // pred_check_branch
        %3642 = sbr.rel (%p3640) target = $region76
      $region75: #{pipeline_forward.1} parent=5 // pred_region
        %s3643 = ssub.s32 %s20, 2
        // Predicated region
        $region77: #{pipeline_forward.1} parent=75 // pred_check
          %p3644 = pneg %p248
        $region78: #{pipeline_forward.1} parent=75 // pred_check_branch
          %3646 = sbr.rel (%p3644) target = $region80
        $region79: #{pipeline_forward.1} parent=75 // pred_region
          %s3647 = sand.u32 %s233, 1
          %s3648 = scalar_lea.sflag [#allocation4], %s3647
          %s3649 = sand.u32 %s233, 1
          %s3650 = smul.addr %s3649, 8
          %s3651 = scalar_lea.vmem [#allocation8], %s3650
          %3652 = dma.done %s3648, 128
        $region80: #{pipeline_forward.1} parent=75 // pred_fallthru
          _
      $region76: #{pipeline_forward.1} parent=5 // pred_fallthru
        _
    $region6: #{pipeline_forward.1} parent=1 // loop_footer
      %s24 = sadd.s32 1, %s20
    $region7: #{pipeline_forward.1} parent=1 // loop_footer_branch
      %19 = sbr.rel target = $region3
    $region8: #{pipeline_forward.1} parent=1 // loop_exit
      _
    %3653 = vsyncpa [#allocation3], 1
    %s3654 = scalar_lea.sflag [#allocation3], 1
    %3655 = vsyncpa %s3654, 1
    %3656 = vsyncpa [#allocation6], 1
    %3657 = vsyncpa [#allocation4], 1
    %s3658 = scalar_lea.sflag [#allocation4], 1
    %3659 = vsyncpa %s3658, 1

</llo_original>
